<compile_context>
chip_gen: v7x
topology: tpu7x:2x2x1
jax: 0.10.0
libtpu: 0.0.40
codegen_flags: <defaults>
</compile_context>

<pallas_src>
import math

import numpy as np
import jax
import jax.numpy as jnp
from jax import lax
from jax.experimental import pallas as pl
from jax.experimental.pallas import tpu as pltpu

LANE = 128  # conv output channels are padded to the full TPU lane width


# --------------------------------------------------------------------------- helpers
def _pool_selectors(hp, wp, wrow, lv):
    """Two exact 0/1 matrices picking rows {2*wrow*i + 2*j} and {... + 1} of a
    length-lv buffer (the vertical pair-max output)."""
    s0 = np.zeros((hp * wp, lv), np.float32)
    s1 = np.zeros((hp * wp, lv), np.float32)
    for i in range(hp):
        for j in range(wp):
            s0[i * wp + j, 2 * wrow * i + 2 * j] = 1.0
            s1[i * wp + j, 2 * wrow * i + 2 * j + 1] = 1.0
    return s0, s1


def _pick_batch_blocking(batch):
    """(num_grid_blocks, images_per_block).  Single step on 1-TC chips (v5e/v6e)
    for small batches; >=2 parallel steps on v7x so both TensorCores get work."""
    try:
        kind = jax.devices()[0].device_kind.lower()
    except Exception:  # pragma: no cover - device query best effort only
        kind = ""
    dual_core = ("v7" in kind) or ("7x" in kind)
    max_per_block = 8
    if dual_core and batch >= 2:
        nblk = max(2, pl.cdiv(batch, max_per_block))
    else:
        nblk = pl.cdiv(batch, max_per_block)
    nblk = max(1, min(nblk, batch))
    bb = pl.cdiv(batch, nblk)
    nblk = pl.cdiv(batch, bb)
    return nblk, bb


# --------------------------------------------------------------------------- kernel
def _kernel_factory(layer_cfg, bb):
    """Fused (conv -> ReLU -> maxpool) x N kernel for one grid step of `bb` images."""

    def kernel(x_ref, *refs):
        o_ref = refs[-1]
        for bi in range(bb):                      # static unroll over images in block
            cur = None
            for li, cfg in enumerate(layer_cfg):
                w_ref, b_ref, s0_ref, s1_ref = refs[4 * li:4 * li + 4]
                wrow, macc, lv = cfg["WROW"], cfg["MACC"], cfg["LV"]

                # ---- Conv2d (VALID, stride 1)
                if li == 0:
                    # Input was im2col'ed in the wrapper: one MXU matmul, K=KH*KW*Cin.
                    conv = jnp.dot(x_ref[bi], w_ref[...],
                                   preferred_element_type=jnp.float32)
                else:
                    # Garbage-column conv on the flat activation; taps paired along K
                    # so each matmul feeds the 256-deep MXU on v6e/v7x.
                    offs = [kh * wrow + kw
                            for kh in range(cfg["KH"]) for kw in range(cfg["KW"])]
                    conv = None
                    for g0 in range(0, len(offs), 2):
                        grp = offs[g0:g0 + 2]
                        parts = [cur[o:o + macc, :] for o in grp]
                        lhs = parts[0] if len(grp) == 1 else jnp.concatenate(parts, -1)
                        rhs = w_ref[g0 * LANE:(g0 + len(grp)) * LANE, :]
                        part = jnp.dot(lhs, rhs, preferred_element_type=jnp.float32)
                        conv = part if conv is None else conv + part

                r = jnp.maximum(conv + b_ref[...], 0.0)       # bias once + ReLU

                # ---- MaxPool2d(2,2): aligned vertical pair-max on the VPU, then the
                # horizontal (+0,+1) picks via two exact 0/1 selection matmuls.
                v = jnp.maximum(r[0:lv, :], r[wrow:wrow + lv, :])
                cur = jnp.maximum(
                    jnp.dot(s0_ref[...], v, preferred_element_type=jnp.float32),
                    jnp.dot(s1_ref[...], v, preferred_element_type=jnp.float32))

            o_ref[bi] = cur.astype(o_ref.dtype)               # lane-dense store
    return kernel


# --------------------------------------------------------------------------- builder
def _build_forward(batch, cin, height, width, param_shapes):
    """Build (once per input shape) a jitted forward: params stay traced arguments,
    so weight updates never retrace; selectors are baked-in constants."""
    nblk, bb = _pick_batch_blocking(batch)
    bpad = nblk * bb

    assert param_shapes[0][1] == cin
    layer_cfg, sel_consts = [], []
    h, w = height, width
    prev_cout = cin
    for li, (cout, cin_l, kh, kw) in enumerate(param_shapes):
        assert cout <= LANE, "conv output channels must fit one 128-lane vreg"
        assert cin_l == prev_cout
        ho, wo = h - kh + 1, w - kw + 1
        hp, wp = ho // 2, wo // 2
        assert hp >= 1 and wp >= 1, "spatial dims collapse below the pool window"
        wrow = w                                   # row stride of the flat conv output
        macc = (ho - 1) * wrow + wo                # flat conv rows (garbage-column)
        lv = 2 * wrow * (hp - 1) + 2 * wp          # rows consumed by the vertical max
        kdim = kh * kw * (cin_l if li == 0 else LANE)
        s0, s1 = _pool_selectors(hp, wp, wrow, lv)
        layer_cfg.append(dict(KH=kh, KW=kw, CIN=cin_l, COUT=cout, WROW=wrow,
                              MACC=macc, LV=lv, HP=hp, WP=wp, KDIM=kdim))
        sel_consts.append((jnp.asarray(s0), jnp.asarray(s1)))
        h, w, prev_cout = hp, wp, cout

    hp_last, wp_last = h, w
    p_last = hp_last * wp_last
    c_last = param_shapes[-1][0]
    m1, k1 = layer_cfg[0]["MACC"], layer_cfg[0]["KDIM"]
    kh1, kw1 = layer_cfg[0]["KH"], layer_cfg[0]["KW"]

    kernel = _kernel_factory(layer_cfg, bb)

    in_specs = [pl.BlockSpec((bb, m1, k1), lambda b: (b, 0, 0))]
    for cfg, (s0, s1) in zip(layer_cfg, sel_consts):
        in_specs.append(pl.BlockSpec((cfg["KDIM"], LANE), lambda b: (0, 0)))
        in_specs.append(pl.BlockSpec((1, LANE), lambda b: (0, 0)))
        in_specs.append(pl.BlockSpec(s0.shape, lambda b: (0, 0)))
        in_specs.append(pl.BlockSpec(s1.shape, lambda b: (0, 0)))

    call = pl.pallas_call(
        kernel,
        out_shape=jax.ShapeDtypeStruct((bpad, p_last, LANE), jnp.float32),
        grid=(nblk,),
        in_specs=in_specs,
        out_specs=pl.BlockSpec((bb, p_last, LANE), lambda b: (b, 0, 0)),
        compiler_params=pltpu.CompilerParams(dimension_semantics=("parallel",)),
    )

    def fwd(x, params):
        # ---- pack conv weights / biases (tiny XLA ops, traced once per shape)
        consts = []
        for li, ((wt, bv), cfg) in enumerate(zip(params, layer_cfg)):
            cout, cin_l = cfg["COUT"], cfg["CIN"]
            w_hwio = jnp.transpose(wt.astype(jnp.float32), (2, 3, 1, 0))  # KH,KW,Cin,Cout
            if li > 0:  # inter-layer activations carry 128 zero-padded channel lanes
                w_hwio = jnp.pad(w_hwio, ((0, 0), (0, 0), (0, LANE - cin_l), (0, 0)))
            taps = jnp.pad(w_hwio.reshape(cfg["KDIM"], cout), ((0, 0), (0, LANE - cout)))
            bias = jnp.pad(bv.astype(jnp.float32).reshape(1, cout),
                           ((0, 0), (0, LANE - cout)))
            s0, s1 = sel_consts[li]
            consts.extend([taps, bias, s0, s1])

        # ---- layer-1 im2col in the garbage-column flat layout: (B, MACC1, KH*KW*Cin)
        x_flat = jnp.transpose(x.astype(jnp.float32), (0, 2, 3, 1)).reshape(
            batch, height * width, cin)
        cols = [x_flat[:, kh * width + kw: kh * width + kw + m1, :]
                for kh in range(kh1) for kw in range(kw1)]
        xi = cols[0] if len(cols) == 1 else jnp.concatenate(cols, axis=-1)
        if bpad != batch:
            xi = jnp.pad(xi, ((0, bpad - batch), (0, 0), (0, 0)))

        out = call(xi, *consts)                                # (bpad, Hp*Wp, 128)
        y = out[:batch, :, :c_last].reshape(batch, hp_last, wp_last, c_last)
        y = jnp.transpose(y, (0, 3, 1, 2))                     # NHWC -> NCHW
        return jnp.squeeze(y)                                  # matches torch .squeeze()

    return jax.jit(fwd)


# --------------------------------------------------------------------------- module
class CNNEncoderPallas:
    """Pallas port of CNN_Encoder (activation_fn = ReLU)."""

    def __init__(self, input_channels, channels, kernel_sizes, dropout=0, key=None):
        assert len(channels) == len(kernel_sizes)
        if key is None:
            key = jax.random.PRNGKey(0)
        self.params = []
        last = input_channels
        for cout, k in zip(channels, kernel_sizes):
            key, wkey, bkey = jax.random.split(key, 3)
            fan_in = last * k * k
            bound = 1.0 / math.sqrt(fan_in)       # PyTorch Conv2d default init range
            wgt = jax.random.uniform(wkey, (cout, last, k, k), jnp.float32, -bound, bound)
            bbv = jax.random.uniform(bkey, (cout,), jnp.float32, -bound, bound)
            self.params.append((wgt, bbv))
            last = cout
        self.input_channels = input_channels
        self._fwd_cache = {}
        # TODO(synk): `dropout` is accepted but unused — the reference forward never
        # inserts a dropout layer.

    def __call__(self, x_nchw):
        b, c, h, w = x_nchw.shape
        assert c == self.input_channels
        key = (b, c, h, w)
        if key not in self._fwd_cache:      # build pallas_call + selectors once/shape
            shapes = tuple(tuple(wt.shape) for (wt, _) in self.params)
            self._fwd_cache[key] = _build_forward(b, c, h, w, shapes)
        return self._fwd_cache[key](x_nchw, self.params)


# --------------------------------------------------------------------------- reference
def reference_forward(x_nchw, params):
    """Pure-JAX (XLA) reference for correctness checking."""
    y = x_nchw
    for wt, bv in params:
        y = lax.conv_general_dilated(y, wt, (1, 1), "VALID",
                                     dimension_numbers=("NCHW", "OIHW", "NCHW"))
        y = jnp.maximum(y + bv[None, :, None, None], 0.0)
        y = lax.reduce_window(y, -jnp.inf, lax.max,
                              (1, 1, 2, 2), (1, 1, 2, 2), "VALID")
    return jnp.squeeze(y)


if __name__ == "__main__":
    root = jax.random.PRNGKey(0)
    xkey, pkey = jax.random.split(root)

    B, Cin, H, W = 2, 4, 16, 16
    x = jax.random.normal(xkey, (B, Cin, H, W), jnp.float32)

    model = CNNEncoderPallas(input_channels=Cin, channels=[8, 16],
                             kernel_sizes=[3, 3], dropout=0, key=pkey)

    out = model(x)
    out = jax.block_until_ready(out)
    # second call exercises the cached compiled forward (no host-side rebuild)
    out = jax.block_until_ready(model(x))

    ref = reference_forward(x, model.params)
    assert out.shape == ref.shape, (out.shape, ref.shape)
    assert jnp.allclose(out, ref, atol=1e-4, rtol=1e-4), \
        float(jnp.max(jnp.abs(out - ref)))

    print("KERNEL_OK")
</pallas_src>

<mosaic_0001>
module attributes {stable_mosaic.version = 11 : i64} {
  func.func @kernel(%arg0: i32, %arg1: memref<2x222x36xf32, #tpu.memory_space<vmem>>, %arg2: memref<36x128xf32, #tpu.memory_space<vmem>>, %arg3: memref<1x128xf32, #tpu.memory_space<vmem>>, %arg4: memref<49x206xf32, #tpu.memory_space<vmem>>, %arg5: memref<49x206xf32, #tpu.memory_space<vmem>>, %arg6: memref<1152x128xf32, #tpu.memory_space<vmem>>, %arg7: memref<1x128xf32, #tpu.memory_space<vmem>>, %arg8: memref<4x18xf32, #tpu.memory_space<vmem>>, %arg9: memref<4x18xf32, #tpu.memory_space<vmem>>, %arg10: memref<2x4x128xf32, #tpu.memory_space<vmem>>) attributes {dimension_semantics = [#tpu.dimension_semantics<parallel>], iteration_bounds = array<i64: 1>, scalar_prefetch = 0 : i64, scratch_operands = 0 : i64, tpu.core_type = #tpu.core_type<tc>, window_params = [{transform_indices = @transform_0, window_bounds = array<i64: 2, 222, 36>}, {pipeline_mode = #tpu.pipeline_mode<synchronous>, transform_indices = @transform_1, window_bounds = array<i64: 36, 128>}, {pipeline_mode = #tpu.pipeline_mode<synchronous>, transform_indices = @transform_2, window_bounds = array<i64: 1, 128>}, {pipeline_mode = #tpu.pipeline_mode<synchronous>, transform_indices = @transform_3, window_bounds = array<i64: 49, 206>}, {pipeline_mode = #tpu.pipeline_mode<synchronous>, transform_indices = @transform_4, window_bounds = array<i64: 49, 206>}, {pipeline_mode = #tpu.pipeline_mode<synchronous>, transform_indices = @transform_5, window_bounds = array<i64: 1152, 128>}, {pipeline_mode = #tpu.pipeline_mode<synchronous>, transform_indices = @transform_6, window_bounds = array<i64: 1, 128>}, {pipeline_mode = #tpu.pipeline_mode<synchronous>, transform_indices = @transform_7, window_bounds = array<i64: 4, 18>}, {pipeline_mode = #tpu.pipeline_mode<synchronous>, transform_indices = @transform_8, window_bounds = array<i64: 4, 18>}, {transform_indices = @transform_9, window_bounds = array<i64: 2, 4, 128>}]} {
    %c0 = arith.constant 0 : index
    %c0_0 = arith.constant 0 : index
    %c0_1 = arith.constant 0 : index
    %0 = vector.load %arg1[%c0, %c0_0, %c0_1] : memref<2x222x36xf32, #tpu.memory_space<vmem>>, vector<1x222x36xf32>
    %1 = vector.shape_cast %0 : vector<1x222x36xf32> to vector<222x36xf32>
    %c0_2 = arith.constant 0 : index
    %c0_3 = arith.constant 0 : index
    %2 = vector.load %arg2[%c0_2, %c0_3] : memref<36x128xf32, #tpu.memory_space<vmem>>, vector<36x128xf32>
    %cst = arith.constant dense<0.000000e+00> : vector<222x128xf32>
    %3 = tpu.matmul %1, %2, %cst {dimension_numbers = #tpu.dot_dimension_numbers<[1], [0], [0], [1], [0, 0, 1, 1], [], []>} : vector<222x36xf32>, vector<36x128xf32>, vector<222x128xf32> -> vector<222x128xf32>
    %c0_4 = arith.constant 0 : index
    %c0_5 = arith.constant 0 : index
    %4 = vector.load %arg3[%c0_4, %c0_5] : memref<1x128xf32, #tpu.memory_space<vmem>>, vector<1x128xf32>
    %5 = vector.broadcast %4 : vector<1x128xf32> to vector<222x128xf32>
    %6 = arith.addf %3, %5 : vector<222x128xf32>
    %cst_6 = arith.constant 0.000000e+00 : f32
    %7 = vector.broadcast %cst_6 : f32 to vector<222x128xf32>
    %8 = arith.maximumf %6, %7 : vector<222x128xf32>
    %9 = vector.extract_strided_slice %8 {offsets = [0, 0], sizes = [206, 128], strides = [1, 1]} : vector<222x128xf32> to vector<206x128xf32>
    %10 = vector.extract_strided_slice %8 {offsets = [16, 0], sizes = [206, 128], strides = [1, 1]} : vector<222x128xf32> to vector<206x128xf32>
    %11 = arith.maximumf %9, %10 : vector<206x128xf32>
    %c0_7 = arith.constant 0 : index
    %c0_8 = arith.constant 0 : index
    %12 = vector.load %arg4[%c0_7, %c0_8] : memref<49x206xf32, #tpu.memory_space<vmem>>, vector<49x206xf32>
    %cst_9 = arith.constant dense<0.000000e+00> : vector<49x128xf32>
    %13 = tpu.matmul %12, %11, %cst_9 {dimension_numbers = #tpu.dot_dimension_numbers<[1], [0], [0], [1], [0, 0, 1, 1], [], []>} : vector<49x206xf32>, vector<206x128xf32>, vector<49x128xf32> -> vector<49x128xf32>
    %c0_10 = arith.constant 0 : index
    %c0_11 = arith.constant 0 : index
    %14 = vector.load %arg5[%c0_10, %c0_11] : memref<49x206xf32, #tpu.memory_space<vmem>>, vector<49x206xf32>
    %cst_12 = arith.constant dense<0.000000e+00> : vector<49x128xf32>
    %15 = tpu.matmul %14, %11, %cst_12 {dimension_numbers = #tpu.dot_dimension_numbers<[1], [0], [0], [1], [0, 0, 1, 1], [], []>} : vector<49x206xf32>, vector<206x128xf32>, vector<49x128xf32> -> vector<49x128xf32>
    %16 = arith.maximumf %13, %15 : vector<49x128xf32>
    %17 = vector.extract_strided_slice %16 {offsets = [0, 0], sizes = [33, 128], strides = [1, 1]} : vector<49x128xf32> to vector<33x128xf32>
    %18 = vector.extract_strided_slice %16 {offsets = [1, 0], sizes = [33, 128], strides = [1, 1]} : vector<49x128xf32> to vector<33x128xf32>
    %19 = tpu.concatenate %17, %18 in 1 : vector<33x128xf32>, vector<33x128xf32> -> vector<33x256xf32>
    %c0_13 = arith.constant 0 : index
    %c0_14 = arith.constant 0 : index
    %20 = vector.load %arg6[%c0_13, %c0_14] : memref<1152x128xf32, #tpu.memory_space<vmem>>, vector<256x128xf32>
    %cst_15 = arith.constant dense<0.000000e+00> : vector<33x128xf32>
    %21 = tpu.matmul %19, %20, %cst_15 {dimension_numbers = #tpu.dot_dimension_numbers<[1], [0], [0], [1], [0, 0, 1, 1], [], []>} : vector<33x256xf32>, vector<256x128xf32>, vector<33x128xf32> -> vector<33x128xf32>
    %22 = vector.extract_strided_slice %16 {offsets = [2, 0], sizes = [33, 128], strides = [1, 1]} : vector<49x128xf32> to vector<33x128xf32>
    %23 = vector.extract_strided_slice %16 {offsets = [7, 0], sizes = [33, 128], strides = [1, 1]} : vector<49x128xf32> to vector<33x128xf32>
    %24 = tpu.concatenate %22, %23 in 1 : vector<33x128xf32>, vector<33x128xf32> -> vector<33x256xf32>
    %c256 = arith.constant 256 : index
    %c0_16 = arith.constant 0 : index
    %25 = vector.load %arg6[%c256, %c0_16] : memref<1152x128xf32, #tpu.memory_space<vmem>>, vector<256x128xf32>
    %cst_17 = arith.constant dense<0.000000e+00> : vector<33x128xf32>
    %26 = tpu.matmul %24, %25, %cst_17 {dimension_numbers = #tpu.dot_dimension_numbers<[1], [0], [0], [1], [0, 0, 1, 1], [], []>} : vector<33x256xf32>, vector<256x128xf32>, vector<33x128xf32> -> vector<33x128xf32>
    %27 = arith.addf %21, %26 : vector<33x128xf32>
    %28 = vector.extract_strided_slice %16 {offsets = [8, 0], sizes = [33, 128], strides = [1, 1]} : vector<49x128xf32> to vector<33x128xf32>
    %29 = vector.extract_strided_slice %16 {offsets = [9, 0], sizes = [33, 128], strides = [1, 1]} : vector<49x128xf32> to vector<33x128xf32>
    %30 = tpu.concatenate %28, %29 in 1 : vector<33x128xf32>, vector<33x128xf32> -> vector<33x256xf32>
    %c512 = arith.constant 512 : index
    %c0_18 = arith.constant 0 : index
    %31 = vector.load %arg6[%c512, %c0_18] : memref<1152x128xf32, #tpu.memory_space<vmem>>, vector<256x128xf32>
    %cst_19 = arith.constant dense<0.000000e+00> : vector<33x128xf32>
    %32 = tpu.matmul %30, %31, %cst_19 {dimension_numbers = #tpu.dot_dimension_numbers<[1], [0], [0], [1], [0, 0, 1, 1], [], []>} : vector<33x256xf32>, vector<256x128xf32>, vector<33x128xf32> -> vector<33x128xf32>
    %33 = arith.addf %27, %32 : vector<33x128xf32>
    %34 = vector.extract_strided_slice %16 {offsets = [14, 0], sizes = [33, 128], strides = [1, 1]} : vector<49x128xf32> to vector<33x128xf32>
    %35 = vector.extract_strided_slice %16 {offsets = [15, 0], sizes = [33, 128], strides = [1, 1]} : vector<49x128xf32> to vector<33x128xf32>
    %36 = tpu.concatenate %34, %35 in 1 : vector<33x128xf32>, vector<33x128xf32> -> vector<33x256xf32>
    %c768 = arith.constant 768 : index
    %c0_20 = arith.constant 0 : index
    %37 = vector.load %arg6[%c768, %c0_20] : memref<1152x128xf32, #tpu.memory_space<vmem>>, vector<256x128xf32>
    %cst_21 = arith.constant dense<0.000000e+00> : vector<33x128xf32>
    %38 = tpu.matmul %36, %37, %cst_21 {dimension_numbers = #tpu.dot_dimension_numbers<[1], [0], [0], [1], [0, 0, 1, 1], [], []>} : vector<33x256xf32>, vector<256x128xf32>, vector<33x128xf32> -> vector<33x128xf32>
    %39 = arith.addf %33, %38 : vector<33x128xf32>
    %40 = vector.extract_strided_slice %16 {offsets = [16, 0], sizes = [33, 128], strides = [1, 1]} : vector<49x128xf32> to vector<33x128xf32>
    %c1024 = arith.constant 1024 : index
    %c0_22 = arith.constant 0 : index
    %41 = vector.load %arg6[%c1024, %c0_22] : memref<1152x128xf32, #tpu.memory_space<vmem>>, vector<128x128xf32>
    %cst_23 = arith.constant dense<0.000000e+00> : vector<33x128xf32>
    %42 = tpu.matmul %40, %41, %cst_23 {dimension_numbers = #tpu.dot_dimension_numbers<[1], [0], [0], [1], [0, 0, 1, 1], [], []>} : vector<33x128xf32>, vector<128x128xf32>, vector<33x128xf32> -> vector<33x128xf32>
    %43 = arith.addf %39, %42 : vector<33x128xf32>
    %c0_24 = arith.constant 0 : index
    %c0_25 = arith.constant 0 : index
    %44 = vector.load %arg7[%c0_24, %c0_25] : memref<1x128xf32, #tpu.memory_space<vmem>>, vector<1x128xf32>
    %45 = vector.broadcast %44 : vector<1x128xf32> to vector<33x128xf32>
    %46 = arith.addf %43, %45 : vector<33x128xf32>
    %cst_26 = arith.constant 0.000000e+00 : f32
    %47 = vector.broadcast %cst_26 : f32 to vector<33x128xf32>
    %48 = arith.maximumf %46, %47 : vector<33x128xf32>
    %49 = vector.extract_strided_slice %48 {offsets = [0, 0], sizes = [18, 128], strides = [1, 1]} : vector<33x128xf32> to vector<18x128xf32>
    %50 = vector.extract_strided_slice %48 {offsets = [7, 0], sizes = [18, 128], strides = [1, 1]} : vector<33x128xf32> to vector<18x128xf32>
    %51 = arith.maximumf %49, %50 : vector<18x128xf32>
    %c0_27 = arith.constant 0 : index
    %c0_28 = arith.constant 0 : index
    %52 = vector.load %arg8[%c0_27, %c0_28] : memref<4x18xf32, #tpu.memory_space<vmem>>, vector<4x18xf32>
    %cst_29 = arith.constant dense<0.000000e+00> : vector<4x128xf32>
    %53 = tpu.matmul %52, %51, %cst_29 {dimension_numbers = #tpu.dot_dimension_numbers<[1], [0], [0], [1], [0, 0, 1, 1], [], []>} : vector<4x18xf32>, vector<18x128xf32>, vector<4x128xf32> -> vector<4x128xf32>
    %c0_30 = arith.constant 0 : index
    %c0_31 = arith.constant 0 : index
    %54 = vector.load %arg9[%c0_30, %c0_31] : memref<4x18xf32, #tpu.memory_space<vmem>>, vector<4x18xf32>
    %cst_32 = arith.constant dense<0.000000e+00> : vector<4x128xf32>
    %55 = tpu.matmul %54, %51, %cst_32 {dimension_numbers = #tpu.dot_dimension_numbers<[1], [0], [0], [1], [0, 0, 1, 1], [], []>} : vector<4x18xf32>, vector<18x128xf32>, vector<4x128xf32> -> vector<4x128xf32>
    %56 = arith.maximumf %53, %55 : vector<4x128xf32>
    %c0_33 = arith.constant 0 : index
    %c0_34 = arith.constant 0 : index
    %c0_35 = arith.constant 0 : index
    %57 = vector.load %arg10[%c0_33, %c0_34, %c0_35] : memref<2x4x128xf32, #tpu.memory_space<vmem>>, vector<1x4x128xf32>
    %58 = vector.shape_cast %57 : vector<1x4x128xf32> to vector<4x128xf32>
    %59 = vector.shape_cast %56 : vector<4x128xf32> to vector<1x4x128xf32>
    tpu.vector_store %arg10[%c0_33, %c0_34, %c0_35], %59 {strides = array<i32>} : memref<2x4x128xf32, #tpu.memory_space<vmem>>, vector<1x4x128xf32>,
    %c1 = arith.constant 1 : index
    %c0_36 = arith.constant 0 : index
    %c0_37 = arith.constant 0 : index
    %60 = vector.load %arg1[%c1, %c0_36, %c0_37] : memref<2x222x36xf32, #tpu.memory_space<vmem>>, vector<1x222x36xf32>
    %61 = vector.shape_cast %60 : vector<1x222x36xf32> to vector<222x36xf32>
    %c0_38 = arith.constant 0 : index
    %c0_39 = arith.constant 0 : index
    %62 = vector.load %arg2[%c0_38, %c0_39] : memref<36x128xf32, #tpu.memory_space<vmem>>, vector<36x128xf32>
    %cst_40 = arith.constant dense<0.000000e+00> : vector<222x128xf32>
    %63 = tpu.matmul %61, %62, %cst_40 {dimension_numbers = #tpu.dot_dimension_numbers<[1], [0], [0], [1], [0, 0, 1, 1], [], []>} : vector<222x36xf32>, vector<36x128xf32>, vector<222x128xf32> -> vector<222x128xf32>
    %c0_41 = arith.constant 0 : index
    %c0_42 = arith.constant 0 : index
    %64 = vector.load %arg3[%c0_41, %c0_42] : memref<1x128xf32, #tpu.memory_space<vmem>>, vector<1x128xf32>
    %65 = vector.broadcast %64 : vector<1x128xf32> to vector<222x128xf32>
    %66 = arith.addf %63, %65 : vector<222x128xf32>
    %cst_43 = arith.constant 0.000000e+00 : f32
    %67 = vector.broadcast %cst_43 : f32 to vector<222x128xf32>
    %68 = arith.maximumf %66, %67 : vector<222x128xf32>
    %69 = vector.extract_strided_slice %68 {offsets = [0, 0], sizes = [206, 128], strides = [1, 1]} : vector<222x128xf32> to vector<206x128xf32>
    %70 = vector.extract_strided_slice %68 {offsets = [16, 0], sizes = [206, 128], strides = [1, 1]} : vector<222x128xf32> to vector<206x128xf32>
    %71 = arith.maximumf %69, %70 : vector<206x128xf32>
    %c0_44 = arith.constant 0 : index
    %c0_45 = arith.constant 0 : index
    %72 = vector.load %arg4[%c0_44, %c0_45] : memref<49x206xf32, #tpu.memory_space<vmem>>, vector<49x206xf32>
    %cst_46 = arith.constant dense<0.000000e+00> : vector<49x128xf32>
    %73 = tpu.matmul %72, %71, %cst_46 {dimension_numbers = #tpu.dot_dimension_numbers<[1], [0], [0], [1], [0, 0, 1, 1], [], []>} : vector<49x206xf32>, vector<206x128xf32>, vector<49x128xf32> -> vector<49x128xf32>
    %c0_47 = arith.constant 0 : index
    %c0_48 = arith.constant 0 : index
    %74 = vector.load %arg5[%c0_47, %c0_48] : memref<49x206xf32, #tpu.memory_space<vmem>>, vector<49x206xf32>
    %cst_49 = arith.constant dense<0.000000e+00> : vector<49x128xf32>
    %75 = tpu.matmul %74, %71, %cst_49 {dimension_numbers = #tpu.dot_dimension_numbers<[1], [0], [0], [1], [0, 0, 1, 1], [], []>} : vector<49x206xf32>, vector<206x128xf32>, vector<49x128xf32> -> vector<49x128xf32>
    %76 = arith.maximumf %73, %75 : vector<49x128xf32>
    %77 = vector.extract_strided_slice %76 {offsets = [0, 0], sizes = [33, 128], strides = [1, 1]} : vector<49x128xf32> to vector<33x128xf32>
    %78 = vector.extract_strided_slice %76 {offsets = [1, 0], sizes = [33, 128], strides = [1, 1]} : vector<49x128xf32> to vector<33x128xf32>
    %79 = tpu.concatenate %77, %78 in 1 : vector<33x128xf32>, vector<33x128xf32> -> vector<33x256xf32>
    %c0_50 = arith.constant 0 : index
    %c0_51 = arith.constant 0 : index
    %80 = vector.load %arg6[%c0_50, %c0_51] : memref<1152x128xf32, #tpu.memory_space<vmem>>, vector<256x128xf32>
    %cst_52 = arith.constant dense<0.000000e+00> : vector<33x128xf32>
    %81 = tpu.matmul %79, %80, %cst_52 {dimension_numbers = #tpu.dot_dimension_numbers<[1], [0], [0], [1], [0, 0, 1, 1], [], []>} : vector<33x256xf32>, vector<256x128xf32>, vector<33x128xf32> -> vector<33x128xf32>
    %82 = vector.extract_strided_slice %76 {offsets = [2, 0], sizes = [33, 128], strides = [1, 1]} : vector<49x128xf32> to vector<33x128xf32>
    %83 = vector.extract_strided_slice %76 {offsets = [7, 0], sizes = [33, 128], strides = [1, 1]} : vector<49x128xf32> to vector<33x128xf32>
    %84 = tpu.concatenate %82, %83 in 1 : vector<33x128xf32>, vector<33x128xf32> -> vector<33x256xf32>
    %c256_53 = arith.constant 256 : index
    %c0_54 = arith.constant 0 : index
    %85 = vector.load %arg6[%c256_53, %c0_54] : memref<1152x128xf32, #tpu.memory_space<vmem>>, vector<256x128xf32>
    %cst_55 = arith.constant dense<0.000000e+00> : vector<33x128xf32>
    %86 = tpu.matmul %84, %85, %cst_55 {dimension_numbers = #tpu.dot_dimension_numbers<[1], [0], [0], [1], [0, 0, 1, 1], [], []>} : vector<33x256xf32>, vector<256x128xf32>, vector<33x128xf32> -> vector<33x128xf32>
    %87 = arith.addf %81, %86 : vector<33x128xf32>
    %88 = vector.extract_strided_slice %76 {offsets = [8, 0], sizes = [33, 128], strides = [1, 1]} : vector<49x128xf32> to vector<33x128xf32>
    %89 = vector.extract_strided_slice %76 {offsets = [9, 0], sizes = [33, 128], strides = [1, 1]} : vector<49x128xf32> to vector<33x128xf32>
    %90 = tpu.concatenate %88, %89 in 1 : vector<33x128xf32>, vector<33x128xf32> -> vector<33x256xf32>
    %c512_56 = arith.constant 512 : index
    %c0_57 = arith.constant 0 : index
    %91 = vector.load %arg6[%c512_56, %c0_57] : memref<1152x128xf32, #tpu.memory_space<vmem>>, vector<256x128xf32>
    %cst_58 = arith.constant dense<0.000000e+00> : vector<33x128xf32>
    %92 = tpu.matmul %90, %91, %cst_58 {dimension_numbers = #tpu.dot_dimension_numbers<[1], [0], [0], [1], [0, 0, 1, 1], [], []>} : vector<33x256xf32>, vector<256x128xf32>, vector<33x128xf32> -> vector<33x128xf32>
    %93 = arith.addf %87, %92 : vector<33x128xf32>
    %94 = vector.extract_strided_slice %76 {offsets = [14, 0], sizes = [33, 128], strides = [1, 1]} : vector<49x128xf32> to vector<33x128xf32>
    %95 = vector.extract_strided_slice %76 {offsets = [15, 0], sizes = [33, 128], strides = [1, 1]} : vector<49x128xf32> to vector<33x128xf32>
    %96 = tpu.concatenate %94, %95 in 1 : vector<33x128xf32>, vector<33x128xf32> -> vector<33x256xf32>
    %c768_59 = arith.constant 768 : index
    %c0_60 = arith.constant 0 : index
    %97 = vector.load %arg6[%c768_59, %c0_60] : memref<1152x128xf32, #tpu.memory_space<vmem>>, vector<256x128xf32>
    %cst_61 = arith.constant dense<0.000000e+00> : vector<33x128xf32>
    %98 = tpu.matmul %96, %97, %cst_61 {dimension_numbers = #tpu.dot_dimension_numbers<[1], [0], [0], [1], [0, 0, 1, 1], [], []>} : vector<33x256xf32>, vector<256x128xf32>, vector<33x128xf32> -> vector<33x128xf32>
    %99 = arith.addf %93, %98 : vector<33x128xf32>
    %100 = vector.extract_strided_slice %76 {offsets = [16, 0], sizes = [33, 128], strides = [1, 1]} : vector<49x128xf32> to vector<33x128xf32>
    %c1024_62 = arith.constant 1024 : index
    %c0_63 = arith.constant 0 : index
    %101 = vector.load %arg6[%c1024_62, %c0_63] : memref<1152x128xf32, #tpu.memory_space<vmem>>, vector<128x128xf32>
    %cst_64 = arith.constant dense<0.000000e+00> : vector<33x128xf32>
    %102 = tpu.matmul %100, %101, %cst_64 {dimension_numbers = #tpu.dot_dimension_numbers<[1], [0], [0], [1], [0, 0, 1, 1], [], []>} : vector<33x128xf32>, vector<128x128xf32>, vector<33x128xf32> -> vector<33x128xf32>
    %103 = arith.addf %99, %102 : vector<33x128xf32>
    %c0_65 = arith.constant 0 : index
    %c0_66 = arith.constant 0 : index
    %104 = vector.load %arg7[%c0_65, %c0_66] : memref<1x128xf32, #tpu.memory_space<vmem>>, vector<1x128xf32>
    %105 = vector.broadcast %104 : vector<1x128xf32> to vector<33x128xf32>
    %106 = arith.addf %103, %105 : vector<33x128xf32>
    %cst_67 = arith.constant 0.000000e+00 : f32
    %107 = vector.broadcast %cst_67 : f32 to vector<33x128xf32>
    %108 = arith.maximumf %106, %107 : vector<33x128xf32>
    %109 = vector.extract_strided_slice %108 {offsets = [0, 0], sizes = [18, 128], strides = [1, 1]} : vector<33x128xf32> to vector<18x128xf32>
    %110 = vector.extract_strided_slice %108 {offsets = [7, 0], sizes = [18, 128], strides = [1, 1]} : vector<33x128xf32> to vector<18x128xf32>
    %111 = arith.maximumf %109, %110 : vector<18x128xf32>
    %c0_68 = arith.constant 0 : index
    %c0_69 = arith.constant 0 : index
    %112 = vector.load %arg8[%c0_68, %c0_69] : memref<4x18xf32, #tpu.memory_space<vmem>>, vector<4x18xf32>
    %cst_70 = arith.constant dense<0.000000e+00> : vector<4x128xf32>
    %113 = tpu.matmul %112, %111, %cst_70 {dimension_numbers = #tpu.dot_dimension_numbers<[1], [0], [0], [1], [0, 0, 1, 1], [], []>} : vector<4x18xf32>, vector<18x128xf32>, vector<4x128xf32> -> vector<4x128xf32>
    %c0_71 = arith.constant 0 : index
    %c0_72 = arith.constant 0 : index
    %114 = vector.load %arg9[%c0_71, %c0_72] : memref<4x18xf32, #tpu.memory_space<vmem>>, vector<4x18xf32>
    %cst_73 = arith.constant dense<0.000000e+00> : vector<4x128xf32>
    %115 = tpu.matmul %114, %111, %cst_73 {dimension_numbers = #tpu.dot_dimension_numbers<[1], [0], [0], [1], [0, 0, 1, 1], [], []>} : vector<4x18xf32>, vector<18x128xf32>, vector<4x128xf32> -> vector<4x128xf32>
    %116 = arith.maximumf %113, %115 : vector<4x128xf32>
    %c1_74 = arith.constant 1 : index
    %c0_75 = arith.constant 0 : index
    %c0_76 = arith.constant 0 : index
    %117 = vector.load %arg10[%c1_74, %c0_75, %c0_76] : memref<2x4x128xf32, #tpu.memory_space<vmem>>, vector<1x4x128xf32>
    %118 = vector.shape_cast %117 : vector<1x4x128xf32> to vector<4x128xf32>
    %119 = vector.shape_cast %116 : vector<4x128xf32> to vector<1x4x128xf32>
    tpu.vector_store %arg10[%c1_74, %c0_75, %c0_76], %119 {strides = array<i32>} : memref<2x4x128xf32, #tpu.memory_space<vmem>>, vector<1x4x128xf32>,
    return
  }
  func.func @transform_0(%arg0: i32) -> (i32, i32, i32) {
    %c0_i32 = arith.constant 0 : i32
    %c0_i32_0 = arith.constant 0 : i32
    %c0_i32_1 = arith.constant 0 : i32
    return %arg0, %c0_i32, %c0_i32_0 : i32, i32, i32
  }
  func.func @transform_1(%arg0: i32) -> (i32, i32) {
    %c0_i32 = arith.constant 0 : i32
    %c0_i32_0 = arith.constant 0 : i32
    %c0_i32_1 = arith.constant 0 : i32
    return %c0_i32, %c0_i32_0 : i32, i32
  }
  func.func @transform_2(%arg0: i32) -> (i32, i32) {
    %c0_i32 = arith.constant 0 : i32
    %c0_i32_0 = arith.constant 0 : i32
    %c0_i32_1 = arith.constant 0 : i32
    return %c0_i32, %c0_i32_0 : i32, i32
  }
  func.func @transform_3(%arg0: i32) -> (i32, i32) {
    %c0_i32 = arith.constant 0 : i32
    %c0_i32_0 = arith.constant 0 : i32
    %c0_i32_1 = arith.constant 0 : i32
    return %c0_i32, %c0_i32_0 : i32, i32
  }
  func.func @transform_4(%arg0: i32) -> (i32, i32) {
    %c0_i32 = arith.constant 0 : i32
    %c0_i32_0 = arith.constant 0 : i32
    %c0_i32_1 = arith.constant 0 : i32
    return %c0_i32, %c0_i32_0 : i32, i32
  }
  func.func @transform_5(%arg0: i32) -> (i32, i32) {
    %c0_i32 = arith.constant 0 : i32
    %c0_i32_0 = arith.constant 0 : i32
    %c0_i32_1 = arith.constant 0 : i32
    return %c0_i32, %c0_i32_0 : i32, i32
  }
  func.func @transform_6(%arg0: i32) -> (i32, i32) {
    %c0_i32 = arith.constant 0 : i32
    %c0_i32_0 = arith.constant 0 : i32
    %c0_i32_1 = arith.constant 0 : i32
    return %c0_i32, %c0_i32_0 : i32, i32
  }
  func.func @transform_7(%arg0: i32) -> (i32, i32) {
    %c0_i32 = arith.constant 0 : i32
    %c0_i32_0 = arith.constant 0 : i32
    %c0_i32_1 = arith.constant 0 : i32
    return %c0_i32, %c0_i32_0 : i32, i32
  }
  func.func @transform_8(%arg0: i32) -> (i32, i32) {
    %c0_i32 = arith.constant 0 : i32
    %c0_i32_0 = arith.constant 0 : i32
    %c0_i32_1 = arith.constant 0 : i32
    return %c0_i32, %c0_i32_0 : i32, i32
  }
  func.func @transform_9(%arg0: i32) -> (i32, i32, i32) {
    %c0_i32 = arith.constant 0 : i32
    %c0_i32_0 = arith.constant 0 : i32
    %c0_i32_1 = arith.constant 0 : i32
    return %arg0, %c0_i32, %c0_i32_0 : i32, i32, i32
  }
}

</mosaic_0001>

<llo_original>
// kernel: fwd.1
$region0: #{fwd.1}
  #allocation0 [shape = 'u32[]', space=smem, size = 0x4, offset = 0x4, fixed_abs, tag = 'smem constant byte address 0x4 - core index']
  #allocation1 [shape = 'u32[144,128]{1,0:T(1,128)}', space=vmem, size = 0x12000, scoped, tag = 'internal scratch']
  %s0 = inlined_call_operand.vmem [shape: f32[2,222,36], index: 0, kind: input, shape index: {}]
  %s1 = inlined_call_operand.vmem [shape: f32[36,128], index: 1, kind: input, shape index: {}]
  %s2 = inlined_call_operand.vmem [shape: f32[1,128], index: 2, kind: input, shape index: {}]
  %s3 = inlined_call_operand.vmem [shape: f32[49,206], index: 3, kind: input, shape index: {}]
  %s4 = inlined_call_operand.vmem [shape: f32[49,206], index: 4, kind: input, shape index: {}]
  %s5 = inlined_call_operand.vmem [shape: f32[1152,128], index: 5, kind: input, shape index: {}]
  %s6 = inlined_call_operand.vmem [shape: f32[1,128], index: 6, kind: input, shape index: {}]
  %s7 = inlined_call_operand.vmem [shape: f32[4,18], index: 7, kind: input, shape index: {}]
  %s8 = inlined_call_operand.vmem [shape: f32[4,18], index: 8, kind: input, shape index: {}]
  %s9 = inlined_call_operand.hbm [shape: f32[2,4,128], index: 9, kind: output, shape index: {}]
  %s10 = sld [smem:[#allocation0]]
  $region46: #{fwd.1} parent=0
    _
  %s12 = ssub.s32 1, %s10
  %s13 = scalar_select 0, %s12, %s10
  $region1: #{fwd.1} parent=0
    #allocation2 [shape = 'u8[4096]{0}', space=vmem, size = 0x1000, scoped, tag = 'output window, operand 0, single buffered']
    #allocation3 [shape = 's32[1]{0}', space=sflag, size = 0x4, scoped, tag = 'scoped memory for fwd.1']
    %14 = vsyncpa [#allocation3], 0
    // Predicated region
    $region2: #{fwd.1} parent=1 // pred_check
      _
    $region3: #{fwd.1} parent=1 // pred_check_branch
      %16 = sbr.rel (0) target = $region5
    $region4: #{fwd.1} parent=1 // pred_region
      _
    $region5: #{fwd.1} parent=1 // pred_fallthru
      _
    // Predicated region
    $region6: #{fwd.1} parent=1 // pred_check
      _
    $region7: #{fwd.1} parent=1 // pred_check_branch
      %18 = sbr.rel (0) target = $region9
    $region8: #{fwd.1} parent=1 // pred_region
      _
    $region9: #{fwd.1} parent=1 // pred_fallthru
      _
    // Predicated region
    $region10: #{fwd.1} parent=1 // pred_check
      _
    $region11: #{fwd.1} parent=1 // pred_check_branch
      %20 = sbr.rel (0) target = $region13
    $region12: #{fwd.1} parent=1 // pred_region
      _
    $region13: #{fwd.1} parent=1 // pred_fallthru
      _
    // Predicated region
    $region14: #{fwd.1} parent=1 // pred_check
      _
    $region15: #{fwd.1} parent=1 // pred_check_branch
      %22 = sbr.rel (0) target = $region17
    $region16: #{fwd.1} parent=1 // pred_region
      _
    $region17: #{fwd.1} parent=1 // pred_fallthru
      _
    // Predicated region
    $region18: #{fwd.1} parent=1 // pred_check
      _
    $region19: #{fwd.1} parent=1 // pred_check_branch
      %24 = sbr.rel (0) target = $region21
    $region20: #{fwd.1} parent=1 // pred_region
      _
    $region21: #{fwd.1} parent=1 // pred_fallthru
      _
    // Predicated region
    $region22: #{fwd.1} parent=1 // pred_check
      _
    $region23: #{fwd.1} parent=1 // pred_check_branch
      %26 = sbr.rel (0) target = $region25
    $region24: #{fwd.1} parent=1 // pred_region
      _
    $region25: #{fwd.1} parent=1 // pred_fallthru
      _
    // Predicated region
    $region26: #{fwd.1} parent=1 // pred_check
      _
    $region27: #{fwd.1} parent=1 // pred_check_branch
      %28 = sbr.rel (0) target = $region29
    $region28: #{fwd.1} parent=1 // pred_region
      _
    $region29: #{fwd.1} parent=1 // pred_fallthru
      _
    // Predicated region
    $region30: #{fwd.1} parent=1 // pred_check
      _
    $region31: #{fwd.1} parent=1 // pred_check_branch
      %30 = sbr.rel (0) target = $region33
    $region32: #{fwd.1} parent=1 // pred_region
      _
    $region33: #{fwd.1} parent=1 // pred_fallthru
      _
    // Predicated region
    $region34: #{fwd.1} parent=1 // pred_check
      _
    $region35: #{fwd.1} parent=1 // pred_check_branch
      %32 = sbr.rel (0) target = $region37
    $region36: #{fwd.1} parent=1 // pred_region
      _
    $region37: #{fwd.1} parent=1 // pred_fallthru
      _
    %v33 = vld [vmem:[%s0] sm:$0xff]
    %v34 = vld [vmem:[%s0 + $0x8] sm:$0xff]
    %v35 = vld [vmem:[%s0 + $0x10] sm:$0xff]
    %v36 = vld [vmem:[%s0 + $0x18] sm:$0xff]
    %v37 = vld [vmem:[%s0 + $0x20] sm:$0xff]
    %v38 = vld [vmem:[%s0 + $0x28] sm:$0xff]
    %v39 = vld [vmem:[%s0 + $0x30] sm:$0xff]
    %v40 = vld [vmem:[%s0 + $0x38] sm:$0xff]
    %v41 = vld [vmem:[%s0 + $0x40] sm:$0xff]
    %v42 = vld [vmem:[%s0 + $0x48] sm:$0xff]
    %v43 = vld [vmem:[%s0 + $0x50] sm:$0xff]
    %v44 = vld [vmem:[%s0 + $0x58] sm:$0xff]
    %v45 = vld [vmem:[%s0 + $0x60] sm:$0xff]
    %v46 = vld [vmem:[%s0 + $0x68] sm:$0xff]
    %v47 = vld [vmem:[%s0 + $0x70] sm:$0xff]
    %v48 = vld [vmem:[%s0 + $0x78] sm:$0xff]
    %v49 = vld [vmem:[%s0 + $0x80] sm:$0xff]
    %v50 = vld [vmem:[%s0 + $0x88] sm:$0xff]
    %v51 = vld [vmem:[%s0 + $0x90] sm:$0xff]
    %v52 = vld [vmem:[%s0 + $0x98] sm:$0xff]
    %v53 = vld [vmem:[%s0 + $0xa0] sm:$0xff]
    %v54 = vld [vmem:[%s0 + $0xa8] sm:$0xff]
    %v55 = vld [vmem:[%s0 + $0xb0] sm:$0xff]
    %v56 = vld [vmem:[%s0 + $0xb8] sm:$0xff]
    %v57 = vld [vmem:[%s0 + $0xc0] sm:$0xff]
    %v58 = vld [vmem:[%s0 + $0xc8] sm:$0xff]
    %v59 = vld [vmem:[%s0 + $0xd0] sm:$0xff]
    %v60 = vld [vmem:[%s0 + $0xd8] sm:$0x3f]
    %v61 = vld [vmem:[%s1] sm:$0xff]
    %v62 = vld [vmem:[%s1 + $0x8] sm:$0xff]
    %v63 = vld [vmem:[%s1 + $0x10] sm:$0xff]
    %v64 = vld [vmem:[%s1 + $0x18] sm:$0xff]
    %v65 = vld [vmem:[%s1 + $0x20] sm:$0xf]
    %v66 = vld [vmem:[%s2] sm:$0x1]
    %v68 = vlaneseq
    %v69 = vshrl.u32 %v68, 7
    %v70 = vsub.s32 0, %v69
    %v71 = vrot.slane %v66, %v70
    %vm73 = vcmask 293888
    %v75 = vsel %vm73, %v33, 0
    %v78 = vsel %vm73, %v34, 0
    %v81 = vsel %vm73, %v35, 0
    %v84 = vsel %vm73, %v36, 0
    %v87 = vsel %vm73, %v37, 0
    %v90 = vsel %vm73, %v38, 0
    %v93 = vsel %vm73, %v39, 0
    %v96 = vsel %vm73, %v40, 0
    %v99 = vsel %vm73, %v41, 0
    %v102 = vsel %vm73, %v42, 0
    %v105 = vsel %vm73, %v43, 0
    %v108 = vsel %vm73, %v44, 0
    %v111 = vsel %vm73, %v45, 0
    %v114 = vsel %vm73, %v46, 0
    %v117 = vsel %vm73, %v47, 0
    %v120 = vsel %vm73, %v48, 0
    %v123 = vsel %vm73, %v49, 0
    %v126 = vsel %vm73, %v50, 0
    %v129 = vsel %vm73, %v51, 0
    %v132 = vsel %vm73, %v52, 0
    %v135 = vsel %vm73, %v53, 0
    %v138 = vsel %vm73, %v54, 0
    %v141 = vsel %vm73, %v55, 0
    %v144 = vsel %vm73, %v56, 0
    %v147 = vsel %vm73, %v57, 0
    %v150 = vsel %vm73, %v58, 0
    %v153 = vsel %vm73, %v59, 0
    %v156 = vsel %vm73, %v60, 0
    %vm158 = vcmask 1043456
    %v160 = vsel %vm158, %v65, 0
    %162 = vmatprep.subr.mxu0 0.0
    %163 = vmatpush1.msra.mxu0 %v61
    %164 = vmatprep.subr.mxu0 0.0
    %165 = vmatpush1.msra.mxu0 %v62
    %166 = vmatprep.subr.mxu0 0.0
    %167 = vmatpush1.msra.mxu0 %v63
    %168 = vmatprep.subr.mxu0 0.0
    %169 = vmatpush1.msra.mxu0 %v64
    %170 = vmatprep.subr.mxu0 0.0
    %171 = vmatpush1.msra.mxu0 %v160
    %172 = vmatprep.subr.mxu0 0.0
    %173 = vmatpush1.msra.mxu0 0.0
    %174 = vmatprep.subr.mxu0 0.0
    %175 = vmatpush1.msra.mxu0 0.0
    %176 = vmatprep.subr.mxu0 0.0
    %177 = vmatpush1.msra.mxu0 0.0
    %178 = vmatprep.subr.mxu0 0.0
    %179 = vmatpush1.msra.mxu0 0.0
    %180 = vmatprep.subr.mxu0 0.0
    %181 = vmatpush1.msra.mxu0 0.0
    %182 = vmatprep.subr.mxu0 0.0
    %183 = vmatpush1.msra.mxu0 0.0
    %184 = vmatprep.subr.mxu0 0.0
    %185 = vmatpush1.msra.mxu0 0.0
    %186 = vmatprep.subr.mxu0 0.0
    %187 = vmatpush1.msra.mxu0 0.0
    %188 = vmatprep.subr.mxu0 0.0
    %189 = vmatpush1.msra.mxu0 0.0
    %190 = vmatprep.subr.mxu0 0.0
    %191 = vmatpush1.msra.mxu0 0.0
    %192 = vmatprep.subr.mxu0 0.0
    %193 = vmatpush1.msra.mxu0 0.0
    %194 = vmatprep.subr.mxu0 0.0
    %195 = vmatpush1.msra.mxu0 0.0
    %196 = vmatprep.subr.mxu0 0.0
    %197 = vmatpush1.msra.mxu0 0.0
    %198 = vmatprep.subr.mxu0 0.0
    %199 = vmatpush1.msra.mxu0 0.0
    %200 = vmatprep.subr.mxu0 0.0
    %201 = vmatpush1.msra.mxu0 0.0
    %202 = vmatprep.subr.mxu0 0.0
    %203 = vmatpush1.msra.mxu0 0.0
    %204 = vmatprep.subr.mxu0 0.0
    %205 = vmatpush1.msra.mxu0 0.0
    %206 = vmatprep.subr.mxu0 0.0
    %207 = vmatpush1.msra.mxu0 0.0
    %208 = vmatprep.subr.mxu0 0.0
    %209 = vmatpush1.msra.mxu0 0.0
    %210 = vmatprep.subr.mxu0 0.0
    %211 = vmatpush1.msra.mxu0 0.0
    %212 = vmatprep.subr.mxu0 0.0
    %213 = vmatpush1.msra.mxu0 0.0
    %214 = vmatprep.subr.mxu0 0.0
    %215 = vmatpush1.msra.mxu0 0.0
    %216 = vmatprep.subr.mxu0 0.0
    %217 = vmatpush1.msra.mxu0 0.0
    %218 = vmatprep.subr.mxu0 0.0
    %219 = vmatpush1.msra.mxu0 0.0
    %220 = vmatprep.subr.mxu0 0.0
    %221 = vmatpush1.msra.mxu0 0.0
    %222 = vmatprep.subr.mxu0 0.0
    %223 = vmatpush1.msra.mxu0 0.0
    %224 = vmatprep.subr.mxu0 0.0
    %225 = vmatpush1.msra.mxu0 0.0
    %226 = vmatprep.mubr.f32.mxu0 0.0
    %227 = vmatmul.mubr.f32.gmra.mrb[0].mxu0 %v75
    %v228 = vpop.f32.mrb[0].mxu0
    %v229 = vadd.f32 %v71, %v228
    %v230 = vpop.f32.mrb[0].mxu0
    %231 = vmatprep.mubr.f32.mxu0 0.0
    %232 = vmatmul.mubr.f32.gmra.mrb[0].mxu0 %v78
    %v233 = vpop.f32.mrb[0].mxu0
    %v234 = vadd.f32 %v71, %v233
    %v235 = vpop.f32.mrb[0].mxu0
    %236 = vmatprep.mubr.f32.mxu0 0.0
    %237 = vmatmul.mubr.f32.gmra.mrb[0].mxu0 %v81
    %v238 = vpop.f32.mrb[0].mxu0
    %v239 = vadd.f32 %v71, %v238
    %v240 = vpop.f32.mrb[0].mxu0
    %241 = vmatprep.mubr.f32.mxu0 0.0
    %242 = vmatmul.mubr.f32.gmra.mrb[0].mxu0 %v84
    %v243 = vpop.f32.mrb[0].mxu0
    %v244 = vadd.f32 %v71, %v243
    %v245 = vpop.f32.mrb[0].mxu0
    %246 = vmatprep.mubr.f32.mxu0 0.0
    %247 = vmatmul.mubr.f32.gmra.mrb[0].mxu0 %v87
    %v248 = vpop.f32.mrb[0].mxu0
    %v249 = vadd.f32 %v71, %v248
    %v250 = vpop.f32.mrb[0].mxu0
    %251 = vmatprep.mubr.f32.mxu0 0.0
    %252 = vmatmul.mubr.f32.gmra.mrb[0].mxu0 %v90
    %v253 = vpop.f32.mrb[0].mxu0
    %v254 = vadd.f32 %v71, %v253
    %v255 = vpop.f32.mrb[0].mxu0
    %256 = vmatprep.mubr.f32.mxu0 0.0
    %257 = vmatmul.mubr.f32.gmra.mrb[0].mxu0 %v93
    %v258 = vpop.f32.mrb[0].mxu0
    %v259 = vadd.f32 %v71, %v258
    %v260 = vpop.f32.mrb[0].mxu0
    %261 = vmatprep.mubr.f32.mxu0 0.0
    %262 = vmatmul.mubr.f32.gmra.mrb[0].mxu0 %v96
    %v263 = vpop.f32.mrb[0].mxu0
    %v264 = vadd.f32 %v71, %v263
    %v265 = vpop.f32.mrb[0].mxu0
    %266 = vmatprep.mubr.f32.mxu0 0.0
    %267 = vmatmul.mubr.f32.gmra.mrb[0].mxu0 %v99
    %v268 = vpop.f32.mrb[0].mxu0
    %v269 = vadd.f32 %v71, %v268
    %v270 = vpop.f32.mrb[0].mxu0
    %271 = vmatprep.mubr.f32.mxu0 0.0
    %272 = vmatmul.mubr.f32.gmra.mrb[0].mxu0 %v102
    %v273 = vpop.f32.mrb[0].mxu0
    %v274 = vadd.f32 %v71, %v273
    %v275 = vpop.f32.mrb[0].mxu0
    %276 = vmatprep.mubr.f32.mxu0 0.0
    %277 = vmatmul.mubr.f32.gmra.mrb[0].mxu0 %v105
    %v278 = vpop.f32.mrb[0].mxu0
    %v279 = vadd.f32 %v71, %v278
    %v280 = vpop.f32.mrb[0].mxu0
    %281 = vmatprep.mubr.f32.mxu0 0.0
    %282 = vmatmul.mubr.f32.gmra.mrb[0].mxu0 %v108
    %v283 = vpop.f32.mrb[0].mxu0
    %v284 = vadd.f32 %v71, %v283
    %v285 = vpop.f32.mrb[0].mxu0
    %286 = vmatprep.mubr.f32.mxu0 0.0
    %287 = vmatmul.mubr.f32.gmra.mrb[0].mxu0 %v111
    %v288 = vpop.f32.mrb[0].mxu0
    %v289 = vadd.f32 %v71, %v288
    %v290 = vpop.f32.mrb[0].mxu0
    %291 = vmatprep.mubr.f32.mxu0 0.0
    %292 = vmatmul.mubr.f32.gmra.mrb[0].mxu0 %v114
    %v293 = vpop.f32.mrb[0].mxu0
    %v294 = vadd.f32 %v71, %v293
    %v295 = vpop.f32.mrb[0].mxu0
    %296 = vmatprep.mubr.f32.mxu0 0.0
    %297 = vmatmul.mubr.f32.gmra.mrb[0].mxu0 %v117
    %v298 = vpop.f32.mrb[0].mxu0
    %v299 = vadd.f32 %v71, %v298
    %v300 = vpop.f32.mrb[0].mxu0
    %301 = vmatprep.mubr.f32.mxu0 0.0
    %302 = vmatmul.mubr.f32.gmra.mrb[0].mxu0 %v120
    %v303 = vpop.f32.mrb[0].mxu0
    %v304 = vadd.f32 %v71, %v303
    %v305 = vpop.f32.mrb[0].mxu0
    %306 = vmatprep.mubr.f32.mxu0 0.0
    %307 = vmatmul.mubr.f32.gmra.mrb[0].mxu0 %v123
    %v308 = vpop.f32.mrb[0].mxu0
    %v309 = vadd.f32 %v71, %v308
    %v310 = vpop.f32.mrb[0].mxu0
    %311 = vmatprep.mubr.f32.mxu0 0.0
    %312 = vmatmul.mubr.f32.gmra.mrb[0].mxu0 %v126
    %v313 = vpop.f32.mrb[0].mxu0
    %v314 = vadd.f32 %v71, %v313
    %v315 = vpop.f32.mrb[0].mxu0
    %316 = vmatprep.mubr.f32.mxu0 0.0
    %317 = vmatmul.mubr.f32.gmra.mrb[0].mxu0 %v129
    %v318 = vpop.f32.mrb[0].mxu0
    %v319 = vadd.f32 %v71, %v318
    %v320 = vpop.f32.mrb[0].mxu0
    %321 = vmatprep.mubr.f32.mxu0 0.0
    %322 = vmatmul.mubr.f32.gmra.mrb[0].mxu0 %v132
    %v323 = vpop.f32.mrb[0].mxu0
    %v324 = vadd.f32 %v71, %v323
    %v325 = vpop.f32.mrb[0].mxu0
    %326 = vmatprep.mubr.f32.mxu0 0.0
    %327 = vmatmul.mubr.f32.gmra.mrb[0].mxu0 %v135
    %v328 = vpop.f32.mrb[0].mxu0
    %v329 = vadd.f32 %v71, %v328
    %v330 = vpop.f32.mrb[0].mxu0
    %331 = vmatprep.mubr.f32.mxu0 0.0
    %332 = vmatmul.mubr.f32.gmra.mrb[0].mxu0 %v138
    %v333 = vpop.f32.mrb[0].mxu0
    %v334 = vadd.f32 %v71, %v333
    %v335 = vpop.f32.mrb[0].mxu0
    %336 = vmatprep.mubr.f32.mxu0 0.0
    %337 = vmatmul.mubr.f32.gmra.mrb[0].mxu0 %v141
    %v338 = vpop.f32.mrb[0].mxu0
    %v339 = vadd.f32 %v71, %v338
    %v340 = vpop.f32.mrb[0].mxu0
    %341 = vmatprep.mubr.f32.mxu0 0.0
    %342 = vmatmul.mubr.f32.gmra.mrb[0].mxu0 %v144
    %v343 = vpop.f32.mrb[0].mxu0
    %v344 = vadd.f32 %v71, %v343
    %v345 = vpop.f32.mrb[0].mxu0
    %346 = vmatprep.mubr.f32.mxu0 0.0
    %347 = vmatmul.mubr.f32.gmra.mrb[0].mxu0 %v147
    %v348 = vpop.f32.mrb[0].mxu0
    %v349 = vadd.f32 %v71, %v348
    %v350 = vpop.f32.mrb[0].mxu0
    %351 = vmatprep.mubr.f32.mxu0 0.0
    %352 = vmatmul.mubr.f32.gmra.mrb[0].mxu0 %v150
    %v353 = vpop.f32.mrb[0].mxu0
    %v354 = vadd.f32 %v71, %v353
    %v355 = vpop.f32.mrb[0].mxu0
    %356 = vmatprep.mubr.f32.mxu0 0.0
    %357 = vmatmul.mubr.f32.gmra.mrb[0].mxu0 %v153
    %v358 = vpop.f32.mrb[0].mxu0
    %v359 = vadd.f32 %v71, %v358
    %v360 = vpop.f32.mrb[0].mxu0
    %361 = vmatprep.mubr.f32.mxu0 0.0
    %362 = vmatmul.mubr.f32.gmra.mrb[0].mxu0 %v156
    %v363 = vpop.f32.mrb[0].mxu0
    %v364 = vadd.f32 %v71, %v363
    %v365 = vpop.f32.mrb[0].mxu0
    %366 = vdwg.mxu0
    %v367 = vmax.f32 %v229, 0.0
    %v368 = vmax.f32 %v234, 0.0
    %v369 = vmax.f32 %v239, 0.0
    %v370 = vmax.f32 %v244, 0.0
    %v371 = vmax.f32 %v249, 0.0
    %v372 = vmax.f32 %v254, 0.0
    %v373 = vmax.f32 %v259, 0.0
    %v374 = vmax.f32 %v264, 0.0
    %v375 = vmax.f32 %v269, 0.0
    %v376 = vmax.f32 %v274, 0.0
    %v377 = vmax.f32 %v279, 0.0
    %v378 = vmax.f32 %v284, 0.0
    %v379 = vmax.f32 %v289, 0.0
    %v380 = vmax.f32 %v294, 0.0
    %v381 = vmax.f32 %v299, 0.0
    %v382 = vmax.f32 %v304, 0.0
    %v383 = vmax.f32 %v309, 0.0
    %v384 = vmax.f32 %v314, 0.0
    %v385 = vmax.f32 %v319, 0.0
    %v386 = vmax.f32 %v324, 0.0
    %v387 = vmax.f32 %v329, 0.0
    %v388 = vmax.f32 %v334, 0.0
    %v389 = vmax.f32 %v339, 0.0
    %v390 = vmax.f32 %v344, 0.0
    %v391 = vmax.f32 %v349, 0.0
    %v392 = vmax.f32 %v354, 0.0
    %v393 = vmax.f32 %v359, 0.0
    %v394 = vmax.f32 %v364, 0.0
    %v395 = vmax.f32 %v367, %v369
    %v396 = vmax.f32 %v368, %v370
    %v397 = vmax.f32 %v369, %v371
    %v398 = vmax.f32 %v370, %v372
    %v399 = vmax.f32 %v371, %v373
    %v400 = vmax.f32 %v372, %v374
    %v401 = vmax.f32 %v373, %v375
    %v402 = vmax.f32 %v374, %v376
    %v403 = vmax.f32 %v375, %v377
    %v404 = vmax.f32 %v376, %v378
    %v405 = vmax.f32 %v377, %v379
    %v406 = vmax.f32 %v378, %v380
    %v407 = vmax.f32 %v379, %v381
    %v408 = vmax.f32 %v380, %v382
    %v409 = vmax.f32 %v381, %v383
    %v410 = vmax.f32 %v382, %v384
    %v411 = vmax.f32 %v383, %v385
    %v412 = vmax.f32 %v384, %v386
    %v413 = vmax.f32 %v385, %v387
    %v414 = vmax.f32 %v386, %v388
    %v415 = vmax.f32 %v387, %v389
    %v416 = vmax.f32 %v388, %v390
    %v417 = vmax.f32 %v389, %v391
    %v418 = vmax.f32 %v390, %v392
    %v419 = vmax.f32 %v391, %v393
    %v420 = vmax.f32 %v392, %v394
    %v421 = vld [vmem:[%s3] sm:$0xff]
    %v422 = vld [vmem:[%s3 + $0x8] sm:$0xff]
    %v423 = vld [vmem:[%s3 + $0x10] sm:$0xff]
    %v424 = vld [vmem:[%s3 + $0x18] sm:$0xff]
    %v425 = vld [vmem:[%s3 + $0x20] sm:$0xff]
    %v426 = vld [vmem:[%s3 + $0x28] sm:$0xff]
    %v427 = vld [vmem:[%s3 + $0x30] sm:$0xff]
    %v428 = vld [vmem:[%s3 + $0x38] sm:$0xff]
    %v429 = vld [vmem:[%s3 + $0x40] sm:$0xff]
    %v430 = vld [vmem:[%s3 + $0x48] sm:$0xff]
    %v431 = vld [vmem:[%s3 + $0x50] sm:$0xff]
    %v432 = vld [vmem:[%s3 + $0x58] sm:$0xff]
    %v433 = vld [vmem:[%s3 + $0x60] sm:$0x1]
    %v434 = vld [vmem:[%s3 + $0x68] sm:$0x1]
    %vm435 = vcmask 637952
    %v437 = vsel %vm435, %v422, 0
    %v440 = vsel %vm435, %v424, 0
    %v443 = vsel %vm435, %v426, 0
    %v446 = vsel %vm435, %v428, 0
    %v449 = vsel %vm435, %v430, 0
    %v452 = vsel %vm435, %v432, 0
    %v455 = vsel %vm435, %v434, 0
    %vm457 = vcmask 1045504
    %v459 = vsel %vm457, %v420, 0
    %461 = vmatprep.subr.mxu0 0.0
    %462 = vmatpush1.msra.mxu0 %v395
    %463 = vmatprep.subr.mxu0 0.0
    %464 = vmatpush1.msra.mxu0 %v396
    %465 = vmatprep.subr.mxu0 0.0
    %466 = vmatpush1.msra.mxu0 %v397
    %467 = vmatprep.subr.mxu0 0.0
    %468 = vmatpush1.msra.mxu0 %v398
    %469 = vmatprep.subr.mxu0 0.0
    %470 = vmatpush1.msra.mxu0 %v399
    %471 = vmatprep.subr.mxu0 0.0
    %472 = vmatpush1.msra.mxu0 %v400
    %473 = vmatprep.subr.mxu0 0.0
    %474 = vmatpush1.msra.mxu0 %v401
    %475 = vmatprep.subr.mxu0 0.0
    %476 = vmatpush1.msra.mxu0 %v402
    %477 = vmatprep.subr.mxu0 0.0
    %478 = vmatpush1.msra.mxu0 %v403
    %479 = vmatprep.subr.mxu0 0.0
    %480 = vmatpush1.msra.mxu0 %v404
    %481 = vmatprep.subr.mxu0 0.0
    %482 = vmatpush1.msra.mxu0 %v405
    %483 = vmatprep.subr.mxu0 0.0
    %484 = vmatpush1.msra.mxu0 %v406
    %485 = vmatprep.subr.mxu0 0.0
    %486 = vmatpush1.msra.mxu0 %v407
    %487 = vmatprep.subr.mxu0 0.0
    %488 = vmatpush1.msra.mxu0 %v408
    %489 = vmatprep.subr.mxu0 0.0
    %490 = vmatpush1.msra.mxu0 %v409
    %491 = vmatprep.subr.mxu0 0.0
    %492 = vmatpush1.msra.mxu0 %v410
    %493 = vmatprep.subr.mxu0 0.0
    %494 = vmatpush1.msra.mxu0 %v411
    %495 = vmatprep.subr.mxu0 0.0
    %496 = vmatpush1.msra.mxu0 %v412
    %497 = vmatprep.subr.mxu0 0.0
    %498 = vmatpush1.msra.mxu0 %v413
    %499 = vmatprep.subr.mxu0 0.0
    %500 = vmatpush1.msra.mxu0 %v414
    %501 = vmatprep.subr.mxu0 0.0
    %502 = vmatpush1.msra.mxu0 %v415
    %503 = vmatprep.subr.mxu0 0.0
    %504 = vmatpush1.msra.mxu0 %v416
    %505 = vmatprep.subr.mxu0 0.0
    %506 = vmatpush1.msra.mxu0 %v417
    %507 = vmatprep.subr.mxu0 0.0
    %508 = vmatpush1.msra.mxu0 %v418
    %509 = vmatprep.subr.mxu0 0.0
    %510 = vmatpush1.msra.mxu0 %v419
    %511 = vmatprep.subr.mxu0 0.0
    %512 = vmatpush1.msra.mxu0 %v459
    %513 = vmatprep.subr.mxu0 0.0
    %514 = vmatpush1.msra.mxu0 0.0
    %515 = vmatprep.subr.mxu0 0.0
    %516 = vmatpush1.msra.mxu0 0.0
    %517 = vmatprep.subr.mxu0 0.0
    %518 = vmatpush1.msra.mxu0 0.0
    %519 = vmatprep.subr.mxu0 0.0
    %520 = vmatpush1.msra.mxu0 0.0
    %521 = vmatprep.subr.mxu0 0.0
    %522 = vmatpush1.msra.mxu0 0.0
    %523 = vmatprep.subr.mxu0 0.0
    %524 = vmatpush1.msra.mxu0 0.0
    %525 = vmatprep.mubr.f32.mxu0 %v437
    %526 = vmatmul.mubr.f32.gmra.mrb[0].mxu0 %v421
    %v527 = vpop.f32.mrb[0].mxu0
    %v528 = vadd.f32 0.0, %v527
    %v529 = vpop.f32.mrb[0].mxu0
    %530 = vmatprep.mubr.f32.mxu0 %v440
    %531 = vmatmul.mubr.f32.gmra.mrb[0].mxu0 %v423
    %v532 = vpop.f32.mrb[0].mxu0
    %v533 = vadd.f32 0.0, %v532
    %v534 = vpop.f32.mrb[0].mxu0
    %535 = vmatprep.mubr.f32.mxu0 %v443
    %536 = vmatmul.mubr.f32.gmra.mrb[0].mxu0 %v425
    %v537 = vpop.f32.mrb[0].mxu0
    %v538 = vadd.f32 0.0, %v537
    %v539 = vpop.f32.mrb[0].mxu0
    %540 = vmatprep.mubr.f32.mxu0 %v446
    %541 = vmatmul.mubr.f32.gmra.mrb[0].mxu0 %v427
    %v542 = vpop.f32.mrb[0].mxu0
    %v543 = vadd.f32 0.0, %v542
    %v544 = vpop.f32.mrb[0].mxu0
    %545 = vmatprep.mubr.f32.mxu0 %v449
    %546 = vmatmul.mubr.f32.gmra.mrb[0].mxu0 %v429
    %v547 = vpop.f32.mrb[0].mxu0
    %v548 = vadd.f32 0.0, %v547
    %v549 = vpop.f32.mrb[0].mxu0
    %550 = vmatprep.mubr.f32.mxu0 %v452
    %551 = vmatmul.mubr.f32.gmra.mrb[0].mxu0 %v431
    %v552 = vpop.f32.mrb[0].mxu0
    %v553 = vadd.f32 0.0, %v552
    %v554 = vpop.f32.mrb[0].mxu0
    %555 = vmatprep.mubr.f32.mxu0 %v455
    %556 = vmatmul.mubr.f32.gmra.mrb[0].mxu0 %v433
    %v557 = vpop.f32.mrb[0].mxu0
    %v558 = vadd.f32 0.0, %v557
    %v559 = vpop.f32.mrb[0].mxu0
    %560 = vdwg.mxu0
    %v561 = vld [vmem:[%s4] sm:$0xff]
    %v562 = vld [vmem:[%s4 + $0x8] sm:$0xff]
    %v563 = vld [vmem:[%s4 + $0x10] sm:$0xff]
    %v564 = vld [vmem:[%s4 + $0x18] sm:$0xff]
    %v565 = vld [vmem:[%s4 + $0x20] sm:$0xff]
    %v566 = vld [vmem:[%s4 + $0x28] sm:$0xff]
    %v567 = vld [vmem:[%s4 + $0x30] sm:$0xff]
    %v568 = vld [vmem:[%s4 + $0x38] sm:$0xff]
    %v569 = vld [vmem:[%s4 + $0x40] sm:$0xff]
    %v570 = vld [vmem:[%s4 + $0x48] sm:$0xff]
    %v571 = vld [vmem:[%s4 + $0x50] sm:$0xff]
    %v572 = vld [vmem:[%s4 + $0x58] sm:$0xff]
    %v573 = vld [vmem:[%s4 + $0x60] sm:$0x1]
    %v574 = vld [vmem:[%s4 + $0x68] sm:$0x1]
    %v576 = vsel %vm435, %v562, 0
    %v579 = vsel %vm435, %v564, 0
    %v582 = vsel %vm435, %v566, 0
    %v585 = vsel %vm435, %v568, 0
    %v588 = vsel %vm435, %v570, 0
    %v591 = vsel %vm435, %v572, 0
    %v594 = vsel %vm435, %v574, 0
    %596 = vmatprep.subr.mxu0 0.0
    %597 = vmatpush1.msra.mxu0 %v395
    %598 = vmatprep.subr.mxu0 0.0
    %599 = vmatpush1.msra.mxu0 %v396
    %600 = vmatprep.subr.mxu0 0.0
    %601 = vmatpush1.msra.mxu0 %v397
    %602 = vmatprep.subr.mxu0 0.0
    %603 = vmatpush1.msra.mxu0 %v398
    %604 = vmatprep.subr.mxu0 0.0
    %605 = vmatpush1.msra.mxu0 %v399
    %606 = vmatprep.subr.mxu0 0.0
    %607 = vmatpush1.msra.mxu0 %v400
    %608 = vmatprep.subr.mxu0 0.0
    %609 = vmatpush1.msra.mxu0 %v401
    %610 = vmatprep.subr.mxu0 0.0
    %611 = vmatpush1.msra.mxu0 %v402
    %612 = vmatprep.subr.mxu0 0.0
    %613 = vmatpush1.msra.mxu0 %v403
    %614 = vmatprep.subr.mxu0 0.0
    %615 = vmatpush1.msra.mxu0 %v404
    %616 = vmatprep.subr.mxu0 0.0
    %617 = vmatpush1.msra.mxu0 %v405
    %618 = vmatprep.subr.mxu0 0.0
    %619 = vmatpush1.msra.mxu0 %v406
    %620 = vmatprep.subr.mxu0 0.0
    %621 = vmatpush1.msra.mxu0 %v407
    %622 = vmatprep.subr.mxu0 0.0
    %623 = vmatpush1.msra.mxu0 %v408
    %624 = vmatprep.subr.mxu0 0.0
    %625 = vmatpush1.msra.mxu0 %v409
    %626 = vmatprep.subr.mxu0 0.0
    %627 = vmatpush1.msra.mxu0 %v410
    %628 = vmatprep.subr.mxu0 0.0
    %629 = vmatpush1.msra.mxu0 %v411
    %630 = vmatprep.subr.mxu0 0.0
    %631 = vmatpush1.msra.mxu0 %v412
    %632 = vmatprep.subr.mxu0 0.0
    %633 = vmatpush1.msra.mxu0 %v413
    %634 = vmatprep.subr.mxu0 0.0
    %635 = vmatpush1.msra.mxu0 %v414
    %636 = vmatprep.subr.mxu0 0.0
    %637 = vmatpush1.msra.mxu0 %v415
    %638 = vmatprep.subr.mxu0 0.0
    %639 = vmatpush1.msra.mxu0 %v416
    %640 = vmatprep.subr.mxu0 0.0
    %641 = vmatpush1.msra.mxu0 %v417
    %642 = vmatprep.subr.mxu0 0.0
    %643 = vmatpush1.msra.mxu0 %v418
    %644 = vmatprep.subr.mxu0 0.0
    %645 = vmatpush1.msra.mxu0 %v419
    %646 = vmatprep.subr.mxu0 0.0
    %647 = vmatpush1.msra.mxu0 %v459
    %648 = vmatprep.subr.mxu0 0.0
    %649 = vmatpush1.msra.mxu0 0.0
    %650 = vmatprep.subr.mxu0 0.0
    %651 = vmatpush1.msra.mxu0 0.0
    %652 = vmatprep.subr.mxu0 0.0
    %653 = vmatpush1.msra.mxu0 0.0
    %654 = vmatprep.subr.mxu0 0.0
    %655 = vmatpush1.msra.mxu0 0.0
    %656 = vmatprep.subr.mxu0 0.0
    %657 = vmatpush1.msra.mxu0 0.0
    %658 = vmatprep.subr.mxu0 0.0
    %659 = vmatpush1.msra.mxu0 0.0
    %660 = vmatprep.mubr.f32.mxu0 %v576
    %661 = vmatmul.mubr.f32.gmra.mrb[0].mxu0 %v561
    %v662 = vpop.f32.mrb[0].mxu0
    %v663 = vadd.f32 0.0, %v662
    %v664 = vpop.f32.mrb[0].mxu0
    %665 = vmatprep.mubr.f32.mxu0 %v579
    %666 = vmatmul.mubr.f32.gmra.mrb[0].mxu0 %v563
    %v667 = vpop.f32.mrb[0].mxu0
    %v668 = vadd.f32 0.0, %v667
    %v669 = vpop.f32.mrb[0].mxu0
    %670 = vmatprep.mubr.f32.mxu0 %v582
    %671 = vmatmul.mubr.f32.gmra.mrb[0].mxu0 %v565
    %v672 = vpop.f32.mrb[0].mxu0
    %v673 = vadd.f32 0.0, %v672
    %v674 = vpop.f32.mrb[0].mxu0
    %675 = vmatprep.mubr.f32.mxu0 %v585
    %676 = vmatmul.mubr.f32.gmra.mrb[0].mxu0 %v567
    %v677 = vpop.f32.mrb[0].mxu0
    %v678 = vadd.f32 0.0, %v677
    %v679 = vpop.f32.mrb[0].mxu0
    %680 = vmatprep.mubr.f32.mxu0 %v588
    %681 = vmatmul.mubr.f32.gmra.mrb[0].mxu0 %v569
    %v682 = vpop.f32.mrb[0].mxu0
    %v683 = vadd.f32 0.0, %v682
    %v684 = vpop.f32.mrb[0].mxu0
    %685 = vmatprep.mubr.f32.mxu0 %v591
    %686 = vmatmul.mubr.f32.gmra.mrb[0].mxu0 %v571
    %v687 = vpop.f32.mrb[0].mxu0
    %v688 = vadd.f32 0.0, %v687
    %v689 = vpop.f32.mrb[0].mxu0
    %690 = vmatprep.mubr.f32.mxu0 %v594
    %691 = vmatmul.mubr.f32.gmra.mrb[0].mxu0 %v573
    %v692 = vpop.f32.mrb[0].mxu0
    %v693 = vadd.f32 0.0, %v692
    %v694 = vpop.f32.mrb[0].mxu0
    %695 = vdwg.mxu0
    %v696 = vmax.f32 %v528, %v663
    %v697 = vmax.f32 %v533, %v668
    %v698 = vmax.f32 %v538, %v673
    %v699 = vmax.f32 %v543, %v678
    %v700 = vmax.f32 %v548, %v683
    %v701 = vmax.f32 %v553, %v688
    %v702 = vmax.f32 %v558, %v693
    %vm708 = vcmask 1046528
    %v709 = vrot.slane %v696, 1
    %v710 = vrot.slane %v697, 1
    %v711 = vsel %vm708, %v709, %v710
    %v712 = vrot.slane %v698, 1
    %v713 = vsel %vm708, %v710, %v712
    %v714 = vrot.slane %v699, 1
    %v715 = vsel %vm708, %v712, %v714
    %v716 = vrot.slane %v700, 1
    %v717 = vsel %vm708, %v714, %v716
    %v723 = vld [vmem:[%s5] sm:$0xff]
    %v724 = vld [vmem:[%s5 + $0x8] sm:$0xff]
    %v725 = vld [vmem:[%s5 + $0x10] sm:$0xff]
    %v726 = vld [vmem:[%s5 + $0x18] sm:$0xff]
    %v727 = vld [vmem:[%s5 + $0x20] sm:$0xff]
    %v728 = vld [vmem:[%s5 + $0x28] sm:$0xff]
    %v729 = vld [vmem:[%s5 + $0x30] sm:$0xff]
    %v730 = vld [vmem:[%s5 + $0x38] sm:$0xff]
    %v731 = vld [vmem:[%s5 + $0x40] sm:$0xff]
    %v732 = vld [vmem:[%s5 + $0x48] sm:$0xff]
    %v733 = vld [vmem:[%s5 + $0x50] sm:$0xff]
    %v734 = vld [vmem:[%s5 + $0x58] sm:$0xff]
    %v735 = vld [vmem:[%s5 + $0x60] sm:$0xff]
    %v736 = vld [vmem:[%s5 + $0x68] sm:$0xff]
    %v737 = vld [vmem:[%s5 + $0x70] sm:$0xff]
    %v738 = vld [vmem:[%s5 + $0x78] sm:$0xff]
    %v739 = vld [vmem:[%s5 + $0x80] sm:$0xff]
    %v740 = vld [vmem:[%s5 + $0x88] sm:$0xff]
    %v741 = vld [vmem:[%s5 + $0x90] sm:$0xff]
    %v742 = vld [vmem:[%s5 + $0x98] sm:$0xff]
    %v743 = vld [vmem:[%s5 + $0xa0] sm:$0xff]
    %v744 = vld [vmem:[%s5 + $0xa8] sm:$0xff]
    %v745 = vld [vmem:[%s5 + $0xb0] sm:$0xff]
    %v746 = vld [vmem:[%s5 + $0xb8] sm:$0xff]
    %v747 = vld [vmem:[%s5 + $0xc0] sm:$0xff]
    %v748 = vld [vmem:[%s5 + $0xc8] sm:$0xff]
    %v749 = vld [vmem:[%s5 + $0xd0] sm:$0xff]
    %v750 = vld [vmem:[%s5 + $0xd8] sm:$0xff]
    %v751 = vld [vmem:[%s5 + $0xe0] sm:$0xff]
    %v752 = vld [vmem:[%s5 + $0xe8] sm:$0xff]
    %v753 = vld [vmem:[%s5 + $0xf0] sm:$0xff]
    %v754 = vld [vmem:[%s5 + $0xf8] sm:$0xff]
    %vm755 = vcmask 1042432
    %v756 = vrot.slane %v696, 5
    %v757 = vrot.slane %v697, 5
    %v758 = vsel %vm755, %v756, %v757
    %v759 = vrot.slane %v698, 5
    %v760 = vsel %vm755, %v757, %v759
    %v761 = vrot.slane %v699, 5
    %v762 = vsel %vm755, %v759, %v761
    %v763 = vrot.slane %v700, 5
    %v764 = vsel %vm755, %v761, %v763
    %v765 = vld [vmem:[%s5 + $0x100] sm:$0xff]
    %v766 = vld [vmem:[%s5 + $0x108] sm:$0xff]
    %v767 = vld [vmem:[%s5 + $0x110] sm:$0xff]
    %v768 = vld [vmem:[%s5 + $0x118] sm:$0xff]
    %v769 = vld [vmem:[%s5 + $0x120] sm:$0xff]
    %v770 = vld [vmem:[%s5 + $0x128] sm:$0xff]
    %v771 = vld [vmem:[%s5 + $0x130] sm:$0xff]
    %v772 = vld [vmem:[%s5 + $0x138] sm:$0xff]
    %v773 = vld [vmem:[%s5 + $0x140] sm:$0xff]
    %v774 = vld [vmem:[%s5 + $0x148] sm:$0xff]
    %v775 = vld [vmem:[%s5 + $0x150] sm:$0xff]
    %v776 = vld [vmem:[%s5 + $0x158] sm:$0xff]
    %v777 = vld [vmem:[%s5 + $0x160] sm:$0xff]
    %v778 = vld [vmem:[%s5 + $0x168] sm:$0xff]
    %v779 = vld [vmem:[%s5 + $0x170] sm:$0xff]
    %v780 = vld [vmem:[%s5 + $0x178] sm:$0xff]
    %v781 = vld [vmem:[%s5 + $0x180] sm:$0xff]
    %v782 = vld [vmem:[%s5 + $0x188] sm:$0xff]
    %v783 = vld [vmem:[%s5 + $0x190] sm:$0xff]
    %v784 = vld [vmem:[%s5 + $0x198] sm:$0xff]
    %v785 = vld [vmem:[%s5 + $0x1a0] sm:$0xff]
    %v786 = vld [vmem:[%s5 + $0x1a8] sm:$0xff]
    %v787 = vld [vmem:[%s5 + $0x1b0] sm:$0xff]
    %v788 = vld [vmem:[%s5 + $0x1b8] sm:$0xff]
    %v789 = vld [vmem:[%s5 + $0x1c0] sm:$0xff]
    %v790 = vld [vmem:[%s5 + $0x1c8] sm:$0xff]
    %v791 = vld [vmem:[%s5 + $0x1d0] sm:$0xff]
    %v792 = vld [vmem:[%s5 + $0x1d8] sm:$0xff]
    %v793 = vld [vmem:[%s5 + $0x1e0] sm:$0xff]
    %v794 = vld [vmem:[%s5 + $0x1e8] sm:$0xff]
    %v795 = vld [vmem:[%s5 + $0x1f0] sm:$0xff]
    %v796 = vld [vmem:[%s5 + $0x1f8] sm:$0xff]
    %v797 = vrot.slane %v696, 2
    %v798 = vrot.slane %v697, 2
    %v799 = vsel %vm457, %v797, %v798
    %v800 = vrot.slane %v758, 2
    %v801 = vrot.slane %v760, 2
    %v802 = vsel %vm457, %v800, %v801
    %v803 = vrot.slane %v698, 2
    %v804 = vsel %vm457, %v798, %v803
    %v805 = vrot.slane %v762, 2
    %v806 = vsel %vm457, %v801, %v805
    %v807 = vrot.slane %v699, 2
    %v808 = vsel %vm457, %v803, %v807
    %v809 = vrot.slane %v764, 2
    %v810 = vsel %vm457, %v805, %v809
    %v811 = vrot.slane %v700, 2
    %v812 = vsel %vm457, %v807, %v811
    %v813 = vrot.slane %v763, 2
    %v814 = vsel %vm457, %v809, %v813
    %825 = vmatprep.subr.mxu0 0.0
    %826 = vmatpush1.msra.mxu0 %v765
    %827 = vmatprep.subr.mxu0 0.0
    %828 = vmatpush1.msra.mxu0 %v766
    %829 = vmatprep.subr.mxu0 0.0
    %830 = vmatpush1.msra.mxu0 %v767
    %831 = vmatprep.subr.mxu0 0.0
    %832 = vmatpush1.msra.mxu0 %v768
    %833 = vmatprep.subr.mxu0 0.0
    %834 = vmatpush1.msra.mxu0 %v769
    %835 = vmatprep.subr.mxu0 0.0
    %836 = vmatpush1.msra.mxu0 %v770
    %837 = vmatprep.subr.mxu0 0.0
    %838 = vmatpush1.msra.mxu0 %v771
    %839 = vmatprep.subr.mxu0 0.0
    %840 = vmatpush1.msra.mxu0 %v772
    %841 = vmatprep.subr.mxu0 0.0
    %842 = vmatpush1.msra.mxu0 %v773
    %843 = vmatprep.subr.mxu0 0.0
    %844 = vmatpush1.msra.mxu0 %v774
    %845 = vmatprep.subr.mxu0 0.0
    %846 = vmatpush1.msra.mxu0 %v775
    %847 = vmatprep.subr.mxu0 0.0
    %848 = vmatpush1.msra.mxu0 %v776
    %849 = vmatprep.subr.mxu0 0.0
    %850 = vmatpush1.msra.mxu0 %v777
    %851 = vmatprep.subr.mxu0 0.0
    %852 = vmatpush1.msra.mxu0 %v778
    %853 = vmatprep.subr.mxu0 0.0
    %854 = vmatpush1.msra.mxu0 %v779
    %855 = vmatprep.subr.mxu0 0.0
    %856 = vmatpush1.msra.mxu0 %v780
    %857 = vmatprep.subr.mxu0 0.0
    %858 = vmatpush1.msra.mxu0 %v781
    %859 = vmatprep.subr.mxu0 0.0
    %860 = vmatpush1.msra.mxu0 %v782
    %861 = vmatprep.subr.mxu0 0.0
    %862 = vmatpush1.msra.mxu0 %v783
    %863 = vmatprep.subr.mxu0 0.0
    %864 = vmatpush1.msra.mxu0 %v784
    %865 = vmatprep.subr.mxu0 0.0
    %866 = vmatpush1.msra.mxu0 %v785
    %867 = vmatprep.subr.mxu0 0.0
    %868 = vmatpush1.msra.mxu0 %v786
    %869 = vmatprep.subr.mxu0 0.0
    %870 = vmatpush1.msra.mxu0 %v787
    %871 = vmatprep.subr.mxu0 0.0
    %872 = vmatpush1.msra.mxu0 %v788
    %873 = vmatprep.subr.mxu0 0.0
    %874 = vmatpush1.msra.mxu0 %v789
    %875 = vmatprep.subr.mxu0 0.0
    %876 = vmatpush1.msra.mxu0 %v790
    %877 = vmatprep.subr.mxu0 0.0
    %878 = vmatpush1.msra.mxu0 %v791
    %879 = vmatprep.subr.mxu0 0.0
    %880 = vmatpush1.msra.mxu0 %v792
    %881 = vmatprep.subr.mxu0 0.0
    %882 = vmatpush1.msra.mxu0 %v793
    %883 = vmatprep.subr.mxu0 0.0
    %884 = vmatpush1.msra.mxu0 %v794
    %885 = vmatprep.subr.mxu0 0.0
    %886 = vmatpush1.msra.mxu0 %v795
    %887 = vmatprep.subr.mxu0 0.0
    %888 = vmatpush1.msra.mxu0 %v796
    %889 = vmatprep.mubr.f32.mxu0 %v802
    %890 = vmatmul.mubr.f32.gmra.mrb[0].mxu0 %v799
    %v891 = vpop.f32.mrb[0].mxu0
    %v892 = vadd.f32 0.0, %v891
    %v893 = vpop.f32.mrb[0].mxu0
    %894 = vmatprep.mubr.f32.mxu0 %v806
    %895 = vmatmul.mubr.f32.gmra.mrb[0].mxu0 %v804
    %v896 = vpop.f32.mrb[0].mxu0
    %v897 = vadd.f32 0.0, %v896
    %v898 = vpop.f32.mrb[0].mxu0
    %899 = vmatprep.mubr.f32.mxu0 %v810
    %900 = vmatmul.mubr.f32.gmra.mrb[0].mxu0 %v808
    %v901 = vpop.f32.mrb[0].mxu0
    %v902 = vadd.f32 0.0, %v901
    %v903 = vpop.f32.mrb[0].mxu0
    %904 = vmatprep.mubr.f32.mxu0 %v814
    %905 = vmatmul.mubr.f32.gmra.mrb[0].mxu0 %v812
    %v906 = vpop.f32.mrb[0].mxu0
    %v907 = vadd.f32 0.0, %v906
    %v908 = vpop.f32.mrb[0].mxu0
    %909 = vmatprep.mubr.f32.mxu0 %v813
    %910 = vmatmul.mubr.f32.gmra.mrb[0].mxu0 %v811
    %v911 = vpop.f32.mrb[0].mxu0
    %v912 = vpop.f32.mrb[0].mxu0
    %913 = vdwg.mxu0
    %914 = vmatprep.subr.mxu0 0.0
    %915 = vmatpush1.msra.mxu0 %v723
    %916 = vmatprep.subr.mxu0 0.0
    %917 = vmatpush1.msra.mxu0 %v724
    %918 = vmatprep.subr.mxu0 0.0
    %919 = vmatpush1.msra.mxu0 %v725
    %920 = vmatprep.subr.mxu0 0.0
    %921 = vmatpush1.msra.mxu0 %v726
    %922 = vmatprep.subr.mxu0 0.0
    %923 = vmatpush1.msra.mxu0 %v727
    %924 = vmatprep.subr.mxu0 0.0
    %925 = vmatpush1.msra.mxu0 %v728
    %926 = vmatprep.subr.mxu0 0.0
    %927 = vmatpush1.msra.mxu0 %v729
    %928 = vmatprep.subr.mxu0 0.0
    %929 = vmatpush1.msra.mxu0 %v730
    %930 = vmatprep.subr.mxu0 0.0
    %931 = vmatpush1.msra.mxu0 %v731
    %932 = vmatprep.subr.mxu0 0.0
    %933 = vmatpush1.msra.mxu0 %v732
    %934 = vmatprep.subr.mxu0 0.0
    %935 = vmatpush1.msra.mxu0 %v733
    %936 = vmatprep.subr.mxu0 0.0
    %937 = vmatpush1.msra.mxu0 %v734
    %938 = vmatprep.subr.mxu0 0.0
    %939 = vmatpush1.msra.mxu0 %v735
    %940 = vmatprep.subr.mxu0 0.0
    %941 = vmatpush1.msra.mxu0 %v736
    %942 = vmatprep.subr.mxu0 0.0
    %943 = vmatpush1.msra.mxu0 %v737
    %944 = vmatprep.subr.mxu0 0.0
    %945 = vmatpush1.msra.mxu0 %v738
    %946 = vmatprep.subr.mxu0 0.0
    %947 = vmatpush1.msra.mxu0 %v739
    %948 = vmatprep.subr.mxu0 0.0
    %949 = vmatpush1.msra.mxu0 %v740
    %950 = vmatprep.subr.mxu0 0.0
    %951 = vmatpush1.msra.mxu0 %v741
    %952 = vmatprep.subr.mxu0 0.0
    %953 = vmatpush1.msra.mxu0 %v742
    %954 = vmatprep.subr.mxu0 0.0
    %955 = vmatpush1.msra.mxu0 %v743
    %956 = vmatprep.subr.mxu0 0.0
    %957 = vmatpush1.msra.mxu0 %v744
    %958 = vmatprep.subr.mxu0 0.0
    %959 = vmatpush1.msra.mxu0 %v745
    %960 = vmatprep.subr.mxu0 0.0
    %961 = vmatpush1.msra.mxu0 %v746
    %962 = vmatprep.subr.mxu0 0.0
    %963 = vmatpush1.msra.mxu0 %v747
    %964 = vmatprep.subr.mxu0 0.0
    %965 = vmatpush1.msra.mxu0 %v748
    %966 = vmatprep.subr.mxu0 0.0
    %967 = vmatpush1.msra.mxu0 %v749
    %968 = vmatprep.subr.mxu0 0.0
    %969 = vmatpush1.msra.mxu0 %v750
    %970 = vmatprep.subr.mxu0 0.0
    %971 = vmatpush1.msra.mxu0 %v751
    %972 = vmatprep.subr.mxu0 0.0
    %973 = vmatpush1.msra.mxu0 %v752
    %974 = vmatprep.subr.mxu0 0.0
    %975 = vmatpush1.msra.mxu0 %v753
    %976 = vmatprep.subr.mxu0 0.0
    %977 = vmatpush1.msra.mxu0 %v754
    %978 = vmatprep.mubr.f32.mxu0 %v711
    %979 = vmatmul.mubr.f32.gmra.mrb[0].mxu0 %v696
    %v980 = vpop.f32.mrb[0].mxu0
    %v981 = vadd.f32 %v892, %v980
    %v982 = vpop.f32.mrb[0].mxu0
    %983 = vmatprep.mubr.f32.mxu0 %v713
    %984 = vmatmul.mubr.f32.gmra.mrb[0].mxu0 %v697
    %v985 = vpop.f32.mrb[0].mxu0
    %v986 = vadd.f32 %v897, %v985
    %v987 = vpop.f32.mrb[0].mxu0
    %988 = vmatprep.mubr.f32.mxu0 %v715
    %989 = vmatmul.mubr.f32.gmra.mrb[0].mxu0 %v698
    %v990 = vpop.f32.mrb[0].mxu0
    %v991 = vadd.f32 %v902, %v990
    %v992 = vpop.f32.mrb[0].mxu0
    %993 = vmatprep.mubr.f32.mxu0 %v717
    %994 = vmatmul.mubr.f32.gmra.mrb[0].mxu0 %v699
    %v995 = vpop.f32.mrb[0].mxu0
    %v996 = vadd.f32 %v907, %v995
    %v997 = vpop.f32.mrb[0].mxu0
    %998 = vmatprep.mubr.f32.mxu0 %v716
    %999 = vmatmul.mubr.f32.gmra.mrb[0].mxu0 %v700
    %v1000 = vpop.f32.mrb[0].mxu0
    %v1001 = vpop.f32.mrb[0].mxu0
    %1002 = vdwg.mxu0
    %v1004 = vrot.slane %v701, 1
    %v1005 = vsel %vm708, %v716, %v1004
    %v1008 = vld [vmem:[%s5 + $0x200] sm:$0xff]
    %v1009 = vld [vmem:[%s5 + $0x208] sm:$0xff]
    %v1010 = vld [vmem:[%s5 + $0x210] sm:$0xff]
    %v1011 = vld [vmem:[%s5 + $0x218] sm:$0xff]
    %v1012 = vld [vmem:[%s5 + $0x220] sm:$0xff]
    %v1013 = vld [vmem:[%s5 + $0x228] sm:$0xff]
    %v1014 = vld [vmem:[%s5 + $0x230] sm:$0xff]
    %v1015 = vld [vmem:[%s5 + $0x238] sm:$0xff]
    %v1016 = vld [vmem:[%s5 + $0x240] sm:$0xff]
    %v1017 = vld [vmem:[%s5 + $0x248] sm:$0xff]
    %v1018 = vld [vmem:[%s5 + $0x250] sm:$0xff]
    %v1019 = vld [vmem:[%s5 + $0x258] sm:$0xff]
    %v1020 = vld [vmem:[%s5 + $0x260] sm:$0xff]
    %v1021 = vld [vmem:[%s5 + $0x268] sm:$0xff]
    %v1022 = vld [vmem:[%s5 + $0x270] sm:$0xff]
    %v1023 = vld [vmem:[%s5 + $0x278] sm:$0xff]
    %v1024 = vld [vmem:[%s5 + $0x280] sm:$0xff]
    %v1025 = vld [vmem:[%s5 + $0x288] sm:$0xff]
    %v1026 = vld [vmem:[%s5 + $0x290] sm:$0xff]
    %v1027 = vld [vmem:[%s5 + $0x298] sm:$0xff]
    %v1028 = vld [vmem:[%s5 + $0x2a0] sm:$0xff]
    %v1029 = vld [vmem:[%s5 + $0x2a8] sm:$0xff]
    %v1030 = vld [vmem:[%s5 + $0x2b0] sm:$0xff]
    %v1031 = vld [vmem:[%s5 + $0x2b8] sm:$0xff]
    %v1032 = vld [vmem:[%s5 + $0x2c0] sm:$0xff]
    %v1033 = vld [vmem:[%s5 + $0x2c8] sm:$0xff]
    %v1034 = vld [vmem:[%s5 + $0x2d0] sm:$0xff]
    %v1035 = vld [vmem:[%s5 + $0x2d8] sm:$0xff]
    %v1036 = vld [vmem:[%s5 + $0x2e0] sm:$0xff]
    %v1037 = vld [vmem:[%s5 + $0x2e8] sm:$0xff]
    %v1038 = vld [vmem:[%s5 + $0x2f0] sm:$0xff]
    %v1039 = vld [vmem:[%s5 + $0x2f8] sm:$0xff]
    %1040 = vmatprep.subr.mxu0 0.0
    %1041 = vmatpush1.msra.mxu0 %v1008
    %1042 = vmatprep.subr.mxu0 0.0
    %1043 = vmatpush1.msra.mxu0 %v1009
    %1044 = vmatprep.subr.mxu0 0.0
    %1045 = vmatpush1.msra.mxu0 %v1010
    %1046 = vmatprep.subr.mxu0 0.0
    %1047 = vmatpush1.msra.mxu0 %v1011
    %1048 = vmatprep.subr.mxu0 0.0
    %1049 = vmatpush1.msra.mxu0 %v1012
    %1050 = vmatprep.subr.mxu0 0.0
    %1051 = vmatpush1.msra.mxu0 %v1013
    %1052 = vmatprep.subr.mxu0 0.0
    %1053 = vmatpush1.msra.mxu0 %v1014
    %1054 = vmatprep.subr.mxu0 0.0
    %1055 = vmatpush1.msra.mxu0 %v1015
    %1056 = vmatprep.subr.mxu0 0.0
    %1057 = vmatpush1.msra.mxu0 %v1016
    %1058 = vmatprep.subr.mxu0 0.0
    %1059 = vmatpush1.msra.mxu0 %v1017
    %1060 = vmatprep.subr.mxu0 0.0
    %1061 = vmatpush1.msra.mxu0 %v1018
    %1062 = vmatprep.subr.mxu0 0.0
    %1063 = vmatpush1.msra.mxu0 %v1019
    %1064 = vmatprep.subr.mxu0 0.0
    %1065 = vmatpush1.msra.mxu0 %v1020
    %1066 = vmatprep.subr.mxu0 0.0
    %1067 = vmatpush1.msra.mxu0 %v1021
    %1068 = vmatprep.subr.mxu0 0.0
    %1069 = vmatpush1.msra.mxu0 %v1022
    %1070 = vmatprep.subr.mxu0 0.0
    %1071 = vmatpush1.msra.mxu0 %v1023
    %1072 = vmatprep.subr.mxu0 0.0
    %1073 = vmatpush1.msra.mxu0 %v1024
    %1074 = vmatprep.subr.mxu0 0.0
    %1075 = vmatpush1.msra.mxu0 %v1025
    %1076 = vmatprep.subr.mxu0 0.0
    %1077 = vmatpush1.msra.mxu0 %v1026
    %1078 = vmatprep.subr.mxu0 0.0
    %1079 = vmatpush1.msra.mxu0 %v1027
    %1080 = vmatprep.subr.mxu0 0.0
    %1081 = vmatpush1.msra.mxu0 %v1028
    %1082 = vmatprep.subr.mxu0 0.0
    %1083 = vmatpush1.msra.mxu0 %v1029
    %1084 = vmatprep.subr.mxu0 0.0
    %1085 = vmatpush1.msra.mxu0 %v1030
    %1086 = vmatprep.subr.mxu0 0.0
    %1087 = vmatpush1.msra.mxu0 %v1031
    %1088 = vmatprep.subr.mxu0 0.0
    %1089 = vmatpush1.msra.mxu0 %v1032
    %1090 = vmatprep.subr.mxu0 0.0
    %1091 = vmatpush1.msra.mxu0 %v1033
    %1092 = vmatprep.subr.mxu0 0.0
    %1093 = vmatpush1.msra.mxu0 %v1034
    %1094 = vmatprep.subr.mxu0 0.0
    %1095 = vmatpush1.msra.mxu0 %v1035
    %1096 = vmatprep.subr.mxu0 0.0
    %1097 = vmatpush1.msra.mxu0 %v1036
    %1098 = vmatprep.subr.mxu0 0.0
    %1099 = vmatpush1.msra.mxu0 %v1037
    %1100 = vmatprep.subr.mxu0 0.0
    %1101 = vmatpush1.msra.mxu0 %v1038
    %1102 = vmatprep.subr.mxu0 0.0
    %1103 = vmatpush1.msra.mxu0 %v1039
    %1104 = vmatprep.mubr.f32.mxu0 %v713
    %1105 = vmatmul.mubr.f32.gmra.mrb[0].mxu0 %v697
    %v1106 = vpop.f32.mrb[0].mxu0
    %v1107 = vadd.f32 0.0, %v1106
    %v1108 = vpop.f32.mrb[0].mxu0
    %1109 = vmatprep.mubr.f32.mxu0 %v715
    %1110 = vmatmul.mubr.f32.gmra.mrb[0].mxu0 %v698
    %v1111 = vpop.f32.mrb[0].mxu0
    %v1112 = vadd.f32 0.0, %v1111
    %v1113 = vpop.f32.mrb[0].mxu0
    %1114 = vmatprep.mubr.f32.mxu0 %v717
    %1115 = vmatmul.mubr.f32.gmra.mrb[0].mxu0 %v699
    %v1116 = vpop.f32.mrb[0].mxu0
    %v1117 = vadd.f32 0.0, %v1116
    %v1118 = vpop.f32.mrb[0].mxu0
    %1119 = vmatprep.mubr.f32.mxu0 %v1005
    %1120 = vmatmul.mubr.f32.gmra.mrb[0].mxu0 %v700
    %v1121 = vpop.f32.mrb[0].mxu0
    %v1122 = vadd.f32 0.0, %v1121
    %v1123 = vpop.f32.mrb[0].mxu0
    %1124 = vmatprep.mubr.f32.mxu0 %v1004
    %1125 = vmatmul.mubr.f32.gmra.mrb[0].mxu0 %v701
    %v1126 = vpop.f32.mrb[0].mxu0
    %v1127 = vpop.f32.mrb[0].mxu0
    %1128 = vdwg.mxu0
    %v1129 = vadd.f32 %v981, %v1107
    %v1130 = vadd.f32 %v986, %v1112
    %v1131 = vadd.f32 %v991, %v1117
    %v1132 = vadd.f32 %v996, %v1122
    %v1133 = vld [vmem:[%s5 + $0x300] sm:$0xff]
    %v1134 = vld [vmem:[%s5 + $0x308] sm:$0xff]
    %v1135 = vld [vmem:[%s5 + $0x310] sm:$0xff]
    %v1136 = vld [vmem:[%s5 + $0x318] sm:$0xff]
    %v1137 = vld [vmem:[%s5 + $0x320] sm:$0xff]
    %v1138 = vld [vmem:[%s5 + $0x328] sm:$0xff]
    %v1139 = vld [vmem:[%s5 + $0x330] sm:$0xff]
    %v1140 = vld [vmem:[%s5 + $0x338] sm:$0xff]
    %v1141 = vld [vmem:[%s5 + $0x340] sm:$0xff]
    %v1142 = vld [vmem:[%s5 + $0x348] sm:$0xff]
    %v1143 = vld [vmem:[%s5 + $0x350] sm:$0xff]
    %v1144 = vld [vmem:[%s5 + $0x358] sm:$0xff]
    %v1145 = vld [vmem:[%s5 + $0x360] sm:$0xff]
    %v1146 = vld [vmem:[%s5 + $0x368] sm:$0xff]
    %v1147 = vld [vmem:[%s5 + $0x370] sm:$0xff]
    %v1148 = vld [vmem:[%s5 + $0x378] sm:$0xff]
    %v1149 = vld [vmem:[%s5 + $0x380] sm:$0xff]
    %v1150 = vld [vmem:[%s5 + $0x388] sm:$0xff]
    %v1151 = vld [vmem:[%s5 + $0x390] sm:$0xff]
    %v1152 = vld [vmem:[%s5 + $0x398] sm:$0xff]
    %v1153 = vld [vmem:[%s5 + $0x3a0] sm:$0xff]
    %v1154 = vld [vmem:[%s5 + $0x3a8] sm:$0xff]
    %v1155 = vld [vmem:[%s5 + $0x3b0] sm:$0xff]
    %v1156 = vld [vmem:[%s5 + $0x3b8] sm:$0xff]
    %v1157 = vld [vmem:[%s5 + $0x3c0] sm:$0xff]
    %v1158 = vld [vmem:[%s5 + $0x3c8] sm:$0xff]
    %v1159 = vld [vmem:[%s5 + $0x3d0] sm:$0xff]
    %v1160 = vld [vmem:[%s5 + $0x3d8] sm:$0xff]
    %v1161 = vld [vmem:[%s5 + $0x3e0] sm:$0xff]
    %v1162 = vld [vmem:[%s5 + $0x3e8] sm:$0xff]
    %v1163 = vld [vmem:[%s5 + $0x3f0] sm:$0xff]
    %v1164 = vld [vmem:[%s5 + $0x3f8] sm:$0xff]
    %vm1165 = vcmask 1041408
    %v1166 = vrot.slane %v697, 6
    %v1167 = vrot.slane %v698, 6
    %v1168 = vsel %vm1165, %v1166, %v1167
    %v1169 = vrot.slane %v713, 6
    %v1170 = vrot.slane %v715, 6
    %v1171 = vsel %vm1165, %v1169, %v1170
    %v1172 = vrot.slane %v699, 6
    %v1173 = vsel %vm1165, %v1167, %v1172
    %v1174 = vrot.slane %v717, 6
    %v1175 = vsel %vm1165, %v1170, %v1174
    %v1176 = vrot.slane %v700, 6
    %v1177 = vsel %vm1165, %v1172, %v1176
    %v1178 = vrot.slane %v1005, 6
    %v1179 = vsel %vm1165, %v1174, %v1178
    %v1180 = vrot.slane %v701, 6
    %v1181 = vsel %vm1165, %v1176, %v1180
    %v1182 = vrot.slane %v1004, 6
    %v1183 = vsel %vm1165, %v1178, %v1182
    %1194 = vmatprep.subr.mxu0 0.0
    %1195 = vmatpush1.msra.mxu0 %v1133
    %1196 = vmatprep.subr.mxu0 0.0
    %1197 = vmatpush1.msra.mxu0 %v1134
    %1198 = vmatprep.subr.mxu0 0.0
    %1199 = vmatpush1.msra.mxu0 %v1135
    %1200 = vmatprep.subr.mxu0 0.0
    %1201 = vmatpush1.msra.mxu0 %v1136
    %1202 = vmatprep.subr.mxu0 0.0
    %1203 = vmatpush1.msra.mxu0 %v1137
    %1204 = vmatprep.subr.mxu0 0.0
    %1205 = vmatpush1.msra.mxu0 %v1138
    %1206 = vmatprep.subr.mxu0 0.0
    %1207 = vmatpush1.msra.mxu0 %v1139
    %1208 = vmatprep.subr.mxu0 0.0
    %1209 = vmatpush1.msra.mxu0 %v1140
    %1210 = vmatprep.subr.mxu0 0.0
    %1211 = vmatpush1.msra.mxu0 %v1141
    %1212 = vmatprep.subr.mxu0 0.0
    %1213 = vmatpush1.msra.mxu0 %v1142
    %1214 = vmatprep.subr.mxu0 0.0
    %1215 = vmatpush1.msra.mxu0 %v1143
    %1216 = vmatprep.subr.mxu0 0.0
    %1217 = vmatpush1.msra.mxu0 %v1144
    %1218 = vmatprep.subr.mxu0 0.0
    %1219 = vmatpush1.msra.mxu0 %v1145
    %1220 = vmatprep.subr.mxu0 0.0
    %1221 = vmatpush1.msra.mxu0 %v1146
    %1222 = vmatprep.subr.mxu0 0.0
    %1223 = vmatpush1.msra.mxu0 %v1147
    %1224 = vmatprep.subr.mxu0 0.0
    %1225 = vmatpush1.msra.mxu0 %v1148
    %1226 = vmatprep.subr.mxu0 0.0
    %1227 = vmatpush1.msra.mxu0 %v1149
    %1228 = vmatprep.subr.mxu0 0.0
    %1229 = vmatpush1.msra.mxu0 %v1150
    %1230 = vmatprep.subr.mxu0 0.0
    %1231 = vmatpush1.msra.mxu0 %v1151
    %1232 = vmatprep.subr.mxu0 0.0
    %1233 = vmatpush1.msra.mxu0 %v1152
    %1234 = vmatprep.subr.mxu0 0.0
    %1235 = vmatpush1.msra.mxu0 %v1153
    %1236 = vmatprep.subr.mxu0 0.0
    %1237 = vmatpush1.msra.mxu0 %v1154
    %1238 = vmatprep.subr.mxu0 0.0
    %1239 = vmatpush1.msra.mxu0 %v1155
    %1240 = vmatprep.subr.mxu0 0.0
    %1241 = vmatpush1.msra.mxu0 %v1156
    %1242 = vmatprep.subr.mxu0 0.0
    %1243 = vmatpush1.msra.mxu0 %v1157
    %1244 = vmatprep.subr.mxu0 0.0
    %1245 = vmatpush1.msra.mxu0 %v1158
    %1246 = vmatprep.subr.mxu0 0.0
    %1247 = vmatpush1.msra.mxu0 %v1159
    %1248 = vmatprep.subr.mxu0 0.0
    %1249 = vmatpush1.msra.mxu0 %v1160
    %1250 = vmatprep.subr.mxu0 0.0
    %1251 = vmatpush1.msra.mxu0 %v1161
    %1252 = vmatprep.subr.mxu0 0.0
    %1253 = vmatpush1.msra.mxu0 %v1162
    %1254 = vmatprep.subr.mxu0 0.0
    %1255 = vmatpush1.msra.mxu0 %v1163
    %1256 = vmatprep.subr.mxu0 0.0
    %1257 = vmatpush1.msra.mxu0 %v1164
    %1258 = vmatprep.mubr.f32.mxu0 %v1171
    %1259 = vmatmul.mubr.f32.gmra.mrb[0].mxu0 %v1168
    %v1260 = vpop.f32.mrb[0].mxu0
    %v1261 = vadd.f32 0.0, %v1260
    %v1262 = vpop.f32.mrb[0].mxu0
    %1263 = vmatprep.mubr.f32.mxu0 %v1175
    %1264 = vmatmul.mubr.f32.gmra.mrb[0].mxu0 %v1173
    %v1265 = vpop.f32.mrb[0].mxu0
    %v1266 = vadd.f32 0.0, %v1265
    %v1267 = vpop.f32.mrb[0].mxu0
    %1268 = vmatprep.mubr.f32.mxu0 %v1179
    %1269 = vmatmul.mubr.f32.gmra.mrb[0].mxu0 %v1177
    %v1270 = vpop.f32.mrb[0].mxu0
    %v1271 = vadd.f32 0.0, %v1270
    %v1272 = vpop.f32.mrb[0].mxu0
    %1273 = vmatprep.mubr.f32.mxu0 %v1183
    %1274 = vmatmul.mubr.f32.gmra.mrb[0].mxu0 %v1181
    %v1275 = vpop.f32.mrb[0].mxu0
    %v1276 = vadd.f32 0.0, %v1275
    %v1277 = vpop.f32.mrb[0].mxu0
    %1278 = vmatprep.mubr.f32.mxu0 %v1182
    %1279 = vmatmul.mubr.f32.gmra.mrb[0].mxu0 %v1180
    %v1280 = vpop.f32.mrb[0].mxu0
    %v1281 = vpop.f32.mrb[0].mxu0
    %1282 = vdwg.mxu0
    %v1283 = vadd.f32 %v1129, %v1261
    %v1284 = vadd.f32 %v1130, %v1266
    %v1285 = vadd.f32 %v1131, %v1271
    %v1286 = vadd.f32 %v1132, %v1276
    %v1287 = vld [vmem:[%s5 + $0x400] sm:$0xff]
    %v1288 = vld [vmem:[%s5 + $0x408] sm:$0xff]
    %v1289 = vld [vmem:[%s5 + $0x410] sm:$0xff]
    %v1290 = vld [vmem:[%s5 + $0x418] sm:$0xff]
    %v1291 = vld [vmem:[%s5 + $0x420] sm:$0xff]
    %v1292 = vld [vmem:[%s5 + $0x428] sm:$0xff]
    %v1293 = vld [vmem:[%s5 + $0x430] sm:$0xff]
    %v1294 = vld [vmem:[%s5 + $0x438] sm:$0xff]
    %v1295 = vld [vmem:[%s5 + $0x440] sm:$0xff]
    %v1296 = vld [vmem:[%s5 + $0x448] sm:$0xff]
    %v1297 = vld [vmem:[%s5 + $0x450] sm:$0xff]
    %v1298 = vld [vmem:[%s5 + $0x458] sm:$0xff]
    %v1299 = vld [vmem:[%s5 + $0x460] sm:$0xff]
    %v1300 = vld [vmem:[%s5 + $0x468] sm:$0xff]
    %v1301 = vld [vmem:[%s5 + $0x470] sm:$0xff]
    %v1302 = vld [vmem:[%s5 + $0x478] sm:$0xff]
    %1303 = vmatprep.subr.mxu0 0.0
    %1304 = vmatpush1.msra.mxu0 %v1287
    %1305 = vmatprep.subr.mxu0 0.0
    %1306 = vmatpush1.msra.mxu0 %v1288
    %1307 = vmatprep.subr.mxu0 0.0
    %1308 = vmatpush1.msra.mxu0 %v1289
    %1309 = vmatprep.subr.mxu0 0.0
    %1310 = vmatpush1.msra.mxu0 %v1290
    %1311 = vmatprep.subr.mxu0 0.0
    %1312 = vmatpush1.msra.mxu0 %v1291
    %1313 = vmatprep.subr.mxu0 0.0
    %1314 = vmatpush1.msra.mxu0 %v1292
    %1315 = vmatprep.subr.mxu0 0.0
    %1316 = vmatpush1.msra.mxu0 %v1293
    %1317 = vmatprep.subr.mxu0 0.0
    %1318 = vmatpush1.msra.mxu0 %v1294
    %1319 = vmatprep.subr.mxu0 0.0
    %1320 = vmatpush1.msra.mxu0 %v1295
    %1321 = vmatprep.subr.mxu0 0.0
    %1322 = vmatpush1.msra.mxu0 %v1296
    %1323 = vmatprep.subr.mxu0 0.0
    %1324 = vmatpush1.msra.mxu0 %v1297
    %1325 = vmatprep.subr.mxu0 0.0
    %1326 = vmatpush1.msra.mxu0 %v1298
    %1327 = vmatprep.subr.mxu0 0.0
    %1328 = vmatpush1.msra.mxu0 %v1299
    %1329 = vmatprep.subr.mxu0 0.0
    %1330 = vmatpush1.msra.mxu0 %v1300
    %1331 = vmatprep.subr.mxu0 0.0
    %1332 = vmatpush1.msra.mxu0 %v1301
    %1333 = vmatprep.subr.mxu0 0.0
    %1334 = vmatpush1.msra.mxu0 %v1302
    %1335 = vmatprep.subr.mxu0 0.0
    %1336 = vmatpush1.msra.mxu0 0.0
    %1337 = vmatprep.subr.mxu0 0.0
    %1338 = vmatpush1.msra.mxu0 0.0
    %1339 = vmatprep.subr.mxu0 0.0
    %1340 = vmatpush1.msra.mxu0 0.0
    %1341 = vmatprep.subr.mxu0 0.0
    %1342 = vmatpush1.msra.mxu0 0.0
    %1343 = vmatprep.subr.mxu0 0.0
    %1344 = vmatpush1.msra.mxu0 0.0
    %1345 = vmatprep.subr.mxu0 0.0
    %1346 = vmatpush1.msra.mxu0 0.0
    %1347 = vmatprep.subr.mxu0 0.0
    %1348 = vmatpush1.msra.mxu0 0.0
    %1349 = vmatprep.subr.mxu0 0.0
    %1350 = vmatpush1.msra.mxu0 0.0
    %1351 = vmatprep.subr.mxu0 0.0
    %1352 = vmatpush1.msra.mxu0 0.0
    %1353 = vmatprep.subr.mxu0 0.0
    %1354 = vmatpush1.msra.mxu0 0.0
    %1355 = vmatprep.subr.mxu0 0.0
    %1356 = vmatpush1.msra.mxu0 0.0
    %1357 = vmatprep.subr.mxu0 0.0
    %1358 = vmatpush1.msra.mxu0 0.0
    %1359 = vmatprep.subr.mxu0 0.0
    %1360 = vmatpush1.msra.mxu0 0.0
    %1361 = vmatprep.subr.mxu0 0.0
    %1362 = vmatpush1.msra.mxu0 0.0
    %1363 = vmatprep.subr.mxu0 0.0
    %1364 = vmatpush1.msra.mxu0 0.0
    %1365 = vmatprep.subr.mxu0 0.0
    %1366 = vmatpush1.msra.mxu0 0.0
    %1367 = vmatprep.mubr.f32.mxu0 0.0
    %1368 = vmatmul.mubr.f32.gmra.mrb[0].mxu0 %v698
    %v1369 = vpop.f32.mrb[0].mxu0
    %v1370 = vadd.f32 0.0, %v1369
    %v1371 = vpop.f32.mrb[0].mxu0
    %1372 = vmatprep.mubr.f32.mxu0 0.0
    %1373 = vmatmul.mubr.f32.gmra.mrb[0].mxu0 %v699
    %v1374 = vpop.f32.mrb[0].mxu0
    %v1375 = vadd.f32 0.0, %v1374
    %v1376 = vpop.f32.mrb[0].mxu0
    %1377 = vmatprep.mubr.f32.mxu0 0.0
    %1378 = vmatmul.mubr.f32.gmra.mrb[0].mxu0 %v700
    %v1379 = vpop.f32.mrb[0].mxu0
    %v1380 = vadd.f32 0.0, %v1379
    %v1381 = vpop.f32.mrb[0].mxu0
    %1382 = vmatprep.mubr.f32.mxu0 0.0
    %1383 = vmatmul.mubr.f32.gmra.mrb[0].mxu0 %v701
    %v1384 = vpop.f32.mrb[0].mxu0
    %v1385 = vadd.f32 0.0, %v1384
    %v1386 = vpop.f32.mrb[0].mxu0
    %1387 = vmatprep.mubr.f32.mxu0 0.0
    %1388 = vmatmul.mubr.f32.gmra.mrb[0].mxu0 %v702
    %v1389 = vpop.f32.mrb[0].mxu0
    %v1390 = vpop.f32.mrb[0].mxu0
    %1391 = vdwg.mxu0
    %v1392 = vadd.f32 %v1283, %v1370
    %v1393 = vadd.f32 %v1284, %v1375
    %v1394 = vadd.f32 %v1285, %v1380
    %v1395 = vadd.f32 %v1286, %v1385
    %v1396 = vld [vmem:[%s6] sm:$0x1]
    %v1398 = vlaneseq
    %v1399 = vshrl.u32 %v1398, 7
    %v1400 = vsub.s32 0, %v1399
    %v1401 = vrot.slane %v1396, %v1400
    %v1403 = vadd.f32 %v1392, %v1401
    %v1404 = vadd.f32 %v1393, %v1401
    %v1405 = vadd.f32 %v1394, %v1401
    %v1406 = vadd.f32 %v1395, %v1401
    %v1407 = vmax.f32 %v1403, 0.0
    %v1408 = vmax.f32 %v1404, 0.0
    %v1409 = vmax.f32 %v1405, 0.0
    %v1410 = vmax.f32 %v1406, 0.0
    %vm1415 = vcmask 1040384
    %v1416 = vrot.slane %v1407, 7
    %v1417 = vrot.slane %v1408, 7
    %v1418 = vsel %vm1415, %v1416, %v1417
    %v1419 = vrot.slane %v1409, 7
    %v1420 = vsel %vm1415, %v1417, %v1419
    %v1421 = vrot.slane %v1410, 7
    %v1422 = vsel %vm1415, %v1419, %v1421
    %v1426 = vmax.f32 %v1407, %v1418
    %v1427 = vmax.f32 %v1408, %v1420
    %v1428 = vmax.f32 %v1409, %v1422
    %v1429 = vld [vmem:[%s7] sm:$0xf]
    %vm1430 = vcmask 146432
    %v1432 = vsel %vm1430, %v1429, 0
    %v1435 = vsel %vm1165, %v1428, 0
    %1437 = vmatprep.subr.mxu0 0.0
    %1438 = vmatpush1.msra.mxu0 %v1426
    %1439 = vmatprep.subr.mxu0 0.0
    %1440 = vmatpush1.msra.mxu0 %v1427
    %1441 = vmatprep.subr.mxu0 0.0
    %1442 = vmatpush1.msra.mxu0 %v1435
    %1443 = vmatprep.subr.mxu0 0.0
    %1444 = vmatpush1.msra.mxu0 0.0
    %1445 = vmatprep.subr.mxu0 0.0
    %1446 = vmatpush1.msra.mxu0 0.0
    %1447 = vmatprep.subr.mxu0 0.0
    %1448 = vmatpush1.msra.mxu0 0.0
    %1449 = vmatprep.subr.mxu0 0.0
    %1450 = vmatpush1.msra.mxu0 0.0
    %1451 = vmatprep.subr.mxu0 0.0
    %1452 = vmatpush1.msra.mxu0 0.0
    %1453 = vmatprep.subr.mxu0 0.0
    %1454 = vmatpush1.msra.mxu0 0.0
    %1455 = vmatprep.subr.mxu0 0.0
    %1456 = vmatpush1.msra.mxu0 0.0
    %1457 = vmatprep.subr.mxu0 0.0
    %1458 = vmatpush1.msra.mxu0 0.0
    %1459 = vmatprep.subr.mxu0 0.0
    %1460 = vmatpush1.msra.mxu0 0.0
    %1461 = vmatprep.subr.mxu0 0.0
    %1462 = vmatpush1.msra.mxu0 0.0
    %1463 = vmatprep.subr.mxu0 0.0
    %1464 = vmatpush1.msra.mxu0 0.0
    %1465 = vmatprep.subr.mxu0 0.0
    %1466 = vmatpush1.msra.mxu0 0.0
    %1467 = vmatprep.subr.mxu0 0.0
    %1468 = vmatpush1.msra.mxu0 0.0
    %1469 = vmatprep.subr.mxu0 0.0
    %1470 = vmatpush1.msra.mxu0 0.0
    %1471 = vmatprep.subr.mxu0 0.0
    %1472 = vmatpush1.msra.mxu0 0.0
    %1473 = vmatprep.subr.mxu0 0.0
    %1474 = vmatpush1.msra.mxu0 0.0
    %1475 = vmatprep.subr.mxu0 0.0
    %1476 = vmatpush1.msra.mxu0 0.0
    %1477 = vmatprep.subr.mxu0 0.0
    %1478 = vmatpush1.msra.mxu0 0.0
    %1479 = vmatprep.subr.mxu0 0.0
    %1480 = vmatpush1.msra.mxu0 0.0
    %1481 = vmatprep.subr.mxu0 0.0
    %1482 = vmatpush1.msra.mxu0 0.0
    %1483 = vmatprep.subr.mxu0 0.0
    %1484 = vmatpush1.msra.mxu0 0.0
    %1485 = vmatprep.subr.mxu0 0.0
    %1486 = vmatpush1.msra.mxu0 0.0
    %1487 = vmatprep.subr.mxu0 0.0
    %1488 = vmatpush1.msra.mxu0 0.0
    %1489 = vmatprep.subr.mxu0 0.0
    %1490 = vmatpush1.msra.mxu0 0.0
    %1491 = vmatprep.subr.mxu0 0.0
    %1492 = vmatpush1.msra.mxu0 0.0
    %1493 = vmatprep.subr.mxu0 0.0
    %1494 = vmatpush1.msra.mxu0 0.0
    %1495 = vmatprep.subr.mxu0 0.0
    %1496 = vmatpush1.msra.mxu0 0.0
    %1497 = vmatprep.subr.mxu0 0.0
    %1498 = vmatpush1.msra.mxu0 0.0
    %1499 = vmatprep.subr.mxu0 0.0
    %1500 = vmatpush1.msra.mxu0 0.0
    %1501 = vmatprep.mubr.f32.mxu0 0.0
    %1502 = vmatmul.mubr.f32.gmra.mrb[0].mxu0 %v1432
    %v1503 = vpop.f32.mrb[0].mxu0
    %v1504 = vadd.f32 0.0, %v1503
    %v1505 = vpop.f32.mrb[0].mxu0
    %1506 = vdwg.mxu0
    %v1507 = vld [vmem:[%s8] sm:$0xf]
    %v1509 = vsel %vm1430, %v1507, 0
    %1511 = vmatprep.subr.mxu0 0.0
    %1512 = vmatpush1.msra.mxu0 %v1426
    %1513 = vmatprep.subr.mxu0 0.0
    %1514 = vmatpush1.msra.mxu0 %v1427
    %1515 = vmatprep.subr.mxu0 0.0
    %1516 = vmatpush1.msra.mxu0 %v1435
    %1517 = vmatprep.subr.mxu0 0.0
    %1518 = vmatpush1.msra.mxu0 0.0
    %1519 = vmatprep.subr.mxu0 0.0
    %1520 = vmatpush1.msra.mxu0 0.0
    %1521 = vmatprep.subr.mxu0 0.0
    %1522 = vmatpush1.msra.mxu0 0.0
    %1523 = vmatprep.subr.mxu0 0.0
    %1524 = vmatpush1.msra.mxu0 0.0
    %1525 = vmatprep.subr.mxu0 0.0
    %1526 = vmatpush1.msra.mxu0 0.0
    %1527 = vmatprep.subr.mxu0 0.0
    %1528 = vmatpush1.msra.mxu0 0.0
    %1529 = vmatprep.subr.mxu0 0.0
    %1530 = vmatpush1.msra.mxu0 0.0
    %1531 = vmatprep.subr.mxu0 0.0
    %1532 = vmatpush1.msra.mxu0 0.0
    %1533 = vmatprep.subr.mxu0 0.0
    %1534 = vmatpush1.msra.mxu0 0.0
    %1535 = vmatprep.subr.mxu0 0.0
    %1536 = vmatpush1.msra.mxu0 0.0
    %1537 = vmatprep.subr.mxu0 0.0
    %1538 = vmatpush1.msra.mxu0 0.0
    %1539 = vmatprep.subr.mxu0 0.0
    %1540 = vmatpush1.msra.mxu0 0.0
    %1541 = vmatprep.subr.mxu0 0.0
    %1542 = vmatpush1.msra.mxu0 0.0
    %1543 = vmatprep.subr.mxu0 0.0
    %1544 = vmatpush1.msra.mxu0 0.0
    %1545 = vmatprep.subr.mxu0 0.0
    %1546 = vmatpush1.msra.mxu0 0.0
    %1547 = vmatprep.subr.mxu0 0.0
    %1548 = vmatpush1.msra.mxu0 0.0
    %1549 = vmatprep.subr.mxu0 0.0
    %1550 = vmatpush1.msra.mxu0 0.0
    %1551 = vmatprep.subr.mxu0 0.0
    %1552 = vmatpush1.msra.mxu0 0.0
    %1553 = vmatprep.subr.mxu0 0.0
    %1554 = vmatpush1.msra.mxu0 0.0
    %1555 = vmatprep.subr.mxu0 0.0
    %1556 = vmatpush1.msra.mxu0 0.0
    %1557 = vmatprep.subr.mxu0 0.0
    %1558 = vmatpush1.msra.mxu0 0.0
    %1559 = vmatprep.subr.mxu0 0.0
    %1560 = vmatpush1.msra.mxu0 0.0
    %1561 = vmatprep.subr.mxu0 0.0
    %1562 = vmatpush1.msra.mxu0 0.0
    %1563 = vmatprep.subr.mxu0 0.0
    %1564 = vmatpush1.msra.mxu0 0.0
    %1565 = vmatprep.subr.mxu0 0.0
    %1566 = vmatpush1.msra.mxu0 0.0
    %1567 = vmatprep.subr.mxu0 0.0
    %1568 = vmatpush1.msra.mxu0 0.0
    %1569 = vmatprep.subr.mxu0 0.0
    %1570 = vmatpush1.msra.mxu0 0.0
    %1571 = vmatprep.subr.mxu0 0.0
    %1572 = vmatpush1.msra.mxu0 0.0
    %1573 = vmatprep.subr.mxu0 0.0
    %1574 = vmatpush1.msra.mxu0 0.0
    %1575 = vmatprep.mubr.f32.mxu0 0.0
    %1576 = vmatmul.mubr.f32.gmra.mrb[0].mxu0 %v1509
    %v1577 = vpop.f32.mrb[0].mxu0
    %v1578 = vadd.f32 0.0, %v1577
    %v1579 = vpop.f32.mrb[0].mxu0
    %1580 = vdwg.mxu0
    %v1581 = vmax.f32 %v1504, %v1578
    %1582 = vst [vmem:[#allocation2] sm:$0xf] %v1581
    %s1583 = scalar_lea.vmem %s0, 224
    %v1584 = vld [vmem:[%s1583] sm:$0xff]
    %v1585 = vld [vmem:[%s1583 + $0x8] sm:$0xff]
    %v1586 = vld [vmem:[%s1583 + $0x10] sm:$0xff]
    %v1587 = vld [vmem:[%s1583 + $0x18] sm:$0xff]
    %v1588 = vld [vmem:[%s1583 + $0x20] sm:$0xff]
    %v1589 = vld [vmem:[%s1583 + $0x28] sm:$0xff]
    %v1590 = vld [vmem:[%s1583 + $0x30] sm:$0xff]
    %v1591 = vld [vmem:[%s1583 + $0x38] sm:$0xff]
    %v1592 = vld [vmem:[%s1583 + $0x40] sm:$0xff]
    %v1593 = vld [vmem:[%s1583 + $0x48] sm:$0xff]
    %v1594 = vld [vmem:[%s1583 + $0x50] sm:$0xff]
    %v1595 = vld [vmem:[%s1583 + $0x58] sm:$0xff]
    %v1596 = vld [vmem:[%s1583 + $0x60] sm:$0xff]
    %v1597 = vld [vmem:[%s1583 + $0x68] sm:$0xff]
    %v1598 = vld [vmem:[%s1583 + $0x70] sm:$0xff]
    %v1599 = vld [vmem:[%s1583 + $0x78] sm:$0xff]
    %v1600 = vld [vmem:[%s1583 + $0x80] sm:$0xff]
    %v1601 = vld [vmem:[%s1583 + $0x88] sm:$0xff]
    %v1602 = vld [vmem:[%s1583 + $0x90] sm:$0xff]
    %v1603 = vld [vmem:[%s1583 + $0x98] sm:$0xff]
    %v1604 = vld [vmem:[%s1583 + $0xa0] sm:$0xff]
    %v1605 = vld [vmem:[%s1583 + $0xa8] sm:$0xff]
    %v1606 = vld [vmem:[%s1583 + $0xb0] sm:$0xff]
    %v1607 = vld [vmem:[%s1583 + $0xb8] sm:$0xff]
    %v1608 = vld [vmem:[%s1583 + $0xc0] sm:$0xff]
    %v1609 = vld [vmem:[%s1583 + $0xc8] sm:$0xff]
    %v1610 = vld [vmem:[%s1583 + $0xd0] sm:$0xff]
    %v1611 = vld [vmem:[%s1583 + $0xd8] sm:$0x3f]
    %v1612 = vld [vmem:[%s1] sm:$0xff]
    %v1613 = vld [vmem:[%s1 + $0x8] sm:$0xff]
    %v1614 = vld [vmem:[%s1 + $0x10] sm:$0xff]
    %v1615 = vld [vmem:[%s1 + $0x18] sm:$0xff]
    %v1616 = vld [vmem:[%s1 + $0x20] sm:$0xf]
    %v1617 = vld [vmem:[%s2] sm:$0x1]
    %v1619 = vlaneseq
    %v1620 = vshrl.u32 %v1619, 7
    %v1621 = vsub.s32 0, %v1620
    %v1622 = vrot.slane %v1617, %v1621
    %v1625 = vsel %vm73, %v1584, 0
    %v1628 = vsel %vm73, %v1585, 0
    %v1631 = vsel %vm73, %v1586, 0
    %v1634 = vsel %vm73, %v1587, 0
    %v1637 = vsel %vm73, %v1588, 0
    %v1640 = vsel %vm73, %v1589, 0
    %v1643 = vsel %vm73, %v1590, 0
    %v1646 = vsel %vm73, %v1591, 0
    %v1649 = vsel %vm73, %v1592, 0
    %v1652 = vsel %vm73, %v1593, 0
    %v1655 = vsel %vm73, %v1594, 0
    %v1658 = vsel %vm73, %v1595, 0
    %v1661 = vsel %vm73, %v1596, 0
    %v1664 = vsel %vm73, %v1597, 0
    %v1667 = vsel %vm73, %v1598, 0
    %v1670 = vsel %vm73, %v1599, 0
    %v1673 = vsel %vm73, %v1600, 0
    %v1676 = vsel %vm73, %v1601, 0
    %v1679 = vsel %vm73, %v1602, 0
    %v1682 = vsel %vm73, %v1603, 0
    %v1685 = vsel %vm73, %v1604, 0
    %v1688 = vsel %vm73, %v1605, 0
    %v1691 = vsel %vm73, %v1606, 0
    %v1694 = vsel %vm73, %v1607, 0
    %v1697 = vsel %vm73, %v1608, 0
    %v1700 = vsel %vm73, %v1609, 0
    %v1703 = vsel %vm73, %v1610, 0
    %v1706 = vsel %vm73, %v1611, 0
    %v1709 = vsel %vm158, %v1616, 0
    %1711 = vmatprep.subr.mxu0 0.0
    %1712 = vmatpush1.msra.mxu0 %v1612
    %1713 = vmatprep.subr.mxu0 0.0
    %1714 = vmatpush1.msra.mxu0 %v1613
    %1715 = vmatprep.subr.mxu0 0.0
    %1716 = vmatpush1.msra.mxu0 %v1614
    %1717 = vmatprep.subr.mxu0 0.0
    %1718 = vmatpush1.msra.mxu0 %v1615
    %1719 = vmatprep.subr.mxu0 0.0
    %1720 = vmatpush1.msra.mxu0 %v1709
    %1721 = vmatprep.subr.mxu0 0.0
    %1722 = vmatpush1.msra.mxu0 0.0
    %1723 = vmatprep.subr.mxu0 0.0
    %1724 = vmatpush1.msra.mxu0 0.0
    %1725 = vmatprep.subr.mxu0 0.0
    %1726 = vmatpush1.msra.mxu0 0.0
    %1727 = vmatprep.subr.mxu0 0.0
    %1728 = vmatpush1.msra.mxu0 0.0
    %1729 = vmatprep.subr.mxu0 0.0
    %1730 = vmatpush1.msra.mxu0 0.0
    %1731 = vmatprep.subr.mxu0 0.0
    %1732 = vmatpush1.msra.mxu0 0.0
    %1733 = vmatprep.subr.mxu0 0.0
    %1734 = vmatpush1.msra.mxu0 0.0
    %1735 = vmatprep.subr.mxu0 0.0
    %1736 = vmatpush1.msra.mxu0 0.0
    %1737 = vmatprep.subr.mxu0 0.0
    %1738 = vmatpush1.msra.mxu0 0.0
    %1739 = vmatprep.subr.mxu0 0.0
    %1740 = vmatpush1.msra.mxu0 0.0
    %1741 = vmatprep.subr.mxu0 0.0
    %1742 = vmatpush1.msra.mxu0 0.0
    %1743 = vmatprep.subr.mxu0 0.0
    %1744 = vmatpush1.msra.mxu0 0.0
    %1745 = vmatprep.subr.mxu0 0.0
    %1746 = vmatpush1.msra.mxu0 0.0
    %1747 = vmatprep.subr.mxu0 0.0
    %1748 = vmatpush1.msra.mxu0 0.0
    %1749 = vmatprep.subr.mxu0 0.0
    %1750 = vmatpush1.msra.mxu0 0.0
    %1751 = vmatprep.subr.mxu0 0.0
    %1752 = vmatpush1.msra.mxu0 0.0
    %1753 = vmatprep.subr.mxu0 0.0
    %1754 = vmatpush1.msra.mxu0 0.0
    %1755 = vmatprep.subr.mxu0 0.0
    %1756 = vmatpush1.msra.mxu0 0.0
    %1757 = vmatprep.subr.mxu0 0.0
    %1758 = vmatpush1.msra.mxu0 0.0
    %1759 = vmatprep.subr.mxu0 0.0
    %1760 = vmatpush1.msra.mxu0 0.0
    %1761 = vmatprep.subr.mxu0 0.0
    %1762 = vmatpush1.msra.mxu0 0.0
    %1763 = vmatprep.subr.mxu0 0.0
    %1764 = vmatpush1.msra.mxu0 0.0
    %1765 = vmatprep.subr.mxu0 0.0
    %1766 = vmatpush1.msra.mxu0 0.0
    %1767 = vmatprep.subr.mxu0 0.0
    %1768 = vmatpush1.msra.mxu0 0.0
    %1769 = vmatprep.subr.mxu0 0.0
    %1770 = vmatpush1.msra.mxu0 0.0
    %1771 = vmatprep.subr.mxu0 0.0
    %1772 = vmatpush1.msra.mxu0 0.0
    %1773 = vmatprep.subr.mxu0 0.0
    %1774 = vmatpush1.msra.mxu0 0.0
    %1775 = vmatprep.mubr.f32.mxu0 0.0
    %1776 = vmatmul.mubr.f32.gmra.mrb[0].mxu0 %v1625
    %v1777 = vpop.f32.mrb[0].mxu0
    %v1778 = vadd.f32 %v1622, %v1777
    %v1779 = vpop.f32.mrb[0].mxu0
    %1780 = vmatprep.mubr.f32.mxu0 0.0
    %1781 = vmatmul.mubr.f32.gmra.mrb[0].mxu0 %v1628
    %v1782 = vpop.f32.mrb[0].mxu0
    %v1783 = vadd.f32 %v1622, %v1782
    %v1784 = vpop.f32.mrb[0].mxu0
    %1785 = vmatprep.mubr.f32.mxu0 0.0
    %1786 = vmatmul.mubr.f32.gmra.mrb[0].mxu0 %v1631
    %v1787 = vpop.f32.mrb[0].mxu0
    %v1788 = vadd.f32 %v1622, %v1787
    %v1789 = vpop.f32.mrb[0].mxu0
    %1790 = vmatprep.mubr.f32.mxu0 0.0
    %1791 = vmatmul.mubr.f32.gmra.mrb[0].mxu0 %v1634
    %v1792 = vpop.f32.mrb[0].mxu0
    %v1793 = vadd.f32 %v1622, %v1792
    %v1794 = vpop.f32.mrb[0].mxu0
    %1795 = vmatprep.mubr.f32.mxu0 0.0
    %1796 = vmatmul.mubr.f32.gmra.mrb[0].mxu0 %v1637
    %v1797 = vpop.f32.mrb[0].mxu0
    %v1798 = vadd.f32 %v1622, %v1797
    %v1799 = vpop.f32.mrb[0].mxu0
    %1800 = vmatprep.mubr.f32.mxu0 0.0
    %1801 = vmatmul.mubr.f32.gmra.mrb[0].mxu0 %v1640
    %v1802 = vpop.f32.mrb[0].mxu0
    %v1803 = vadd.f32 %v1622, %v1802
    %v1804 = vpop.f32.mrb[0].mxu0
    %1805 = vmatprep.mubr.f32.mxu0 0.0
    %1806 = vmatmul.mubr.f32.gmra.mrb[0].mxu0 %v1643
    %v1807 = vpop.f32.mrb[0].mxu0
    %v1808 = vadd.f32 %v1622, %v1807
    %v1809 = vpop.f32.mrb[0].mxu0
    %1810 = vmatprep.mubr.f32.mxu0 0.0
    %1811 = vmatmul.mubr.f32.gmra.mrb[0].mxu0 %v1646
    %v1812 = vpop.f32.mrb[0].mxu0
    %v1813 = vadd.f32 %v1622, %v1812
    %v1814 = vpop.f32.mrb[0].mxu0
    %1815 = vmatprep.mubr.f32.mxu0 0.0
    %1816 = vmatmul.mubr.f32.gmra.mrb[0].mxu0 %v1649
    %v1817 = vpop.f32.mrb[0].mxu0
    %v1818 = vadd.f32 %v1622, %v1817
    %v1819 = vpop.f32.mrb[0].mxu0
    %1820 = vmatprep.mubr.f32.mxu0 0.0
    %1821 = vmatmul.mubr.f32.gmra.mrb[0].mxu0 %v1652
    %v1822 = vpop.f32.mrb[0].mxu0
    %v1823 = vadd.f32 %v1622, %v1822
    %v1824 = vpop.f32.mrb[0].mxu0
    %1825 = vmatprep.mubr.f32.mxu0 0.0
    %1826 = vmatmul.mubr.f32.gmra.mrb[0].mxu0 %v1655
    %v1827 = vpop.f32.mrb[0].mxu0
    %v1828 = vadd.f32 %v1622, %v1827
    %v1829 = vpop.f32.mrb[0].mxu0
    %1830 = vmatprep.mubr.f32.mxu0 0.0
    %1831 = vmatmul.mubr.f32.gmra.mrb[0].mxu0 %v1658
    %v1832 = vpop.f32.mrb[0].mxu0
    %v1833 = vadd.f32 %v1622, %v1832
    %v1834 = vpop.f32.mrb[0].mxu0
    %1835 = vmatprep.mubr.f32.mxu0 0.0
    %1836 = vmatmul.mubr.f32.gmra.mrb[0].mxu0 %v1661
    %v1837 = vpop.f32.mrb[0].mxu0
    %v1838 = vadd.f32 %v1622, %v1837
    %v1839 = vpop.f32.mrb[0].mxu0
    %1840 = vmatprep.mubr.f32.mxu0 0.0
    %1841 = vmatmul.mubr.f32.gmra.mrb[0].mxu0 %v1664
    %v1842 = vpop.f32.mrb[0].mxu0
    %v1843 = vadd.f32 %v1622, %v1842
    %v1844 = vpop.f32.mrb[0].mxu0
    %1845 = vmatprep.mubr.f32.mxu0 0.0
    %1846 = vmatmul.mubr.f32.gmra.mrb[0].mxu0 %v1667
    %v1847 = vpop.f32.mrb[0].mxu0
    %v1848 = vadd.f32 %v1622, %v1847
    %v1849 = vpop.f32.mrb[0].mxu0
    %1850 = vmatprep.mubr.f32.mxu0 0.0
    %1851 = vmatmul.mubr.f32.gmra.mrb[0].mxu0 %v1670
    %v1852 = vpop.f32.mrb[0].mxu0
    %v1853 = vadd.f32 %v1622, %v1852
    %v1854 = vpop.f32.mrb[0].mxu0
    %1855 = vmatprep.mubr.f32.mxu0 0.0
    %1856 = vmatmul.mubr.f32.gmra.mrb[0].mxu0 %v1673
    %v1857 = vpop.f32.mrb[0].mxu0
    %v1858 = vadd.f32 %v1622, %v1857
    %v1859 = vpop.f32.mrb[0].mxu0
    %1860 = vmatprep.mubr.f32.mxu0 0.0
    %1861 = vmatmul.mubr.f32.gmra.mrb[0].mxu0 %v1676
    %v1862 = vpop.f32.mrb[0].mxu0
    %v1863 = vadd.f32 %v1622, %v1862
    %v1864 = vpop.f32.mrb[0].mxu0
    %1865 = vmatprep.mubr.f32.mxu0 0.0
    %1866 = vmatmul.mubr.f32.gmra.mrb[0].mxu0 %v1679
    %v1867 = vpop.f32.mrb[0].mxu0
    %v1868 = vadd.f32 %v1622, %v1867
    %v1869 = vpop.f32.mrb[0].mxu0
    %1870 = vmatprep.mubr.f32.mxu0 0.0
    %1871 = vmatmul.mubr.f32.gmra.mrb[0].mxu0 %v1682
    %v1872 = vpop.f32.mrb[0].mxu0
    %v1873 = vadd.f32 %v1622, %v1872
    %v1874 = vpop.f32.mrb[0].mxu0
    %1875 = vmatprep.mubr.f32.mxu0 0.0
    %1876 = vmatmul.mubr.f32.gmra.mrb[0].mxu0 %v1685
    %v1877 = vpop.f32.mrb[0].mxu0
    %v1878 = vadd.f32 %v1622, %v1877
    %v1879 = vpop.f32.mrb[0].mxu0
    %1880 = vmatprep.mubr.f32.mxu0 0.0
    %1881 = vmatmul.mubr.f32.gmra.mrb[0].mxu0 %v1688
    %v1882 = vpop.f32.mrb[0].mxu0
    %v1883 = vadd.f32 %v1622, %v1882
    %v1884 = vpop.f32.mrb[0].mxu0
    %1885 = vmatprep.mubr.f32.mxu0 0.0
    %1886 = vmatmul.mubr.f32.gmra.mrb[0].mxu0 %v1691
    %v1887 = vpop.f32.mrb[0].mxu0
    %v1888 = vadd.f32 %v1622, %v1887
    %v1889 = vpop.f32.mrb[0].mxu0
    %1890 = vmatprep.mubr.f32.mxu0 0.0
    %1891 = vmatmul.mubr.f32.gmra.mrb[0].mxu0 %v1694
    %v1892 = vpop.f32.mrb[0].mxu0
    %v1893 = vadd.f32 %v1622, %v1892
    %v1894 = vpop.f32.mrb[0].mxu0
    %1895 = vmatprep.mubr.f32.mxu0 0.0
    %1896 = vmatmul.mubr.f32.gmra.mrb[0].mxu0 %v1697
    %v1897 = vpop.f32.mrb[0].mxu0
    %v1898 = vadd.f32 %v1622, %v1897
    %v1899 = vpop.f32.mrb[0].mxu0
    %1900 = vmatprep.mubr.f32.mxu0 0.0
    %1901 = vmatmul.mubr.f32.gmra.mrb[0].mxu0 %v1700
    %v1902 = vpop.f32.mrb[0].mxu0
    %v1903 = vadd.f32 %v1622, %v1902
    %v1904 = vpop.f32.mrb[0].mxu0
    %1905 = vmatprep.mubr.f32.mxu0 0.0
    %1906 = vmatmul.mubr.f32.gmra.mrb[0].mxu0 %v1703
    %v1907 = vpop.f32.mrb[0].mxu0
    %v1908 = vadd.f32 %v1622, %v1907
    %v1909 = vpop.f32.mrb[0].mxu0
    %1910 = vmatprep.mubr.f32.mxu0 0.0
    %1911 = vmatmul.mubr.f32.gmra.mrb[0].mxu0 %v1706
    %v1912 = vpop.f32.mrb[0].mxu0
    %v1913 = vadd.f32 %v1622, %v1912
    %v1914 = vpop.f32.mrb[0].mxu0
    %1915 = vdwg.mxu0
    %v1916 = vmax.f32 %v1778, 0.0
    %v1917 = vmax.f32 %v1783, 0.0
    %v1918 = vmax.f32 %v1788, 0.0
    %v1919 = vmax.f32 %v1793, 0.0
    %v1920 = vmax.f32 %v1798, 0.0
    %v1921 = vmax.f32 %v1803, 0.0
    %v1922 = vmax.f32 %v1808, 0.0
    %v1923 = vmax.f32 %v1813, 0.0
    %v1924 = vmax.f32 %v1818, 0.0
    %v1925 = vmax.f32 %v1823, 0.0
    %v1926 = vmax.f32 %v1828, 0.0
    %v1927 = vmax.f32 %v1833, 0.0
    %v1928 = vmax.f32 %v1838, 0.0
    %v1929 = vmax.f32 %v1843, 0.0
    %v1930 = vmax.f32 %v1848, 0.0
    %v1931 = vmax.f32 %v1853, 0.0
    %v1932 = vmax.f32 %v1858, 0.0
    %v1933 = vmax.f32 %v1863, 0.0
    %v1934 = vmax.f32 %v1868, 0.0
    %v1935 = vmax.f32 %v1873, 0.0
    %v1936 = vmax.f32 %v1878, 0.0
    %v1937 = vmax.f32 %v1883, 0.0
    %v1938 = vmax.f32 %v1888, 0.0
    %v1939 = vmax.f32 %v1893, 0.0
    %v1940 = vmax.f32 %v1898, 0.0
    %v1941 = vmax.f32 %v1903, 0.0
    %v1942 = vmax.f32 %v1908, 0.0
    %v1943 = vmax.f32 %v1913, 0.0
    %v1944 = vmax.f32 %v1916, %v1918
    %v1945 = vmax.f32 %v1917, %v1919
    %v1946 = vmax.f32 %v1918, %v1920
    %v1947 = vmax.f32 %v1919, %v1921
    %v1948 = vmax.f32 %v1920, %v1922
    %v1949 = vmax.f32 %v1921, %v1923
    %v1950 = vmax.f32 %v1922, %v1924
    %v1951 = vmax.f32 %v1923, %v1925
    %v1952 = vmax.f32 %v1924, %v1926
    %v1953 = vmax.f32 %v1925, %v1927
    %v1954 = vmax.f32 %v1926, %v1928
    %v1955 = vmax.f32 %v1927, %v1929
    %v1956 = vmax.f32 %v1928, %v1930
    %v1957 = vmax.f32 %v1929, %v1931
    %v1958 = vmax.f32 %v1930, %v1932
    %v1959 = vmax.f32 %v1931, %v1933
    %v1960 = vmax.f32 %v1932, %v1934
    %v1961 = vmax.f32 %v1933, %v1935
    %v1962 = vmax.f32 %v1934, %v1936
    %v1963 = vmax.f32 %v1935, %v1937
    %v1964 = vmax.f32 %v1936, %v1938
    %v1965 = vmax.f32 %v1937, %v1939
    %v1966 = vmax.f32 %v1938, %v1940
    %v1967 = vmax.f32 %v1939, %v1941
    %v1968 = vmax.f32 %v1940, %v1942
    %v1969 = vmax.f32 %v1941, %v1943
    %v1970 = vld [vmem:[%s3] sm:$0xff]
    %v1971 = vld [vmem:[%s3 + $0x8] sm:$0xff]
    %v1972 = vld [vmem:[%s3 + $0x10] sm:$0xff]
    %v1973 = vld [vmem:[%s3 + $0x18] sm:$0xff]
    %v1974 = vld [vmem:[%s3 + $0x20] sm:$0xff]
    %v1975 = vld [vmem:[%s3 + $0x28] sm:$0xff]
    %v1976 = vld [vmem:[%s3 + $0x30] sm:$0xff]
    %v1977 = vld [vmem:[%s3 + $0x38] sm:$0xff]
    %v1978 = vld [vmem:[%s3 + $0x40] sm:$0xff]
    %v1979 = vld [vmem:[%s3 + $0x48] sm:$0xff]
    %v1980 = vld [vmem:[%s3 + $0x50] sm:$0xff]
    %v1981 = vld [vmem:[%s3 + $0x58] sm:$0xff]
    %v1982 = vld [vmem:[%s3 + $0x60] sm:$0x1]
    %v1983 = vld [vmem:[%s3 + $0x68] sm:$0x1]
    %v1985 = vsel %vm435, %v1971, 0
    %v1988 = vsel %vm435, %v1973, 0
    %v1991 = vsel %vm435, %v1975, 0
    %v1994 = vsel %vm435, %v1977, 0
    %v1997 = vsel %vm435, %v1979, 0
    %v2000 = vsel %vm435, %v1981, 0
    %v2003 = vsel %vm435, %v1983, 0
    %v2006 = vsel %vm457, %v1969, 0
    %2008 = vmatprep.subr.mxu0 0.0
    %2009 = vmatpush1.msra.mxu0 %v1944
    %2010 = vmatprep.subr.mxu0 0.0
    %2011 = vmatpush1.msra.mxu0 %v1945
    %2012 = vmatprep.subr.mxu0 0.0
    %2013 = vmatpush1.msra.mxu0 %v1946
    %2014 = vmatprep.subr.mxu0 0.0
    %2015 = vmatpush1.msra.mxu0 %v1947
    %2016 = vmatprep.subr.mxu0 0.0
    %2017 = vmatpush1.msra.mxu0 %v1948
    %2018 = vmatprep.subr.mxu0 0.0
    %2019 = vmatpush1.msra.mxu0 %v1949
    %2020 = vmatprep.subr.mxu0 0.0
    %2021 = vmatpush1.msra.mxu0 %v1950
    %2022 = vmatprep.subr.mxu0 0.0
    %2023 = vmatpush1.msra.mxu0 %v1951
    %2024 = vmatprep.subr.mxu0 0.0
    %2025 = vmatpush1.msra.mxu0 %v1952
    %2026 = vmatprep.subr.mxu0 0.0
    %2027 = vmatpush1.msra.mxu0 %v1953
    %2028 = vmatprep.subr.mxu0 0.0
    %2029 = vmatpush1.msra.mxu0 %v1954
    %2030 = vmatprep.subr.mxu0 0.0
    %2031 = vmatpush1.msra.mxu0 %v1955
    %2032 = vmatprep.subr.mxu0 0.0
    %2033 = vmatpush1.msra.mxu0 %v1956
    %2034 = vmatprep.subr.mxu0 0.0
    %2035 = vmatpush1.msra.mxu0 %v1957
    %2036 = vmatprep.subr.mxu0 0.0
    %2037 = vmatpush1.msra.mxu0 %v1958
    %2038 = vmatprep.subr.mxu0 0.0
    %2039 = vmatpush1.msra.mxu0 %v1959
    %2040 = vmatprep.subr.mxu0 0.0
    %2041 = vmatpush1.msra.mxu0 %v1960
    %2042 = vmatprep.subr.mxu0 0.0
    %2043 = vmatpush1.msra.mxu0 %v1961
    %2044 = vmatprep.subr.mxu0 0.0
    %2045 = vmatpush1.msra.mxu0 %v1962
    %2046 = vmatprep.subr.mxu0 0.0
    %2047 = vmatpush1.msra.mxu0 %v1963
    %2048 = vmatprep.subr.mxu0 0.0
    %2049 = vmatpush1.msra.mxu0 %v1964
    %2050 = vmatprep.subr.mxu0 0.0
    %2051 = vmatpush1.msra.mxu0 %v1965
    %2052 = vmatprep.subr.mxu0 0.0
    %2053 = vmatpush1.msra.mxu0 %v1966
    %2054 = vmatprep.subr.mxu0 0.0
    %2055 = vmatpush1.msra.mxu0 %v1967
    %2056 = vmatprep.subr.mxu0 0.0
    %2057 = vmatpush1.msra.mxu0 %v1968
    %2058 = vmatprep.subr.mxu0 0.0
    %2059 = vmatpush1.msra.mxu0 %v2006
    %2060 = vmatprep.subr.mxu0 0.0
    %2061 = vmatpush1.msra.mxu0 0.0
    %2062 = vmatprep.subr.mxu0 0.0
    %2063 = vmatpush1.msra.mxu0 0.0
    %2064 = vmatprep.subr.mxu0 0.0
    %2065 = vmatpush1.msra.mxu0 0.0
    %2066 = vmatprep.subr.mxu0 0.0
    %2067 = vmatpush1.msra.mxu0 0.0
    %2068 = vmatprep.subr.mxu0 0.0
    %2069 = vmatpush1.msra.mxu0 0.0
    %2070 = vmatprep.subr.mxu0 0.0
    %2071 = vmatpush1.msra.mxu0 0.0
    %2072 = vmatprep.mubr.f32.mxu0 %v1985
    %2073 = vmatmul.mubr.f32.gmra.mrb[0].mxu0 %v1970
    %v2074 = vpop.f32.mrb[0].mxu0
    %v2075 = vadd.f32 0.0, %v2074
    %v2076 = vpop.f32.mrb[0].mxu0
    %2077 = vmatprep.mubr.f32.mxu0 %v1988
    %2078 = vmatmul.mubr.f32.gmra.mrb[0].mxu0 %v1972
    %v2079 = vpop.f32.mrb[0].mxu0
    %v2080 = vadd.f32 0.0, %v2079
    %v2081 = vpop.f32.mrb[0].mxu0
    %2082 = vmatprep.mubr.f32.mxu0 %v1991
    %2083 = vmatmul.mubr.f32.gmra.mrb[0].mxu0 %v1974
    %v2084 = vpop.f32.mrb[0].mxu0
    %v2085 = vadd.f32 0.0, %v2084
    %v2086 = vpop.f32.mrb[0].mxu0
    %2087 = vmatprep.mubr.f32.mxu0 %v1994
    %2088 = vmatmul.mubr.f32.gmra.mrb[0].mxu0 %v1976
    %v2089 = vpop.f32.mrb[0].mxu0
    %v2090 = vadd.f32 0.0, %v2089
    %v2091 = vpop.f32.mrb[0].mxu0
    %2092 = vmatprep.mubr.f32.mxu0 %v1997
    %2093 = vmatmul.mubr.f32.gmra.mrb[0].mxu0 %v1978
    %v2094 = vpop.f32.mrb[0].mxu0
    %v2095 = vadd.f32 0.0, %v2094
    %v2096 = vpop.f32.mrb[0].mxu0
    %2097 = vmatprep.mubr.f32.mxu0 %v2000
    %2098 = vmatmul.mubr.f32.gmra.mrb[0].mxu0 %v1980
    %v2099 = vpop.f32.mrb[0].mxu0
    %v2100 = vadd.f32 0.0, %v2099
    %v2101 = vpop.f32.mrb[0].mxu0
    %2102 = vmatprep.mubr.f32.mxu0 %v2003
    %2103 = vmatmul.mubr.f32.gmra.mrb[0].mxu0 %v1982
    %v2104 = vpop.f32.mrb[0].mxu0
    %v2105 = vadd.f32 0.0, %v2104
    %v2106 = vpop.f32.mrb[0].mxu0
    %2107 = vdwg.mxu0
    %v2108 = vld [vmem:[%s4] sm:$0xff]
    %v2109 = vld [vmem:[%s4 + $0x8] sm:$0xff]
    %v2110 = vld [vmem:[%s4 + $0x10] sm:$0xff]
    %v2111 = vld [vmem:[%s4 + $0x18] sm:$0xff]
    %v2112 = vld [vmem:[%s4 + $0x20] sm:$0xff]
    %v2113 = vld [vmem:[%s4 + $0x28] sm:$0xff]
    %v2114 = vld [vmem:[%s4 + $0x30] sm:$0xff]
    %v2115 = vld [vmem:[%s4 + $0x38] sm:$0xff]
    %v2116 = vld [vmem:[%s4 + $0x40] sm:$0xff]
    %v2117 = vld [vmem:[%s4 + $0x48] sm:$0xff]
    %v2118 = vld [vmem:[%s4 + $0x50] sm:$0xff]
    %v2119 = vld [vmem:[%s4 + $0x58] sm:$0xff]
    %v2120 = vld [vmem:[%s4 + $0x60] sm:$0x1]
    %v2121 = vld [vmem:[%s4 + $0x68] sm:$0x1]
    %v2123 = vsel %vm435, %v2109, 0
    %v2126 = vsel %vm435, %v2111, 0
    %v2129 = vsel %vm435, %v2113, 0
    %v2132 = vsel %vm435, %v2115, 0
    %v2135 = vsel %vm435, %v2117, 0
    %v2138 = vsel %vm435, %v2119, 0
    %v2141 = vsel %vm435, %v2121, 0
    %2143 = vmatprep.subr.mxu0 0.0
    %2144 = vmatpush1.msra.mxu0 %v1944
    %2145 = vmatprep.subr.mxu0 0.0
    %2146 = vmatpush1.msra.mxu0 %v1945
    %2147 = vmatprep.subr.mxu0 0.0
    %2148 = vmatpush1.msra.mxu0 %v1946
    %2149 = vmatprep.subr.mxu0 0.0
    %2150 = vmatpush1.msra.mxu0 %v1947
    %2151 = vmatprep.subr.mxu0 0.0
    %2152 = vmatpush1.msra.mxu0 %v1948
    %2153 = vmatprep.subr.mxu0 0.0
    %2154 = vmatpush1.msra.mxu0 %v1949
    %2155 = vmatprep.subr.mxu0 0.0
    %2156 = vmatpush1.msra.mxu0 %v1950
    %2157 = vmatprep.subr.mxu0 0.0
    %2158 = vmatpush1.msra.mxu0 %v1951
    %2159 = vmatprep.subr.mxu0 0.0
    %2160 = vmatpush1.msra.mxu0 %v1952
    %2161 = vmatprep.subr.mxu0 0.0
    %2162 = vmatpush1.msra.mxu0 %v1953
    %2163 = vmatprep.subr.mxu0 0.0
    %2164 = vmatpush1.msra.mxu0 %v1954
    %2165 = vmatprep.subr.mxu0 0.0
    %2166 = vmatpush1.msra.mxu0 %v1955
    %2167 = vmatprep.subr.mxu0 0.0
    %2168 = vmatpush1.msra.mxu0 %v1956
    %2169 = vmatprep.subr.mxu0 0.0
    %2170 = vmatpush1.msra.mxu0 %v1957
    %2171 = vmatprep.subr.mxu0 0.0
    %2172 = vmatpush1.msra.mxu0 %v1958
    %2173 = vmatprep.subr.mxu0 0.0
    %2174 = vmatpush1.msra.mxu0 %v1959
    %2175 = vmatprep.subr.mxu0 0.0
    %2176 = vmatpush1.msra.mxu0 %v1960
    %2177 = vmatprep.subr.mxu0 0.0
    %2178 = vmatpush1.msra.mxu0 %v1961
    %2179 = vmatprep.subr.mxu0 0.0
    %2180 = vmatpush1.msra.mxu0 %v1962
    %2181 = vmatprep.subr.mxu0 0.0
    %2182 = vmatpush1.msra.mxu0 %v1963
    %2183 = vmatprep.subr.mxu0 0.0
    %2184 = vmatpush1.msra.mxu0 %v1964
    %2185 = vmatprep.subr.mxu0 0.0
    %2186 = vmatpush1.msra.mxu0 %v1965
    %2187 = vmatprep.subr.mxu0 0.0
    %2188 = vmatpush1.msra.mxu0 %v1966
    %2189 = vmatprep.subr.mxu0 0.0
    %2190 = vmatpush1.msra.mxu0 %v1967
    %2191 = vmatprep.subr.mxu0 0.0
    %2192 = vmatpush1.msra.mxu0 %v1968
    %2193 = vmatprep.subr.mxu0 0.0
    %2194 = vmatpush1.msra.mxu0 %v2006
    %2195 = vmatprep.subr.mxu0 0.0
    %2196 = vmatpush1.msra.mxu0 0.0
    %2197 = vmatprep.subr.mxu0 0.0
    %2198 = vmatpush1.msra.mxu0 0.0
    %2199 = vmatprep.subr.mxu0 0.0
    %2200 = vmatpush1.msra.mxu0 0.0
    %2201 = vmatprep.subr.mxu0 0.0
    %2202 = vmatpush1.msra.mxu0 0.0
    %2203 = vmatprep.subr.mxu0 0.0
    %2204 = vmatpush1.msra.mxu0 0.0
    %2205 = vmatprep.subr.mxu0 0.0
    %2206 = vmatpush1.msra.mxu0 0.0
    %2207 = vmatprep.mubr.f32.mxu0 %v2123
    %2208 = vmatmul.mubr.f32.gmra.mrb[0].mxu0 %v2108
    %v2209 = vpop.f32.mrb[0].mxu0
    %v2210 = vadd.f32 0.0, %v2209
    %v2211 = vpop.f32.mrb[0].mxu0
    %2212 = vmatprep.mubr.f32.mxu0 %v2126
    %2213 = vmatmul.mubr.f32.gmra.mrb[0].mxu0 %v2110
    %v2214 = vpop.f32.mrb[0].mxu0
    %v2215 = vadd.f32 0.0, %v2214
    %v2216 = vpop.f32.mrb[0].mxu0
    %2217 = vmatprep.mubr.f32.mxu0 %v2129
    %2218 = vmatmul.mubr.f32.gmra.mrb[0].mxu0 %v2112
    %v2219 = vpop.f32.mrb[0].mxu0
    %v2220 = vadd.f32 0.0, %v2219
    %v2221 = vpop.f32.mrb[0].mxu0
    %2222 = vmatprep.mubr.f32.mxu0 %v2132
    %2223 = vmatmul.mubr.f32.gmra.mrb[0].mxu0 %v2114
    %v2224 = vpop.f32.mrb[0].mxu0
    %v2225 = vadd.f32 0.0, %v2224
    %v2226 = vpop.f32.mrb[0].mxu0
    %2227 = vmatprep.mubr.f32.mxu0 %v2135
    %2228 = vmatmul.mubr.f32.gmra.mrb[0].mxu0 %v2116
    %v2229 = vpop.f32.mrb[0].mxu0
    %v2230 = vadd.f32 0.0, %v2229
    %v2231 = vpop.f32.mrb[0].mxu0
    %2232 = vmatprep.mubr.f32.mxu0 %v2138
    %2233 = vmatmul.mubr.f32.gmra.mrb[0].mxu0 %v2118
    %v2234 = vpop.f32.mrb[0].mxu0
    %v2235 = vadd.f32 0.0, %v2234
    %v2236 = vpop.f32.mrb[0].mxu0
    %2237 = vmatprep.mubr.f32.mxu0 %v2141
    %2238 = vmatmul.mubr.f32.gmra.mrb[0].mxu0 %v2120
    %v2239 = vpop.f32.mrb[0].mxu0
    %v2240 = vadd.f32 0.0, %v2239
    %v2241 = vpop.f32.mrb[0].mxu0
    %2242 = vdwg.mxu0
    %v2243 = vmax.f32 %v2075, %v2210
    %v2244 = vmax.f32 %v2080, %v2215
    %v2245 = vmax.f32 %v2085, %v2220
    %v2246 = vmax.f32 %v2090, %v2225
    %v2247 = vmax.f32 %v2095, %v2230
    %v2248 = vmax.f32 %v2100, %v2235
    %v2249 = vmax.f32 %v2105, %v2240
    %v2255 = vrot.slane %v2243, 1
    %v2256 = vrot.slane %v2244, 1
    %v2257 = vsel %vm708, %v2255, %v2256
    %v2258 = vrot.slane %v2245, 1
    %v2259 = vsel %vm708, %v2256, %v2258
    %v2260 = vrot.slane %v2246, 1
    %v2261 = vsel %vm708, %v2258, %v2260
    %v2262 = vrot.slane %v2247, 1
    %v2263 = vsel %vm708, %v2260, %v2262
    %v2269 = vld [vmem:[%s5] sm:$0xff]
    %v2270 = vld [vmem:[%s5 + $0x8] sm:$0xff]
    %v2271 = vld [vmem:[%s5 + $0x10] sm:$0xff]
    %v2272 = vld [vmem:[%s5 + $0x18] sm:$0xff]
    %v2273 = vld [vmem:[%s5 + $0x20] sm:$0xff]
    %v2274 = vld [vmem:[%s5 + $0x28] sm:$0xff]
    %v2275 = vld [vmem:[%s5 + $0x30] sm:$0xff]
    %v2276 = vld [vmem:[%s5 + $0x38] sm:$0xff]
    %v2277 = vld [vmem:[%s5 + $0x40] sm:$0xff]
    %v2278 = vld [vmem:[%s5 + $0x48] sm:$0xff]
    %v2279 = vld [vmem:[%s5 + $0x50] sm:$0xff]
    %v2280 = vld [vmem:[%s5 + $0x58] sm:$0xff]
    %v2281 = vld [vmem:[%s5 + $0x60] sm:$0xff]
    %v2282 = vld [vmem:[%s5 + $0x68] sm:$0xff]
    %v2283 = vld [vmem:[%s5 + $0x70] sm:$0xff]
    %v2284 = vld [vmem:[%s5 + $0x78] sm:$0xff]
    %v2285 = vld [vmem:[%s5 + $0x80] sm:$0xff]
    %v2286 = vld [vmem:[%s5 + $0x88] sm:$0xff]
    %v2287 = vld [vmem:[%s5 + $0x90] sm:$0xff]
    %v2288 = vld [vmem:[%s5 + $0x98] sm:$0xff]
    %v2289 = vld [vmem:[%s5 + $0xa0] sm:$0xff]
    %v2290 = vld [vmem:[%s5 + $0xa8] sm:$0xff]
    %v2291 = vld [vmem:[%s5 + $0xb0] sm:$0xff]
    %v2292 = vld [vmem:[%s5 + $0xb8] sm:$0xff]
    %v2293 = vld [vmem:[%s5 + $0xc0] sm:$0xff]
    %v2294 = vld [vmem:[%s5 + $0xc8] sm:$0xff]
    %v2295 = vld [vmem:[%s5 + $0xd0] sm:$0xff]
    %v2296 = vld [vmem:[%s5 + $0xd8] sm:$0xff]
    %v2297 = vld [vmem:[%s5 + $0xe0] sm:$0xff]
    %v2298 = vld [vmem:[%s5 + $0xe8] sm:$0xff]
    %v2299 = vld [vmem:[%s5 + $0xf0] sm:$0xff]
    %v2300 = vld [vmem:[%s5 + $0xf8] sm:$0xff]
    %v2301 = vrot.slane %v2243, 5
    %v2302 = vrot.slane %v2244, 5
    %v2303 = vsel %vm755, %v2301, %v2302
    %v2304 = vrot.slane %v2245, 5
    %v2305 = vsel %vm755, %v2302, %v2304
    %v2306 = vrot.slane %v2246, 5
    %v2307 = vsel %vm755, %v2304, %v2306
    %v2308 = vrot.slane %v2247, 5
    %v2309 = vsel %vm755, %v2306, %v2308
    %v2310 = vld [vmem:[%s5 + $0x100] sm:$0xff]
    %v2311 = vld [vmem:[%s5 + $0x108] sm:$0xff]
    %v2312 = vld [vmem:[%s5 + $0x110] sm:$0xff]
    %v2313 = vld [vmem:[%s5 + $0x118] sm:$0xff]
    %v2314 = vld [vmem:[%s5 + $0x120] sm:$0xff]
    %v2315 = vld [vmem:[%s5 + $0x128] sm:$0xff]
    %v2316 = vld [vmem:[%s5 + $0x130] sm:$0xff]
    %v2317 = vld [vmem:[%s5 + $0x138] sm:$0xff]
    %v2318 = vld [vmem:[%s5 + $0x140] sm:$0xff]
    %v2319 = vld [vmem:[%s5 + $0x148] sm:$0xff]
    %v2320 = vld [vmem:[%s5 + $0x150] sm:$0xff]
    %v2321 = vld [vmem:[%s5 + $0x158] sm:$0xff]
    %v2322 = vld [vmem:[%s5 + $0x160] sm:$0xff]
    %v2323 = vld [vmem:[%s5 + $0x168] sm:$0xff]
    %v2324 = vld [vmem:[%s5 + $0x170] sm:$0xff]
    %v2325 = vld [vmem:[%s5 + $0x178] sm:$0xff]
    %v2326 = vld [vmem:[%s5 + $0x180] sm:$0xff]
    %v2327 = vld [vmem:[%s5 + $0x188] sm:$0xff]
    %v2328 = vld [vmem:[%s5 + $0x190] sm:$0xff]
    %v2329 = vld [vmem:[%s5 + $0x198] sm:$0xff]
    %v2330 = vld [vmem:[%s5 + $0x1a0] sm:$0xff]
    %v2331 = vld [vmem:[%s5 + $0x1a8] sm:$0xff]
    %v2332 = vld [vmem:[%s5 + $0x1b0] sm:$0xff]
    %v2333 = vld [vmem:[%s5 + $0x1b8] sm:$0xff]
    %v2334 = vld [vmem:[%s5 + $0x1c0] sm:$0xff]
    %v2335 = vld [vmem:[%s5 + $0x1c8] sm:$0xff]
    %v2336 = vld [vmem:[%s5 + $0x1d0] sm:$0xff]
    %v2337 = vld [vmem:[%s5 + $0x1d8] sm:$0xff]
    %v2338 = vld [vmem:[%s5 + $0x1e0] sm:$0xff]
    %v2339 = vld [vmem:[%s5 + $0x1e8] sm:$0xff]
    %v2340 = vld [vmem:[%s5 + $0x1f0] sm:$0xff]
    %v2341 = vld [vmem:[%s5 + $0x1f8] sm:$0xff]
    %v2342 = vrot.slane %v2243, 2
    %v2343 = vrot.slane %v2244, 2
    %v2344 = vsel %vm457, %v2342, %v2343
    %v2345 = vrot.slane %v2303, 2
    %v2346 = vrot.slane %v2305, 2
    %v2347 = vsel %vm457, %v2345, %v2346
    %v2348 = vrot.slane %v2245, 2
    %v2349 = vsel %vm457, %v2343, %v2348
    %v2350 = vrot.slane %v2307, 2
    %v2351 = vsel %vm457, %v2346, %v2350
    %v2352 = vrot.slane %v2246, 2
    %v2353 = vsel %vm457, %v2348, %v2352
    %v2354 = vrot.slane %v2309, 2
    %v2355 = vsel %vm457, %v2350, %v2354
    %v2356 = vrot.slane %v2247, 2
    %v2357 = vsel %vm457, %v2352, %v2356
    %v2358 = vrot.slane %v2308, 2
    %v2359 = vsel %vm457, %v2354, %v2358
    %2370 = vmatprep.subr.mxu0 0.0
    %2371 = vmatpush1.msra.mxu0 %v2310
    %2372 = vmatprep.subr.mxu0 0.0
    %2373 = vmatpush1.msra.mxu0 %v2311
    %2374 = vmatprep.subr.mxu0 0.0
    %2375 = vmatpush1.msra.mxu0 %v2312
    %2376 = vmatprep.subr.mxu0 0.0
    %2377 = vmatpush1.msra.mxu0 %v2313
    %2378 = vmatprep.subr.mxu0 0.0
    %2379 = vmatpush1.msra.mxu0 %v2314
    %2380 = vmatprep.subr.mxu0 0.0
    %2381 = vmatpush1.msra.mxu0 %v2315
    %2382 = vmatprep.subr.mxu0 0.0
    %2383 = vmatpush1.msra.mxu0 %v2316
    %2384 = vmatprep.subr.mxu0 0.0
    %2385 = vmatpush1.msra.mxu0 %v2317
    %2386 = vmatprep.subr.mxu0 0.0
    %2387 = vmatpush1.msra.mxu0 %v2318
    %2388 = vmatprep.subr.mxu0 0.0
    %2389 = vmatpush1.msra.mxu0 %v2319
    %2390 = vmatprep.subr.mxu0 0.0
    %2391 = vmatpush1.msra.mxu0 %v2320
    %2392 = vmatprep.subr.mxu0 0.0
    %2393 = vmatpush1.msra.mxu0 %v2321
    %2394 = vmatprep.subr.mxu0 0.0
    %2395 = vmatpush1.msra.mxu0 %v2322
    %2396 = vmatprep.subr.mxu0 0.0
    %2397 = vmatpush1.msra.mxu0 %v2323
    %2398 = vmatprep.subr.mxu0 0.0
    %2399 = vmatpush1.msra.mxu0 %v2324
    %2400 = vmatprep.subr.mxu0 0.0
    %2401 = vmatpush1.msra.mxu0 %v2325
    %2402 = vmatprep.subr.mxu0 0.0
    %2403 = vmatpush1.msra.mxu0 %v2326
    %2404 = vmatprep.subr.mxu0 0.0
    %2405 = vmatpush1.msra.mxu0 %v2327
    %2406 = vmatprep.subr.mxu0 0.0
    %2407 = vmatpush1.msra.mxu0 %v2328
    %2408 = vmatprep.subr.mxu0 0.0
    %2409 = vmatpush1.msra.mxu0 %v2329
    %2410 = vmatprep.subr.mxu0 0.0
    %2411 = vmatpush1.msra.mxu0 %v2330
    %2412 = vmatprep.subr.mxu0 0.0
    %2413 = vmatpush1.msra.mxu0 %v2331
    %2414 = vmatprep.subr.mxu0 0.0
    %2415 = vmatpush1.msra.mxu0 %v2332
    %2416 = vmatprep.subr.mxu0 0.0
    %2417 = vmatpush1.msra.mxu0 %v2333
    %2418 = vmatprep.subr.mxu0 0.0
    %2419 = vmatpush1.msra.mxu0 %v2334
    %2420 = vmatprep.subr.mxu0 0.0
    %2421 = vmatpush1.msra.mxu0 %v2335
    %2422 = vmatprep.subr.mxu0 0.0
    %2423 = vmatpush1.msra.mxu0 %v2336
    %2424 = vmatprep.subr.mxu0 0.0
    %2425 = vmatpush1.msra.mxu0 %v2337
    %2426 = vmatprep.subr.mxu0 0.0
    %2427 = vmatpush1.msra.mxu0 %v2338
    %2428 = vmatprep.subr.mxu0 0.0
    %2429 = vmatpush1.msra.mxu0 %v2339
    %2430 = vmatprep.subr.mxu0 0.0
    %2431 = vmatpush1.msra.mxu0 %v2340
    %2432 = vmatprep.subr.mxu0 0.0
    %2433 = vmatpush1.msra.mxu0 %v2341
    %2434 = vmatprep.mubr.f32.mxu0 %v2347
    %2435 = vmatmul.mubr.f32.gmra.mrb[0].mxu0 %v2344
    %v2436 = vpop.f32.mrb[0].mxu0
    %v2437 = vadd.f32 0.0, %v2436
    %v2438 = vpop.f32.mrb[0].mxu0
    %2439 = vmatprep.mubr.f32.mxu0 %v2351
    %2440 = vmatmul.mubr.f32.gmra.mrb[0].mxu0 %v2349
    %v2441 = vpop.f32.mrb[0].mxu0
    %v2442 = vadd.f32 0.0, %v2441
    %v2443 = vpop.f32.mrb[0].mxu0
    %2444 = vmatprep.mubr.f32.mxu0 %v2355
    %2445 = vmatmul.mubr.f32.gmra.mrb[0].mxu0 %v2353
    %v2446 = vpop.f32.mrb[0].mxu0
    %v2447 = vadd.f32 0.0, %v2446
    %v2448 = vpop.f32.mrb[0].mxu0
    %2449 = vmatprep.mubr.f32.mxu0 %v2359
    %2450 = vmatmul.mubr.f32.gmra.mrb[0].mxu0 %v2357
    %v2451 = vpop.f32.mrb[0].mxu0
    %v2452 = vadd.f32 0.0, %v2451
    %v2453 = vpop.f32.mrb[0].mxu0
    %2454 = vmatprep.mubr.f32.mxu0 %v2358
    %2455 = vmatmul.mubr.f32.gmra.mrb[0].mxu0 %v2356
    %v2456 = vpop.f32.mrb[0].mxu0
    %v2457 = vpop.f32.mrb[0].mxu0
    %2458 = vdwg.mxu0
    %2459 = vmatprep.subr.mxu0 0.0
    %2460 = vmatpush1.msra.mxu0 %v2269
    %2461 = vmatprep.subr.mxu0 0.0
    %2462 = vmatpush1.msra.mxu0 %v2270
    %2463 = vmatprep.subr.mxu0 0.0
    %2464 = vmatpush1.msra.mxu0 %v2271
    %2465 = vmatprep.subr.mxu0 0.0
    %2466 = vmatpush1.msra.mxu0 %v2272
    %2467 = vmatprep.subr.mxu0 0.0
    %2468 = vmatpush1.msra.mxu0 %v2273
    %2469 = vmatprep.subr.mxu0 0.0
    %2470 = vmatpush1.msra.mxu0 %v2274
    %2471 = vmatprep.subr.mxu0 0.0
    %2472 = vmatpush1.msra.mxu0 %v2275
    %2473 = vmatprep.subr.mxu0 0.0
    %2474 = vmatpush1.msra.mxu0 %v2276
    %2475 = vmatprep.subr.mxu0 0.0
    %2476 = vmatpush1.msra.mxu0 %v2277
    %2477 = vmatprep.subr.mxu0 0.0
    %2478 = vmatpush1.msra.mxu0 %v2278
    %2479 = vmatprep.subr.mxu0 0.0
    %2480 = vmatpush1.msra.mxu0 %v2279
    %2481 = vmatprep.subr.mxu0 0.0
    %2482 = vmatpush1.msra.mxu0 %v2280
    %2483 = vmatprep.subr.mxu0 0.0
    %2484 = vmatpush1.msra.mxu0 %v2281
    %2485 = vmatprep.subr.mxu0 0.0
    %2486 = vmatpush1.msra.mxu0 %v2282
    %2487 = vmatprep.subr.mxu0 0.0
    %2488 = vmatpush1.msra.mxu0 %v2283
    %2489 = vmatprep.subr.mxu0 0.0
    %2490 = vmatpush1.msra.mxu0 %v2284
    %2491 = vmatprep.subr.mxu0 0.0
    %2492 = vmatpush1.msra.mxu0 %v2285
    %2493 = vmatprep.subr.mxu0 0.0
    %2494 = vmatpush1.msra.mxu0 %v2286
    %2495 = vmatprep.subr.mxu0 0.0
    %2496 = vmatpush1.msra.mxu0 %v2287
    %2497 = vmatprep.subr.mxu0 0.0
    %2498 = vmatpush1.msra.mxu0 %v2288
    %2499 = vmatprep.subr.mxu0 0.0
    %2500 = vmatpush1.msra.mxu0 %v2289
    %2501 = vmatprep.subr.mxu0 0.0
    %2502 = vmatpush1.msra.mxu0 %v2290
    %2503 = vmatprep.subr.mxu0 0.0
    %2504 = vmatpush1.msra.mxu0 %v2291
    %2505 = vmatprep.subr.mxu0 0.0
    %2506 = vmatpush1.msra.mxu0 %v2292
    %2507 = vmatprep.subr.mxu0 0.0
    %2508 = vmatpush1.msra.mxu0 %v2293
    %2509 = vmatprep.subr.mxu0 0.0
    %2510 = vmatpush1.msra.mxu0 %v2294
    %2511 = vmatprep.subr.mxu0 0.0
    %2512 = vmatpush1.msra.mxu0 %v2295
    %2513 = vmatprep.subr.mxu0 0.0
    %2514 = vmatpush1.msra.mxu0 %v2296
    %2515 = vmatprep.subr.mxu0 0.0
    %2516 = vmatpush1.msra.mxu0 %v2297
    %2517 = vmatprep.subr.mxu0 0.0
    %2518 = vmatpush1.msra.mxu0 %v2298
    %2519 = vmatprep.subr.mxu0 0.0
    %2520 = vmatpush1.msra.mxu0 %v2299
    %2521 = vmatprep.subr.mxu0 0.0
    %2522 = vmatpush1.msra.mxu0 %v2300
    %2523 = vmatprep.mubr.f32.mxu0 %v2257
    %2524 = vmatmul.mubr.f32.gmra.mrb[0].mxu0 %v2243
    %v2525 = vpop.f32.mrb[0].mxu0
    %v2526 = vadd.f32 %v2437, %v2525
    %v2527 = vpop.f32.mrb[0].mxu0
    %2528 = vmatprep.mubr.f32.mxu0 %v2259
    %2529 = vmatmul.mubr.f32.gmra.mrb[0].mxu0 %v2244
    %v2530 = vpop.f32.mrb[0].mxu0
    %v2531 = vadd.f32 %v2442, %v2530
    %v2532 = vpop.f32.mrb[0].mxu0
    %2533 = vmatprep.mubr.f32.mxu0 %v2261
    %2534 = vmatmul.mubr.f32.gmra.mrb[0].mxu0 %v2245
    %v2535 = vpop.f32.mrb[0].mxu0
    %v2536 = vadd.f32 %v2447, %v2535
    %v2537 = vpop.f32.mrb[0].mxu0
    %2538 = vmatprep.mubr.f32.mxu0 %v2263
    %2539 = vmatmul.mubr.f32.gmra.mrb[0].mxu0 %v2246
    %v2540 = vpop.f32.mrb[0].mxu0
    %v2541 = vadd.f32 %v2452, %v2540
    %v2542 = vpop.f32.mrb[0].mxu0
    %2543 = vmatprep.mubr.f32.mxu0 %v2262
    %2544 = vmatmul.mubr.f32.gmra.mrb[0].mxu0 %v2247
    %v2545 = vpop.f32.mrb[0].mxu0
    %v2546 = vpop.f32.mrb[0].mxu0
    %2547 = vdwg.mxu0
    %v2549 = vrot.slane %v2248, 1
    %v2550 = vsel %vm708, %v2262, %v2549
    %v2553 = vld [vmem:[%s5 + $0x200] sm:$0xff]
    %v2554 = vld [vmem:[%s5 + $0x208] sm:$0xff]
    %v2555 = vld [vmem:[%s5 + $0x210] sm:$0xff]
    %v2556 = vld [vmem:[%s5 + $0x218] sm:$0xff]
    %v2557 = vld [vmem:[%s5 + $0x220] sm:$0xff]
    %v2558 = vld [vmem:[%s5 + $0x228] sm:$0xff]
    %v2559 = vld [vmem:[%s5 + $0x230] sm:$0xff]
    %v2560 = vld [vmem:[%s5 + $0x238] sm:$0xff]
    %v2561 = vld [vmem:[%s5 + $0x240] sm:$0xff]
    %v2562 = vld [vmem:[%s5 + $0x248] sm:$0xff]
    %v2563 = vld [vmem:[%s5 + $0x250] sm:$0xff]
    %v2564 = vld [vmem:[%s5 + $0x258] sm:$0xff]
    %v2565 = vld [vmem:[%s5 + $0x260] sm:$0xff]
    %v2566 = vld [vmem:[%s5 + $0x268] sm:$0xff]
    %v2567 = vld [vmem:[%s5 + $0x270] sm:$0xff]
    %v2568 = vld [vmem:[%s5 + $0x278] sm:$0xff]
    %v2569 = vld [vmem:[%s5 + $0x280] sm:$0xff]
    %v2570 = vld [vmem:[%s5 + $0x288] sm:$0xff]
    %v2571 = vld [vmem:[%s5 + $0x290] sm:$0xff]
    %v2572 = vld [vmem:[%s5 + $0x298] sm:$0xff]
    %v2573 = vld [vmem:[%s5 + $0x2a0] sm:$0xff]
    %v2574 = vld [vmem:[%s5 + $0x2a8] sm:$0xff]
    %v2575 = vld [vmem:[%s5 + $0x2b0] sm:$0xff]
    %v2576 = vld [vmem:[%s5 + $0x2b8] sm:$0xff]
    %v2577 = vld [vmem:[%s5 + $0x2c0] sm:$0xff]
    %v2578 = vld [vmem:[%s5 + $0x2c8] sm:$0xff]
    %v2579 = vld [vmem:[%s5 + $0x2d0] sm:$0xff]
    %v2580 = vld [vmem:[%s5 + $0x2d8] sm:$0xff]
    %v2581 = vld [vmem:[%s5 + $0x2e0] sm:$0xff]
    %v2582 = vld [vmem:[%s5 + $0x2e8] sm:$0xff]
    %v2583 = vld [vmem:[%s5 + $0x2f0] sm:$0xff]
    %v2584 = vld [vmem:[%s5 + $0x2f8] sm:$0xff]
    %2585 = vmatprep.subr.mxu0 0.0
    %2586 = vmatpush1.msra.mxu0 %v2553
    %2587 = vmatprep.subr.mxu0 0.0
    %2588 = vmatpush1.msra.mxu0 %v2554
    %2589 = vmatprep.subr.mxu0 0.0
    %2590 = vmatpush1.msra.mxu0 %v2555
    %2591 = vmatprep.subr.mxu0 0.0
    %2592 = vmatpush1.msra.mxu0 %v2556
    %2593 = vmatprep.subr.mxu0 0.0
    %2594 = vmatpush1.msra.mxu0 %v2557
    %2595 = vmatprep.subr.mxu0 0.0
    %2596 = vmatpush1.msra.mxu0 %v2558
    %2597 = vmatprep.subr.mxu0 0.0
    %2598 = vmatpush1.msra.mxu0 %v2559
    %2599 = vmatprep.subr.mxu0 0.0
    %2600 = vmatpush1.msra.mxu0 %v2560
    %2601 = vmatprep.subr.mxu0 0.0
    %2602 = vmatpush1.msra.mxu0 %v2561
    %2603 = vmatprep.subr.mxu0 0.0
    %2604 = vmatpush1.msra.mxu0 %v2562
    %2605 = vmatprep.subr.mxu0 0.0
    %2606 = vmatpush1.msra.mxu0 %v2563
    %2607 = vmatprep.subr.mxu0 0.0
    %2608 = vmatpush1.msra.mxu0 %v2564
    %2609 = vmatprep.subr.mxu0 0.0
    %2610 = vmatpush1.msra.mxu0 %v2565
    %2611 = vmatprep.subr.mxu0 0.0
    %2612 = vmatpush1.msra.mxu0 %v2566
    %2613 = vmatprep.subr.mxu0 0.0
    %2614 = vmatpush1.msra.mxu0 %v2567
    %2615 = vmatprep.subr.mxu0 0.0
    %2616 = vmatpush1.msra.mxu0 %v2568
    %2617 = vmatprep.subr.mxu0 0.0
    %2618 = vmatpush1.msra.mxu0 %v2569
    %2619 = vmatprep.subr.mxu0 0.0
    %2620 = vmatpush1.msra.mxu0 %v2570
    %2621 = vmatprep.subr.mxu0 0.0
    %2622 = vmatpush1.msra.mxu0 %v2571
    %2623 = vmatprep.subr.mxu0 0.0
    %2624 = vmatpush1.msra.mxu0 %v2572
    %2625 = vmatprep.subr.mxu0 0.0
    %2626 = vmatpush1.msra.mxu0 %v2573
    %2627 = vmatprep.subr.mxu0 0.0
    %2628 = vmatpush1.msra.mxu0 %v2574
    %2629 = vmatprep.subr.mxu0 0.0
    %2630 = vmatpush1.msra.mxu0 %v2575
    %2631 = vmatprep.subr.mxu0 0.0
    %2632 = vmatpush1.msra.mxu0 %v2576
    %2633 = vmatprep.subr.mxu0 0.0
    %2634 = vmatpush1.msra.mxu0 %v2577
    %2635 = vmatprep.subr.mxu0 0.0
    %2636 = vmatpush1.msra.mxu0 %v2578
    %2637 = vmatprep.subr.mxu0 0.0
    %2638 = vmatpush1.msra.mxu0 %v2579
    %2639 = vmatprep.subr.mxu0 0.0
    %2640 = vmatpush1.msra.mxu0 %v2580
    %2641 = vmatprep.subr.mxu0 0.0
    %2642 = vmatpush1.msra.mxu0 %v2581
    %2643 = vmatprep.subr.mxu0 0.0
    %2644 = vmatpush1.msra.mxu0 %v2582
    %2645 = vmatprep.subr.mxu0 0.0
    %2646 = vmatpush1.msra.mxu0 %v2583
    %2647 = vmatprep.subr.mxu0 0.0
    %2648 = vmatpush1.msra.mxu0 %v2584
    %2649 = vmatprep.mubr.f32.mxu0 %v2259
    %2650 = vmatmul.mubr.f32.gmra.mrb[0].mxu0 %v2244
    %v2651 = vpop.f32.mrb[0].mxu0
    %v2652 = vadd.f32 0.0, %v2651
    %v2653 = vpop.f32.mrb[0].mxu0
    %2654 = vmatprep.mubr.f32.mxu0 %v2261
    %2655 = vmatmul.mubr.f32.gmra.mrb[0].mxu0 %v2245
    %v2656 = vpop.f32.mrb[0].mxu0
    %v2657 = vadd.f32 0.0, %v2656
    %v2658 = vpop.f32.mrb[0].mxu0
    %2659 = vmatprep.mubr.f32.mxu0 %v2263
    %2660 = vmatmul.mubr.f32.gmra.mrb[0].mxu0 %v2246
    %v2661 = vpop.f32.mrb[0].mxu0
    %v2662 = vadd.f32 0.0, %v2661
    %v2663 = vpop.f32.mrb[0].mxu0
    %2664 = vmatprep.mubr.f32.mxu0 %v2550
    %2665 = vmatmul.mubr.f32.gmra.mrb[0].mxu0 %v2247
    %v2666 = vpop.f32.mrb[0].mxu0
    %v2667 = vadd.f32 0.0, %v2666
    %v2668 = vpop.f32.mrb[0].mxu0
    %2669 = vmatprep.mubr.f32.mxu0 %v2549
    %2670 = vmatmul.mubr.f32.gmra.mrb[0].mxu0 %v2248
    %v2671 = vpop.f32.mrb[0].mxu0
    %v2672 = vpop.f32.mrb[0].mxu0
    %2673 = vdwg.mxu0
    %v2674 = vadd.f32 %v2526, %v2652
    %v2675 = vadd.f32 %v2531, %v2657
    %v2676 = vadd.f32 %v2536, %v2662
    %v2677 = vadd.f32 %v2541, %v2667
    %v2678 = vld [vmem:[%s5 + $0x300] sm:$0xff]
    %v2679 = vld [vmem:[%s5 + $0x308] sm:$0xff]
    %v2680 = vld [vmem:[%s5 + $0x310] sm:$0xff]
    %v2681 = vld [vmem:[%s5 + $0x318] sm:$0xff]
    %v2682 = vld [vmem:[%s5 + $0x320] sm:$0xff]
    %v2683 = vld [vmem:[%s5 + $0x328] sm:$0xff]
    %v2684 = vld [vmem:[%s5 + $0x330] sm:$0xff]
    %v2685 = vld [vmem:[%s5 + $0x338] sm:$0xff]
    %v2686 = vld [vmem:[%s5 + $0x340] sm:$0xff]
    %v2687 = vld [vmem:[%s5 + $0x348] sm:$0xff]
    %v2688 = vld [vmem:[%s5 + $0x350] sm:$0xff]
    %v2689 = vld [vmem:[%s5 + $0x358] sm:$0xff]
    %v2690 = vld [vmem:[%s5 + $0x360] sm:$0xff]
    %v2691 = vld [vmem:[%s5 + $0x368] sm:$0xff]
    %v2692 = vld [vmem:[%s5 + $0x370] sm:$0xff]
    %v2693 = vld [vmem:[%s5 + $0x378] sm:$0xff]
    %v2694 = vld [vmem:[%s5 + $0x380] sm:$0xff]
    %v2695 = vld [vmem:[%s5 + $0x388] sm:$0xff]
    %v2696 = vld [vmem:[%s5 + $0x390] sm:$0xff]
    %v2697 = vld [vmem:[%s5 + $0x398] sm:$0xff]
    %v2698 = vld [vmem:[%s5 + $0x3a0] sm:$0xff]
    %v2699 = vld [vmem:[%s5 + $0x3a8] sm:$0xff]
    %v2700 = vld [vmem:[%s5 + $0x3b0] sm:$0xff]
    %v2701 = vld [vmem:[%s5 + $0x3b8] sm:$0xff]
    %v2702 = vld [vmem:[%s5 + $0x3c0] sm:$0xff]
    %v2703 = vld [vmem:[%s5 + $0x3c8] sm:$0xff]
    %v2704 = vld [vmem:[%s5 + $0x3d0] sm:$0xff]
    %v2705 = vld [vmem:[%s5 + $0x3d8] sm:$0xff]
    %v2706 = vld [vmem:[%s5 + $0x3e0] sm:$0xff]
    %v2707 = vld [vmem:[%s5 + $0x3e8] sm:$0xff]
    %v2708 = vld [vmem:[%s5 + $0x3f0] sm:$0xff]
    %v2709 = vld [vmem:[%s5 + $0x3f8] sm:$0xff]
    %v2710 = vrot.slane %v2244, 6
    %v2711 = vrot.slane %v2245, 6
    %v2712 = vsel %vm1165, %v2710, %v2711
    %v2713 = vrot.slane %v2259, 6
    %v2714 = vrot.slane %v2261, 6
    %v2715 = vsel %vm1165, %v2713, %v2714
    %v2716 = vrot.slane %v2246, 6
    %v2717 = vsel %vm1165, %v2711, %v2716
    %v2718 = vrot.slane %v2263, 6
    %v2719 = vsel %vm1165, %v2714, %v2718
    %v2720 = vrot.slane %v2247, 6
    %v2721 = vsel %vm1165, %v2716, %v2720
    %v2722 = vrot.slane %v2550, 6
    %v2723 = vsel %vm1165, %v2718, %v2722
    %v2724 = vrot.slane %v2248, 6
    %v2725 = vsel %vm1165, %v2720, %v2724
    %v2726 = vrot.slane %v2549, 6
    %v2727 = vsel %vm1165, %v2722, %v2726
    %2738 = vmatprep.subr.mxu0 0.0
    %2739 = vmatpush1.msra.mxu0 %v2678
    %2740 = vmatprep.subr.mxu0 0.0
    %2741 = vmatpush1.msra.mxu0 %v2679
    %2742 = vmatprep.subr.mxu0 0.0
    %2743 = vmatpush1.msra.mxu0 %v2680
    %2744 = vmatprep.subr.mxu0 0.0
    %2745 = vmatpush1.msra.mxu0 %v2681
    %2746 = vmatprep.subr.mxu0 0.0
    %2747 = vmatpush1.msra.mxu0 %v2682
    %2748 = vmatprep.subr.mxu0 0.0
    %2749 = vmatpush1.msra.mxu0 %v2683
    %2750 = vmatprep.subr.mxu0 0.0
    %2751 = vmatpush1.msra.mxu0 %v2684
    %2752 = vmatprep.subr.mxu0 0.0
    %2753 = vmatpush1.msra.mxu0 %v2685
    %2754 = vmatprep.subr.mxu0 0.0
    %2755 = vmatpush1.msra.mxu0 %v2686
    %2756 = vmatprep.subr.mxu0 0.0
    %2757 = vmatpush1.msra.mxu0 %v2687
    %2758 = vmatprep.subr.mxu0 0.0
    %2759 = vmatpush1.msra.mxu0 %v2688
    %2760 = vmatprep.subr.mxu0 0.0
    %2761 = vmatpush1.msra.mxu0 %v2689
    %2762 = vmatprep.subr.mxu0 0.0
    %2763 = vmatpush1.msra.mxu0 %v2690
    %2764 = vmatprep.subr.mxu0 0.0
    %2765 = vmatpush1.msra.mxu0 %v2691
    %2766 = vmatprep.subr.mxu0 0.0
    %2767 = vmatpush1.msra.mxu0 %v2692
    %2768 = vmatprep.subr.mxu0 0.0
    %2769 = vmatpush1.msra.mxu0 %v2693
    %2770 = vmatprep.subr.mxu0 0.0
    %2771 = vmatpush1.msra.mxu0 %v2694
    %2772 = vmatprep.subr.mxu0 0.0
    %2773 = vmatpush1.msra.mxu0 %v2695
    %2774 = vmatprep.subr.mxu0 0.0
    %2775 = vmatpush1.msra.mxu0 %v2696
    %2776 = vmatprep.subr.mxu0 0.0
    %2777 = vmatpush1.msra.mxu0 %v2697
    %2778 = vmatprep.subr.mxu0 0.0
    %2779 = vmatpush1.msra.mxu0 %v2698
    %2780 = vmatprep.subr.mxu0 0.0
    %2781 = vmatpush1.msra.mxu0 %v2699
    %2782 = vmatprep.subr.mxu0 0.0
    %2783 = vmatpush1.msra.mxu0 %v2700
    %2784 = vmatprep.subr.mxu0 0.0
    %2785 = vmatpush1.msra.mxu0 %v2701
    %2786 = vmatprep.subr.mxu0 0.0
    %2787 = vmatpush1.msra.mxu0 %v2702
    %2788 = vmatprep.subr.mxu0 0.0
    %2789 = vmatpush1.msra.mxu0 %v2703
    %2790 = vmatprep.subr.mxu0 0.0
    %2791 = vmatpush1.msra.mxu0 %v2704
    %2792 = vmatprep.subr.mxu0 0.0
    %2793 = vmatpush1.msra.mxu0 %v2705
    %2794 = vmatprep.subr.mxu0 0.0
    %2795 = vmatpush1.msra.mxu0 %v2706
    %2796 = vmatprep.subr.mxu0 0.0
    %2797 = vmatpush1.msra.mxu0 %v2707
    %2798 = vmatprep.subr.mxu0 0.0
    %2799 = vmatpush1.msra.mxu0 %v2708
    %2800 = vmatprep.subr.mxu0 0.0
    %2801 = vmatpush1.msra.mxu0 %v2709
    %2802 = vmatprep.mubr.f32.mxu0 %v2715
    %2803 = vmatmul.mubr.f32.gmra.mrb[0].mxu0 %v2712
    %v2804 = vpop.f32.mrb[0].mxu0
    %v2805 = vadd.f32 0.0, %v2804
    %v2806 = vpop.f32.mrb[0].mxu0
    %2807 = vmatprep.mubr.f32.mxu0 %v2719
    %2808 = vmatmul.mubr.f32.gmra.mrb[0].mxu0 %v2717
    %v2809 = vpop.f32.mrb[0].mxu0
    %v2810 = vadd.f32 0.0, %v2809
    %v2811 = vpop.f32.mrb[0].mxu0
    %2812 = vmatprep.mubr.f32.mxu0 %v2723
    %2813 = vmatmul.mubr.f32.gmra.mrb[0].mxu0 %v2721
    %v2814 = vpop.f32.mrb[0].mxu0
    %v2815 = vadd.f32 0.0, %v2814
    %v2816 = vpop.f32.mrb[0].mxu0
    %2817 = vmatprep.mubr.f32.mxu0 %v2727
    %2818 = vmatmul.mubr.f32.gmra.mrb[0].mxu0 %v2725
    %v2819 = vpop.f32.mrb[0].mxu0
    %v2820 = vadd.f32 0.0, %v2819
    %v2821 = vpop.f32.mrb[0].mxu0
    %2822 = vmatprep.mubr.f32.mxu0 %v2726
    %2823 = vmatmul.mubr.f32.gmra.mrb[0].mxu0 %v2724
    %v2824 = vpop.f32.mrb[0].mxu0
    %v2825 = vpop.f32.mrb[0].mxu0
    %2826 = vdwg.mxu0
    %v2827 = vadd.f32 %v2674, %v2805
    %v2828 = vadd.f32 %v2675, %v2810
    %v2829 = vadd.f32 %v2676, %v2815
    %v2830 = vadd.f32 %v2677, %v2820
    %v2831 = vld [vmem:[%s5 + $0x400] sm:$0xff]
    %v2832 = vld [vmem:[%s5 + $0x408] sm:$0xff]
    %v2833 = vld [vmem:[%s5 + $0x410] sm:$0xff]
    %v2834 = vld [vmem:[%s5 + $0x418] sm:$0xff]
    %v2835 = vld [vmem:[%s5 + $0x420] sm:$0xff]
    %v2836 = vld [vmem:[%s5 + $0x428] sm:$0xff]
    %v2837 = vld [vmem:[%s5 + $0x430] sm:$0xff]
    %v2838 = vld [vmem:[%s5 + $0x438] sm:$0xff]
    %v2839 = vld [vmem:[%s5 + $0x440] sm:$0xff]
    %v2840 = vld [vmem:[%s5 + $0x448] sm:$0xff]
    %v2841 = vld [vmem:[%s5 + $0x450] sm:$0xff]
    %v2842 = vld [vmem:[%s5 + $0x458] sm:$0xff]
    %v2843 = vld [vmem:[%s5 + $0x460] sm:$0xff]
    %v2844 = vld [vmem:[%s5 + $0x468] sm:$0xff]
    %v2845 = vld [vmem:[%s5 + $0x470] sm:$0xff]
    %v2846 = vld [vmem:[%s5 + $0x478] sm:$0xff]
    %2847 = vmatprep.subr.mxu0 0.0
    %2848 = vmatpush1.msra.mxu0 %v2831
    %2849 = vmatprep.subr.mxu0 0.0
    %2850 = vmatpush1.msra.mxu0 %v2832
    %2851 = vmatprep.subr.mxu0 0.0
    %2852 = vmatpush1.msra.mxu0 %v2833
    %2853 = vmatprep.subr.mxu0 0.0
    %2854 = vmatpush1.msra.mxu0 %v2834
    %2855 = vmatprep.subr.mxu0 0.0
    %2856 = vmatpush1.msra.mxu0 %v2835
    %2857 = vmatprep.subr.mxu0 0.0
    %2858 = vmatpush1.msra.mxu0 %v2836
    %2859 = vmatprep.subr.mxu0 0.0
    %2860 = vmatpush1.msra.mxu0 %v2837
    %2861 = vmatprep.subr.mxu0 0.0
    %2862 = vmatpush1.msra.mxu0 %v2838
    %2863 = vmatprep.subr.mxu0 0.0
    %2864 = vmatpush1.msra.mxu0 %v2839
    %2865 = vmatprep.subr.mxu0 0.0
    %2866 = vmatpush1.msra.mxu0 %v2840
    %2867 = vmatprep.subr.mxu0 0.0
    %2868 = vmatpush1.msra.mxu0 %v2841
    %2869 = vmatprep.subr.mxu0 0.0
    %2870 = vmatpush1.msra.mxu0 %v2842
    %2871 = vmatprep.subr.mxu0 0.0
    %2872 = vmatpush1.msra.mxu0 %v2843
    %2873 = vmatprep.subr.mxu0 0.0
    %2874 = vmatpush1.msra.mxu0 %v2844
    %2875 = vmatprep.subr.mxu0 0.0
    %2876 = vmatpush1.msra.mxu0 %v2845
    %2877 = vmatprep.subr.mxu0 0.0
    %2878 = vmatpush1.msra.mxu0 %v2846
    %2879 = vmatprep.subr.mxu0 0.0
    %2880 = vmatpush1.msra.mxu0 0.0
    %2881 = vmatprep.subr.mxu0 0.0
    %2882 = vmatpush1.msra.mxu0 0.0
    %2883 = vmatprep.subr.mxu0 0.0
    %2884 = vmatpush1.msra.mxu0 0.0
    %2885 = vmatprep.subr.mxu0 0.0
    %2886 = vmatpush1.msra.mxu0 0.0
    %2887 = vmatprep.subr.mxu0 0.0
    %2888 = vmatpush1.msra.mxu0 0.0
    %2889 = vmatprep.subr.mxu0 0.0
    %2890 = vmatpush1.msra.mxu0 0.0
    %2891 = vmatprep.subr.mxu0 0.0
    %2892 = vmatpush1.msra.mxu0 0.0
    %2893 = vmatprep.subr.mxu0 0.0
    %2894 = vmatpush1.msra.mxu0 0.0
    %2895 = vmatprep.subr.mxu0 0.0
    %2896 = vmatpush1.msra.mxu0 0.0
    %2897 = vmatprep.subr.mxu0 0.0
    %2898 = vmatpush1.msra.mxu0 0.0
    %2899 = vmatprep.subr.mxu0 0.0
    %2900 = vmatpush1.msra.mxu0 0.0
    %2901 = vmatprep.subr.mxu0 0.0
    %2902 = vmatpush1.msra.mxu0 0.0
    %2903 = vmatprep.subr.mxu0 0.0
    %2904 = vmatpush1.msra.mxu0 0.0
    %2905 = vmatprep.subr.mxu0 0.0
    %2906 = vmatpush1.msra.mxu0 0.0
    %2907 = vmatprep.subr.mxu0 0.0
    %2908 = vmatpush1.msra.mxu0 0.0
    %2909 = vmatprep.subr.mxu0 0.0
    %2910 = vmatpush1.msra.mxu0 0.0
    %2911 = vmatprep.mubr.f32.mxu0 0.0
    %2912 = vmatmul.mubr.f32.gmra.mrb[0].mxu0 %v2245
    %v2913 = vpop.f32.mrb[0].mxu0
    %v2914 = vadd.f32 0.0, %v2913
    %v2915 = vpop.f32.mrb[0].mxu0
    %2916 = vmatprep.mubr.f32.mxu0 0.0
    %2917 = vmatmul.mubr.f32.gmra.mrb[0].mxu0 %v2246
    %v2918 = vpop.f32.mrb[0].mxu0
    %v2919 = vadd.f32 0.0, %v2918
    %v2920 = vpop.f32.mrb[0].mxu0
    %2921 = vmatprep.mubr.f32.mxu0 0.0
    %2922 = vmatmul.mubr.f32.gmra.mrb[0].mxu0 %v2247
    %v2923 = vpop.f32.mrb[0].mxu0
    %v2924 = vadd.f32 0.0, %v2923
    %v2925 = vpop.f32.mrb[0].mxu0
    %2926 = vmatprep.mubr.f32.mxu0 0.0
    %2927 = vmatmul.mubr.f32.gmra.mrb[0].mxu0 %v2248
    %v2928 = vpop.f32.mrb[0].mxu0
    %v2929 = vadd.f32 0.0, %v2928
    %v2930 = vpop.f32.mrb[0].mxu0
    %2931 = vmatprep.mubr.f32.mxu0 0.0
    %2932 = vmatmul.mubr.f32.gmra.mrb[0].mxu0 %v2249
    %v2933 = vpop.f32.mrb[0].mxu0
    %v2934 = vpop.f32.mrb[0].mxu0
    %2935 = vdwg.mxu0
    %v2936 = vadd.f32 %v2827, %v2914
    %v2937 = vadd.f32 %v2828, %v2919
    %v2938 = vadd.f32 %v2829, %v2924
    %v2939 = vadd.f32 %v2830, %v2929
    %v2940 = vld [vmem:[%s6] sm:$0x1]
    %v2942 = vlaneseq
    %v2943 = vshrl.u32 %v2942, 7
    %v2944 = vsub.s32 0, %v2943
    %v2945 = vrot.slane %v2940, %v2944
    %v2947 = vadd.f32 %v2936, %v2945
    %v2948 = vadd.f32 %v2937, %v2945
    %v2949 = vadd.f32 %v2938, %v2945
    %v2950 = vadd.f32 %v2939, %v2945
    %v2951 = vmax.f32 %v2947, 0.0
    %v2952 = vmax.f32 %v2948, 0.0
    %v2953 = vmax.f32 %v2949, 0.0
    %v2954 = vmax.f32 %v2950, 0.0
    %v2959 = vrot.slane %v2951, 7
    %v2960 = vrot.slane %v2952, 7
    %v2961 = vsel %vm1415, %v2959, %v2960
    %v2962 = vrot.slane %v2953, 7
    %v2963 = vsel %vm1415, %v2960, %v2962
    %v2964 = vrot.slane %v2954, 7
    %v2965 = vsel %vm1415, %v2962, %v2964
    %v2969 = vmax.f32 %v2951, %v2961
    %v2970 = vmax.f32 %v2952, %v2963
    %v2971 = vmax.f32 %v2953, %v2965
    %v2972 = vld [vmem:[%s7] sm:$0xf]
    %v2974 = vsel %vm1430, %v2972, 0
    %v2977 = vsel %vm1165, %v2971, 0
    %2979 = vmatprep.subr.mxu0 0.0
    %2980 = vmatpush1.msra.mxu0 %v2969
    %2981 = vmatprep.subr.mxu0 0.0
    %2982 = vmatpush1.msra.mxu0 %v2970
    %2983 = vmatprep.subr.mxu0 0.0
    %2984 = vmatpush1.msra.mxu0 %v2977
    %2985 = vmatprep.subr.mxu0 0.0
    %2986 = vmatpush1.msra.mxu0 0.0
    %2987 = vmatprep.subr.mxu0 0.0
    %2988 = vmatpush1.msra.mxu0 0.0
    %2989 = vmatprep.subr.mxu0 0.0
    %2990 = vmatpush1.msra.mxu0 0.0
    %2991 = vmatprep.subr.mxu0 0.0
    %2992 = vmatpush1.msra.mxu0 0.0
    %2993 = vmatprep.subr.mxu0 0.0
    %2994 = vmatpush1.msra.mxu0 0.0
    %2995 = vmatprep.subr.mxu0 0.0
    %2996 = vmatpush1.msra.mxu0 0.0
    %2997 = vmatprep.subr.mxu0 0.0
    %2998 = vmatpush1.msra.mxu0 0.0
    %2999 = vmatprep.subr.mxu0 0.0
    %3000 = vmatpush1.msra.mxu0 0.0
    %3001 = vmatprep.subr.mxu0 0.0
    %3002 = vmatpush1.msra.mxu0 0.0
    %3003 = vmatprep.subr.mxu0 0.0
    %3004 = vmatpush1.msra.mxu0 0.0
    %3005 = vmatprep.subr.mxu0 0.0
    %3006 = vmatpush1.msra.mxu0 0.0
    %3007 = vmatprep.subr.mxu0 0.0
    %3008 = vmatpush1.msra.mxu0 0.0
    %3009 = vmatprep.subr.mxu0 0.0
    %3010 = vmatpush1.msra.mxu0 0.0
    %3011 = vmatprep.subr.mxu0 0.0
    %3012 = vmatpush1.msra.mxu0 0.0
    %3013 = vmatprep.subr.mxu0 0.0
    %3014 = vmatpush1.msra.mxu0 0.0
    %3015 = vmatprep.subr.mxu0 0.0
    %3016 = vmatpush1.msra.mxu0 0.0
    %3017 = vmatprep.subr.mxu0 0.0
    %3018 = vmatpush1.msra.mxu0 0.0
    %3019 = vmatprep.subr.mxu0 0.0
    %3020 = vmatpush1.msra.mxu0 0.0
    %3021 = vmatprep.subr.mxu0 0.0
    %3022 = vmatpush1.msra.mxu0 0.0
    %3023 = vmatprep.subr.mxu0 0.0
    %3024 = vmatpush1.msra.mxu0 0.0
    %3025 = vmatprep.subr.mxu0 0.0
    %3026 = vmatpush1.msra.mxu0 0.0
    %3027 = vmatprep.subr.mxu0 0.0
    %3028 = vmatpush1.msra.mxu0 0.0
    %3029 = vmatprep.subr.mxu0 0.0
    %3030 = vmatpush1.msra.mxu0 0.0
    %3031 = vmatprep.subr.mxu0 0.0
    %3032 = vmatpush1.msra.mxu0 0.0
    %3033 = vmatprep.subr.mxu0 0.0
    %3034 = vmatpush1.msra.mxu0 0.0
    %3035 = vmatprep.subr.mxu0 0.0
    %3036 = vmatpush1.msra.mxu0 0.0
    %3037 = vmatprep.subr.mxu0 0.0
    %3038 = vmatpush1.msra.mxu0 0.0
    %3039 = vmatprep.subr.mxu0 0.0
    %3040 = vmatpush1.msra.mxu0 0.0
    %3041 = vmatprep.subr.mxu0 0.0
    %3042 = vmatpush1.msra.mxu0 0.0
    %3043 = vmatprep.mubr.f32.mxu0 0.0
    %3044 = vmatmul.mubr.f32.gmra.mrb[0].mxu0 %v2974
    %v3045 = vpop.f32.mrb[0].mxu0
    %v3046 = vadd.f32 0.0, %v3045
    %v3047 = vpop.f32.mrb[0].mxu0
    %3048 = vdwg.mxu0
    %v3049 = vld [vmem:[%s8] sm:$0xf]
    %v3051 = vsel %vm1430, %v3049, 0
    %3053 = vmatprep.subr.mxu0 0.0
    %3054 = vmatpush1.msra.mxu0 %v2969
    %3055 = vmatprep.subr.mxu0 0.0
    %3056 = vmatpush1.msra.mxu0 %v2970
    %3057 = vmatprep.subr.mxu0 0.0
    %3058 = vmatpush1.msra.mxu0 %v2977
    %3059 = vmatprep.subr.mxu0 0.0
    %3060 = vmatpush1.msra.mxu0 0.0
    %3061 = vmatprep.subr.mxu0 0.0
    %3062 = vmatpush1.msra.mxu0 0.0
    %3063 = vmatprep.subr.mxu0 0.0
    %3064 = vmatpush1.msra.mxu0 0.0
    %3065 = vmatprep.subr.mxu0 0.0
    %3066 = vmatpush1.msra.mxu0 0.0
    %3067 = vmatprep.subr.mxu0 0.0
    %3068 = vmatpush1.msra.mxu0 0.0
    %3069 = vmatprep.subr.mxu0 0.0
    %3070 = vmatpush1.msra.mxu0 0.0
    %3071 = vmatprep.subr.mxu0 0.0
    %3072 = vmatpush1.msra.mxu0 0.0
    %3073 = vmatprep.subr.mxu0 0.0
    %3074 = vmatpush1.msra.mxu0 0.0
    %3075 = vmatprep.subr.mxu0 0.0
    %3076 = vmatpush1.msra.mxu0 0.0
    %3077 = vmatprep.subr.mxu0 0.0
    %3078 = vmatpush1.msra.mxu0 0.0
    %3079 = vmatprep.subr.mxu0 0.0
    %3080 = vmatpush1.msra.mxu0 0.0
    %3081 = vmatprep.subr.mxu0 0.0
    %3082 = vmatpush1.msra.mxu0 0.0
    %3083 = vmatprep.subr.mxu0 0.0
    %3084 = vmatpush1.msra.mxu0 0.0
    %3085 = vmatprep.subr.mxu0 0.0
    %3086 = vmatpush1.msra.mxu0 0.0
    %3087 = vmatprep.subr.mxu0 0.0
    %3088 = vmatpush1.msra.mxu0 0.0
    %3089 = vmatprep.subr.mxu0 0.0
    %3090 = vmatpush1.msra.mxu0 0.0
    %3091 = vmatprep.subr.mxu0 0.0
    %3092 = vmatpush1.msra.mxu0 0.0
    %3093 = vmatprep.subr.mxu0 0.0
    %3094 = vmatpush1.msra.mxu0 0.0
    %3095 = vmatprep.subr.mxu0 0.0
    %3096 = vmatpush1.msra.mxu0 0.0
    %3097 = vmatprep.subr.mxu0 0.0
    %3098 = vmatpush1.msra.mxu0 0.0
    %3099 = vmatprep.subr.mxu0 0.0
    %3100 = vmatpush1.msra.mxu0 0.0
    %3101 = vmatprep.subr.mxu0 0.0
    %3102 = vmatpush1.msra.mxu0 0.0
    %3103 = vmatprep.subr.mxu0 0.0
    %3104 = vmatpush1.msra.mxu0 0.0
    %3105 = vmatprep.subr.mxu0 0.0
    %3106 = vmatpush1.msra.mxu0 0.0
    %3107 = vmatprep.subr.mxu0 0.0
    %3108 = vmatpush1.msra.mxu0 0.0
    %3109 = vmatprep.subr.mxu0 0.0
    %3110 = vmatpush1.msra.mxu0 0.0
    %3111 = vmatprep.subr.mxu0 0.0
    %3112 = vmatpush1.msra.mxu0 0.0
    %3113 = vmatprep.subr.mxu0 0.0
    %3114 = vmatpush1.msra.mxu0 0.0
    %3115 = vmatprep.subr.mxu0 0.0
    %3116 = vmatpush1.msra.mxu0 0.0
    %3117 = vmatprep.mubr.f32.mxu0 0.0
    %3118 = vmatmul.mubr.f32.gmra.mrb[0].mxu0 %v3051
    %v3119 = vpop.f32.mrb[0].mxu0
    %v3120 = vadd.f32 0.0, %v3119
    %v3121 = vpop.f32.mrb[0].mxu0
    %3122 = vdwg.mxu0
    %v3123 = vmax.f32 %v3046, %v3120
    %s3124 = scalar_lea.vmem [#allocation2], 4
    %3125 = vst [vmem:[%s3124] sm:$0xf] %v3123
    // Predicated region
    $region38: #{fwd.1} parent=1 // pred_check
      _
    $region39: #{fwd.1} parent=1 // pred_check_branch
      %3127 = sbr.rel (0) target = $region41
    $region40: #{fwd.1} parent=1 // pred_region
      %s3129 = ssub.s32 128, 128
      %3130 = vsyncadd [#allocation3], %s3129
      %s3131 = sshll.u32 [#allocation2], 4
      %s3132 = int_to_ptr.vmem [resolvable:$true] %s3131
      %3137 = dma.vmem_to_hbm [thread:$0]  %s3132, 128, %s9, [#allocation3], 64, 64, 4
    $region41: #{fwd.1} parent=1 // pred_fallthru
      _
    // Predicated region
    $region42: #{fwd.1} parent=1 // pred_check
      _
    $region43: #{fwd.1} parent=1 // pred_check_branch
      %3139 = sbr.rel (0) target = $region45
    $region44: #{fwd.1} parent=1 // pred_region
      %3140 = dma.done [#allocation3], 128
    $region45: #{fwd.1} parent=1 // pred_fallthru
      _
    %3141 = vsyncpa [#allocation3], 1

</llo_original>
